<compile_context>
chip_gen: v5e
topology: v5e:2x2
jax: 0.10.0
libtpu: 0.0.40
codegen_flags: <defaults>
</compile_context>

<pallas_src>
import functools

import jax
import jax.numpy as jnp
from jax.experimental import pallas as pl
from jax.experimental.pallas import tpu as pltpu


OUT_PAD = 128  # lane-dense classifier output width (real classes in [:out_size])


# ----------------------------------------------------------------------------
# Fused kernel: one batch tile (default: the whole batch, folded) end-to-end.
# ----------------------------------------------------------------------------
def fused_kernel(emb_ref, we_ref, pos_ref, wqkv_ref, bqkv_ref, wj_ref,
                 w1_ref, b1_ref, w2_ref, misc_ref, wcls_ref, bcls_ref,
                 out_ref, wv_scratch,
                 *, num_blocks, num_heads, head_size, batch_tile, seq_len):
    S = seq_len
    D = num_heads * head_size

    # Folded (bt*S, E) slab: embedding projection.  pos_ref already contains
    # be + Wp^T + bp tiled over the batch rows (onehot(S) @ Wp^T == Wp^T).
    x = jnp.dot(emb_ref[...], we_ref[...],
                preferred_element_type=jnp.float32) + pos_ref[...]    # (bt*S, D)

    def layernorm(z, g, b):
        mu = jnp.mean(z, axis=-1, keepdims=True)
        var = jnp.mean((z - mu) ** 2, axis=-1, keepdims=True)
        return (z - mu) * jax.lax.rsqrt(var + 1e-5) * g + b

    scale = 1.0 / jnp.sqrt(jnp.float32(head_size))
    cdims = (((1,), (1,)), ((), ()))  # contract last axes: q @ k^T without a .T

    for blk in range(num_blocks):
        misc = misc_ref[blk]                        # (6, D): g1, be1, g2, be2, bj, b2
        g1, be1 = misc[0:1, :], misc[1:2, :]
        g2, be2 = misc[2:3, :], misc[3:4, :]
        bj, b2 = misc[4:5, :], misc[5:6, :]

        # Fused Q|K|V projection: one (bt*S, D) @ (D, 3D) MXU op + ReLU.
        qkv = jnp.maximum(
            jnp.dot(x, wqkv_ref[blk], preferred_element_type=jnp.float32)
            + bqkv_ref[blk], 0.0)
        q = qkv[:, 0:D]
        k = qkv[:, D:2 * D]
        v = qkv[:, 2 * D:3 * D]

        # Per-batch-element, per-head attention.  Weighted values are written
        # straight into a VMEM scratch slab at their (row, lane) offsets, so no
        # lane-concat is needed before the joint projection.
        for bi in range(batch_tile):
            r0 = bi * S
            qb = q[r0:r0 + S]
            kb = k[r0:r0 + S]
            vb = v[r0:r0 + S]
            for h in range(num_heads):
                lo = h * head_size
                hi = lo + head_size
                s = jax.lax.dot_general(qb[:, lo:hi], kb[:, lo:hi], cdims,
                                        preferred_element_type=jnp.float32) * scale
                s = s - jnp.max(s, axis=-1, keepdims=True)
                e = jnp.exp(s)
                w = e * pl.reciprocal(jnp.sum(e, axis=-1, keepdims=True), approx=True)
                wv_scratch[r0:r0 + S, lo:hi] = jnp.dot(
                    w, vb[:, lo:hi], preferred_element_type=jnp.float32)

        # Joint projection on the full (bt*S, D) slab (single MXU push).
        attn = jnp.dot(wv_scratch[...], wj_ref[blk],
                       preferred_element_type=jnp.float32) + bj
        a_norm = layernorm(attn + x, g1, be1)        # attention_norm(mha + x)

        h1 = jnp.maximum(
            jnp.dot(a_norm, w1_ref[blk], preferred_element_type=jnp.float32)
            + b1_ref[blk], 0.0)                      # (bt*S, 4D)
        ff = jnp.dot(h1, w2_ref[blk], preferred_element_type=jnp.float32) + b2

        x = layernorm(ff + x, g2, be2)               # ff_norm(ff + x): residual from x

    # Mean-pool per batch element, then the (host-collapsed) classifier.
    rows = [jnp.mean(x[bi * S:(bi + 1) * S, :], axis=0, keepdims=True)
            for bi in range(batch_tile)]
    m = jnp.concatenate(rows, axis=0) if batch_tile > 1 else rows[0]   # (bt, D)

    # wcls/bcls are padded to OUT_PAD lanes; pad classes carry bias -1e30 so
    # they contribute 0 to the softmax sum and the real classes are exact.
    o = jnp.dot(m, wcls_ref[...], preferred_element_type=jnp.float32) + bcls_ref[...]
    o = o - jnp.max(o, axis=-1, keepdims=True)
    out_ref[0] = o - jnp.log(jnp.sum(jnp.exp(o), axis=-1, keepdims=True))


# ----------------------------------------------------------------------------
# Host-side, ONCE at parameter-load time: transpose / fuse / stack / pad.
# ----------------------------------------------------------------------------
def prepare_kernel_params(params):
    blocks = params["blocks"]

    # Fused QKV weights/biases, already transposed to (in, out).
    wqkv = jnp.stack([jnp.concatenate([b[0].T, b[2].T, b[4].T], axis=1)
                      for b in blocks])                        # (nb, D, 3D)
    bqkv = jnp.stack([jnp.concatenate([b[1], b[3], b[5]], axis=1)
                      for b in blocks])                        # (nb, 1, 3D)
    wj = jnp.stack([b[6].T for b in blocks])                   # (nb, D, D)
    w1 = jnp.stack([b[10].T for b in blocks])                  # (nb, D, 4D)
    b1 = jnp.stack([b[11] for b in blocks])                    # (nb, 1, 4D)
    w2 = jnp.stack([b[12].T for b in blocks])                  # (nb, 4D, D)
    # Small per-block params packed into one slab: [g1, be1, g2, be2, bj, b2].
    misc = jnp.stack([jnp.concatenate([b[8], b[9], b[14], b[15], b[7], b[13]],
                                      axis=0) for b in blocks])  # (nb, 6, D)

    # Embedding-projection bias + positional encoding folded into one slab.
    pos_bias = params["be"] + params["wp"].T + params["bp"]    # (S, D)

    # Collapsed classifier head (no nonlinearity between the two Linears).
    out_size = params["wl1"].shape[0]
    hidden = params["wl1"].shape[1]
    wl1_pad = jnp.zeros((hidden, OUT_PAD), jnp.float32).at[:, :out_size].set(params["wl1"].T)
    bl1_pad = jnp.full((1, OUT_PAD), -1e30, jnp.float32).at[:, :out_size].set(params["bl1"])
    wcls = params["wl"].T @ wl1_pad                            # (D, OUT_PAD)
    bcls = params["bl"] @ wl1_pad + bl1_pad                    # (1, OUT_PAD)

    return dict(emb_table=params["emb_table"], we_t=params["we"].T,
                pos_bias=pos_bias, wqkv=wqkv, bqkv=bqkv, wj=wj,
                w1=w1, b1=b1, w2=w2, misc=misc, wcls=wcls, bcls=bcls,
                out_size=out_size)


# ----------------------------------------------------------------------------
# pallas_call wrapper
# ----------------------------------------------------------------------------
def _const_spec(arr):
    nd = arr.ndim
    return pl.BlockSpec(arr.shape, lambda b, _nd=nd: (0,) * _nd)


def transformer_forward(tokens, kp, num_heads, batch_tile=None):
    emb = jnp.take(kp["emb_table"], tokens, axis=0)            # (B, S, E)  glue gather
    B, S, E = emb.shape
    D = kp["we_t"].shape[1]
    num_blocks = kp["wqkv"].shape[0]

    # Default: fold the whole batch into one grid step (best on single-TC
    # v5e/v6e).  On v7x pass batch_tile=1 to map batch elements onto both TCs.
    if batch_tile is None:
        batch_tile = B
    assert B % batch_tile == 0
    n_steps = B // batch_tile
    bt_rows = batch_tile * S

    emb_flat = emb.reshape(B * S, E)
    pos_flat = jnp.tile(kp["pos_bias"], (B, 1))                # (B*S, D)

    ordered = [emb_flat, kp["we_t"], pos_flat, kp["wqkv"], kp["bqkv"], kp["wj"],
               kp["w1"], kp["b1"], kp["w2"], kp["misc"], kp["wcls"], kp["bcls"]]

    in_specs = ([pl.BlockSpec((bt_rows, E), lambda b: (b, 0)),
                 _const_spec(kp["we_t"]),
                 pl.BlockSpec((bt_rows, D), lambda b: (b, 0))]
                + [_const_spec(a) for a in ordered[3:]])

    kern = functools.partial(fused_kernel, num_blocks=num_blocks,
                             num_heads=num_heads, head_size=D // num_heads,
                             batch_tile=batch_tile, seq_len=S)

    out = pl.pallas_call(
        kern,
        out_shape=jax.ShapeDtypeStruct((n_steps, batch_tile, OUT_PAD), jnp.float32),
        grid=(n_steps,),
        in_specs=in_specs,
        out_specs=pl.BlockSpec((1, batch_tile, OUT_PAD), lambda b: (b, 0, 0)),
        scratch_shapes=[pltpu.VMEM((bt_rows, D), jnp.float32)],
        compiler_params=pltpu.CompilerParams(
            dimension_semantics=("parallel",) if n_steps > 1 else ("arbitrary",),
            vmem_limit_bytes=32 * 1024 * 1024),
    )(*ordered)
    return out.reshape(B, OUT_PAD)[:, :kp["out_size"]]


# ----------------------------------------------------------------------------
# Pure-JAX reference (mirrors the PyTorch forward, eval mode)
# ----------------------------------------------------------------------------
def reference_forward(tokens, params, num_heads):
    emb = jnp.take(params["emb_table"], tokens, axis=0)
    x = emb @ params["we"].T + params["be"]
    S = tokens.shape[1]
    pos = jnp.eye(S, dtype=jnp.float32) @ params["wp"].T + params["bp"]
    x = x + pos[None]

    def lin(w, b, z):
        return z @ w.T + b

    def ln(z, g, b):
        mu = z.mean(-1, keepdims=True)
        var = ((z - mu) ** 2).mean(-1, keepdims=True)
        return (z - mu) / jnp.sqrt(var + 1e-5) * g + b

    for (wq, bq, wk, bk, wv, bv, wj, bj, g1, be1, w1, b1, w2, b2, g2, be2) in params["blocks"]:
        q = jax.nn.relu(lin(wq, bq, x))
        k = jax.nn.relu(lin(wk, bk, x))
        v = jax.nn.relu(lin(wv, bv, x))
        B_, S_, H = q.shape
        hs = H // num_heads
        qh = q.reshape(B_, S_, num_heads, hs).transpose(0, 2, 1, 3)
        kh = k.reshape(B_, S_, num_heads, hs).transpose(0, 2, 1, 3)
        vh = v.reshape(B_, S_, num_heads, hs).transpose(0, 2, 1, 3)
        score = jnp.matmul(qh, kh.transpose(0, 1, 3, 2)) / jnp.sqrt(jnp.float32(hs))
        w = jax.nn.softmax(score, axis=-1)
        wv_ = jnp.matmul(w, vh).transpose(0, 2, 1, 3).reshape(B_, S_, H)
        attn = lin(wj, bj, wv_)
        a = ln(attn + x, g1, be1)
        ff = lin(w2, b2, jax.nn.relu(lin(w1, b1, a)))
        x = ln(ff + x, g2, be2)

    m = x.mean(axis=1)
    o = lin(params["wl1"], params["bl1"], lin(params["wl"], params["bl"], m))
    return jax.nn.log_softmax(o, axis=1)


# ----------------------------------------------------------------------------
# Deterministic parameter construction
# ----------------------------------------------------------------------------
def make_dense(key, out_dim, in_dim):
    kw, kb = jax.random.split(key)
    s = 1.0 / jnp.sqrt(jnp.float32(in_dim))
    w = jax.random.uniform(kw, (out_dim, in_dim), jnp.float32, -s, s)
    b = jax.random.uniform(kb, (1, out_dim), jnp.float32, -s, s)
    return w, b


def make_params(key, vocab_size, seq_len, emb_dim, model_size, num_blocks, output_size):
    keys = jax.random.split(key, 8 + num_blocks)
    emb_table = 0.1 * jax.random.normal(keys[0], (vocab_size, emb_dim), jnp.float32)
    we, be = make_dense(keys[1], model_size, emb_dim)          # emb_ff
    wp, bp = make_dense(keys[2], model_size, seq_len)          # pos_ff
    wl, bl = make_dense(keys[3], 64, model_size)               # Linear
    wl1, bl1 = make_dense(keys[4], output_size, 64)            # Linear1

    blocks = []
    for i in range(num_blocks):
        bkeys = jax.random.split(keys[8 + i], 6)
        wq, bq = make_dense(bkeys[0], model_size, model_size)
        wk, bk = make_dense(bkeys[1], model_size, model_size)
        wv, bv = make_dense(bkeys[2], model_size, model_size)
        wj, bj = make_dense(bkeys[3], model_size, model_size)
        w1, b1 = make_dense(bkeys[4], model_size * 4, model_size)
        w2, b2 = make_dense(bkeys[5], model_size, model_size * 4)
        g1 = jnp.ones((1, model_size), jnp.float32)            # LayerNorm defaults
        be1 = jnp.zeros((1, model_size), jnp.float32)
        g2 = jnp.ones((1, model_size), jnp.float32)
        be2 = jnp.zeros((1, model_size), jnp.float32)
        blocks.append((wq, bq, wk, bk, wv, bv, wj, bj,
                       g1, be1, w1, b1, w2, b2, g2, be2))

    return dict(emb_table=emb_table, we=we, be=be, wp=wp, bp=bp,
                blocks=blocks, wl=wl, bl=bl, wl1=wl1, bl1=bl1)


# ----------------------------------------------------------------------------
if __name__ == "__main__":
    # Small, forward-consistent shapes.
    VOCAB = 100
    SEQ_LEN = 8          # average_len
    BATCH = 2
    EMB_DIM = 16         # embedding_dim
    MODEL = 32           # model_size (== hidden_size of blocks)
    NUM_HEADS = 4
    NUM_BLOCKS = 2
    OUTPUT = 2           # output_size

    key = jax.random.PRNGKey(0)
    k_tok, k_par = jax.random.split(key)
    tokens = jax.random.randint(k_tok, (BATCH, SEQ_LEN), 0, VOCAB, dtype=jnp.int32)
    params = make_params(k_par, VOCAB, SEQ_LEN, EMB_DIM, MODEL, NUM_BLOCKS, OUTPUT)

    # Parameter prep (transposes / fusion / stacking / padding) happens ONCE here,
    # not per forward call.
    kparams = prepare_kernel_params(params)

    # TODO(synk): dropout layers (attention joint, block ff) are inference-mode identity.
    probs = transformer_forward(tokens, kparams, NUM_HEADS)
    probs = jax.block_until_ready(probs)

    ref = reference_forward(tokens, params, NUM_HEADS)
    assert probs.shape == (BATCH, OUTPUT)
    # Tolerance covers the EUP approximate reciprocal used in the attention softmax
    # and the host-side classifier collapse (reassociation).
    assert jnp.allclose(probs, ref, atol=5e-3, rtol=5e-3), (probs, ref)

    print("KERNEL_OK")
</pallas_src>

<mosaic_0001>
module attributes {stable_mosaic.version = 11 : i64} {
  func.func @fused_kernel(%arg0: i32, %arg1: memref<16x16xf32, #tpu.memory_space<vmem>>, %arg2: memref<16x32xf32, #tpu.memory_space<vmem>>, %arg3: memref<16x32xf32, #tpu.memory_space<vmem>>, %arg4: memref<2x32x96xf32, #tpu.memory_space<vmem>>, %arg5: memref<2x1x96xf32, #tpu.memory_space<vmem>>, %arg6: memref<2x32x32xf32, #tpu.memory_space<vmem>>, %arg7: memref<2x32x128xf32, #tpu.memory_space<vmem>>, %arg8: memref<2x1x128xf32, #tpu.memory_space<vmem>>, %arg9: memref<2x128x32xf32, #tpu.memory_space<vmem>>, %arg10: memref<2x6x32xf32, #tpu.memory_space<vmem>>, %arg11: memref<32x128xf32, #tpu.memory_space<vmem>>, %arg12: memref<1x128xf32, #tpu.memory_space<vmem>>, %arg13: memref<1x2x128xf32, #tpu.memory_space<vmem>>, %arg14: memref<16x32xf32, #tpu.memory_space<vmem>>) attributes {dimension_semantics = [#tpu.dimension_semantics<arbitrary>], iteration_bounds = array<i64: 1>, scalar_prefetch = 0 : i64, scratch_operands = 1 : i64, tpu.core_type = #tpu.core_type<tc>, window_params = [{transform_indices = @transform_0, window_bounds = array<i64: 16, 16>}, {pipeline_mode = #tpu.pipeline_mode<synchronous>, transform_indices = @transform_1, window_bounds = array<i64: 16, 32>}, {transform_indices = @transform_2, window_bounds = array<i64: 16, 32>}, {pipeline_mode = #tpu.pipeline_mode<synchronous>, transform_indices = @transform_3, window_bounds = array<i64: 2, 32, 96>}, {pipeline_mode = #tpu.pipeline_mode<synchronous>, transform_indices = @transform_4, window_bounds = array<i64: 2, 1, 96>}, {pipeline_mode = #tpu.pipeline_mode<synchronous>, transform_indices = @transform_5, window_bounds = array<i64: 2, 32, 32>}, {pipeline_mode = #tpu.pipeline_mode<synchronous>, transform_indices = @transform_6, window_bounds = array<i64: 2, 32, 128>}, {pipeline_mode = #tpu.pipeline_mode<synchronous>, transform_indices = @transform_7, window_bounds = array<i64: 2, 1, 128>}, {pipeline_mode = #tpu.pipeline_mode<synchronous>, transform_indices = @transform_8, window_bounds = array<i64: 2, 128, 32>}, {pipeline_mode = #tpu.pipeline_mode<synchronous>, transform_indices = @transform_9, window_bounds = array<i64: 2, 6, 32>}, {pipeline_mode = #tpu.pipeline_mode<synchronous>, transform_indices = @transform_10, window_bounds = array<i64: 32, 128>}, {pipeline_mode = #tpu.pipeline_mode<synchronous>, transform_indices = @transform_11, window_bounds = array<i64: 1, 128>}, {transform_indices = @transform_12, window_bounds = array<i64: 1, 2, 128>}]} {
    %c0 = arith.constant 0 : index
    %c0_0 = arith.constant 0 : index
    %0 = vector.load %arg1[%c0, %c0_0] : memref<16x16xf32, #tpu.memory_space<vmem>>, vector<16x16xf32>
    %c0_1 = arith.constant 0 : index
    %c0_2 = arith.constant 0 : index
    %1 = vector.load %arg2[%c0_1, %c0_2] : memref<16x32xf32, #tpu.memory_space<vmem>>, vector<16x32xf32>
    %cst = arith.constant dense<0.000000e+00> : vector<16x32xf32>
    %2 = tpu.matmul %0, %1, %cst {dimension_numbers = #tpu.dot_dimension_numbers<[1], [0], [0], [1], [0, 0, 1, 1], [], []>} : vector<16x16xf32>, vector<16x32xf32>, vector<16x32xf32> -> vector<16x32xf32>
    %c0_3 = arith.constant 0 : index
    %c0_4 = arith.constant 0 : index
    %3 = vector.load %arg3[%c0_3, %c0_4] : memref<16x32xf32, #tpu.memory_space<vmem>>, vector<16x32xf32>
    %4 = arith.addf %2, %3 : vector<16x32xf32>
    %cst_5 = arith.constant 8.000000e+00 : f32
    %5 = math.sqrt %cst_5 : f32
    %cst_6 = arith.constant 1.000000e+00 : f32
    %6 = arith.divf %cst_6, %5 : f32
    %c0_7 = arith.constant 0 : index
    %c0_8 = arith.constant 0 : index
    %c0_9 = arith.constant 0 : index
    %7 = vector.load %arg10[%c0_7, %c0_8, %c0_9] : memref<2x6x32xf32, #tpu.memory_space<vmem>>, vector<1x6x32xf32>
    %8 = vector.shape_cast %7 : vector<1x6x32xf32> to vector<6x32xf32>
    %9 = vector.extract_strided_slice %8 {offsets = [0, 0], sizes = [1, 32], strides = [1, 1]} : vector<6x32xf32> to vector<1x32xf32>
    %10 = vector.extract_strided_slice %8 {offsets = [1, 0], sizes = [1, 32], strides = [1, 1]} : vector<6x32xf32> to vector<1x32xf32>
    %11 = vector.extract_strided_slice %8 {offsets = [2, 0], sizes = [1, 32], strides = [1, 1]} : vector<6x32xf32> to vector<1x32xf32>
    %12 = vector.extract_strided_slice %8 {offsets = [3, 0], sizes = [1, 32], strides = [1, 1]} : vector<6x32xf32> to vector<1x32xf32>
    %13 = vector.extract_strided_slice %8 {offsets = [4, 0], sizes = [1, 32], strides = [1, 1]} : vector<6x32xf32> to vector<1x32xf32>
    %14 = vector.extract_strided_slice %8 {offsets = [5, 0], sizes = [1, 32], strides = [1, 1]} : vector<6x32xf32> to vector<1x32xf32>
    %c0_10 = arith.constant 0 : index
    %c0_11 = arith.constant 0 : index
    %c0_12 = arith.constant 0 : index
    %15 = vector.load %arg4[%c0_10, %c0_11, %c0_12] : memref<2x32x96xf32, #tpu.memory_space<vmem>>, vector<1x32x96xf32>
    %16 = vector.shape_cast %15 : vector<1x32x96xf32> to vector<32x96xf32>
    %cst_13 = arith.constant dense<0.000000e+00> : vector<16x96xf32>
    %17 = tpu.matmul %4, %16, %cst_13 {dimension_numbers = #tpu.dot_dimension_numbers<[1], [0], [0], [1], [0, 0, 1, 1], [], []>} : vector<16x32xf32>, vector<32x96xf32>, vector<16x96xf32> -> vector<16x96xf32>
    %c0_14 = arith.constant 0 : index
    %c0_15 = arith.constant 0 : index
    %c0_16 = arith.constant 0 : index
    %18 = vector.load %arg5[%c0_14, %c0_15, %c0_16] : memref<2x1x96xf32, #tpu.memory_space<vmem>>, vector<1x1x96xf32>
    %19 = vector.shape_cast %18 : vector<1x1x96xf32> to vector<1x96xf32>
    %20 = vector.broadcast %19 : vector<1x96xf32> to vector<16x96xf32>
    %21 = arith.addf %17, %20 : vector<16x96xf32>
    %cst_17 = arith.constant 0.000000e+00 : f32
    %22 = vector.broadcast %cst_17 : f32 to vector<16x96xf32>
    %23 = arith.maximumf %21, %22 : vector<16x96xf32>
    %24 = vector.extract_strided_slice %23 {offsets = [0, 0], sizes = [16, 32], strides = [1, 1]} : vector<16x96xf32> to vector<16x32xf32>
    %25 = vector.extract_strided_slice %23 {offsets = [0, 32], sizes = [16, 32], strides = [1, 1]} : vector<16x96xf32> to vector<16x32xf32>
    %26 = vector.extract_strided_slice %23 {offsets = [0, 64], sizes = [16, 32], strides = [1, 1]} : vector<16x96xf32> to vector<16x32xf32>
    %27 = vector.extract_strided_slice %24 {offsets = [0, 0], sizes = [8, 32], strides = [1, 1]} : vector<16x32xf32> to vector<8x32xf32>
    %28 = vector.extract_strided_slice %25 {offsets = [0, 0], sizes = [8, 32], strides = [1, 1]} : vector<16x32xf32> to vector<8x32xf32>
    %29 = vector.extract_strided_slice %26 {offsets = [0, 0], sizes = [8, 32], strides = [1, 1]} : vector<16x32xf32> to vector<8x32xf32>
    %30 = vector.extract_strided_slice %27 {offsets = [0, 0], sizes = [8, 8], strides = [1, 1]} : vector<8x32xf32> to vector<8x8xf32>
    %31 = vector.extract_strided_slice %28 {offsets = [0, 0], sizes = [8, 8], strides = [1, 1]} : vector<8x32xf32> to vector<8x8xf32>
    %cst_18 = arith.constant dense<0.000000e+00> : vector<8x8xf32>
    %32 = tpu.matmul %30, %31, %cst_18 {dimension_numbers = #tpu.dot_dimension_numbers<[1], [1], [0], [0], [0, 0, 1, 0], [], []>} : vector<8x8xf32>, vector<8x8xf32>, vector<8x8xf32> -> vector<8x8xf32>
    %33 = vector.broadcast %6 : f32 to vector<8x8xf32>
    %34 = arith.mulf %32, %33 : vector<8x8xf32>
    %cst_19 = arith.constant dense<0xFF800000> : vector<8xf32>
    %35 = vector.multi_reduction <maximumf>, %34, %cst_19 [1] : vector<8x8xf32> to vector<8xf32>
    %36 = vector.shape_cast %35 : vector<8xf32> to vector<8x1xf32>
    %37 = vector.broadcast %36 : vector<8x1xf32> to vector<8x8xf32>
    %38 = arith.subf %34, %37 : vector<8x8xf32>
    %39 = math.exp %38 : vector<8x8xf32>
    %cst_20 = arith.constant dense<0.000000e+00> : vector<8xf32>
    %40 = vector.multi_reduction <add>, %39, %cst_20 [1] : vector<8x8xf32> to vector<8xf32>
    %41 = vector.shape_cast %40 : vector<8xf32> to vector<8x1xf32>
    %42 = tpu.reciprocal %41 {approx = true} : vector<8x1xf32> -> vector<8x1xf32>
    %43 = vector.broadcast %42 : vector<8x1xf32> to vector<8x8xf32>
    %44 = arith.mulf %39, %43 : vector<8x8xf32>
    %45 = vector.extract_strided_slice %29 {offsets = [0, 0], sizes = [8, 8], strides = [1, 1]} : vector<8x32xf32> to vector<8x8xf32>
    %cst_21 = arith.constant dense<0.000000e+00> : vector<8x8xf32>
    %46 = tpu.matmul %44, %45, %cst_21 {dimension_numbers = #tpu.dot_dimension_numbers<[1], [0], [0], [1], [0, 0, 1, 1], [], []>} : vector<8x8xf32>, vector<8x8xf32>, vector<8x8xf32> -> vector<8x8xf32>
    %c0_22 = arith.constant 0 : index
    %c0_23 = arith.constant 0 : index
    %47 = vector.load %arg14[%c0_22, %c0_23] : memref<16x32xf32, #tpu.memory_space<vmem>>, vector<8x8xf32>
    tpu.vector_store %arg14[%c0_22, %c0_23], %46 {strides = array<i32>} : memref<16x32xf32, #tpu.memory_space<vmem>>, vector<8x8xf32>,
    %48 = vector.extract_strided_slice %27 {offsets = [0, 8], sizes = [8, 8], strides = [1, 1]} : vector<8x32xf32> to vector<8x8xf32>
    %49 = vector.extract_strided_slice %28 {offsets = [0, 8], sizes = [8, 8], strides = [1, 1]} : vector<8x32xf32> to vector<8x8xf32>
    %cst_24 = arith.constant dense<0.000000e+00> : vector<8x8xf32>
    %50 = tpu.matmul %48, %49, %cst_24 {dimension_numbers = #tpu.dot_dimension_numbers<[1], [1], [0], [0], [0, 0, 1, 0], [], []>} : vector<8x8xf32>, vector<8x8xf32>, vector<8x8xf32> -> vector<8x8xf32>
    %51 = vector.broadcast %6 : f32 to vector<8x8xf32>
    %52 = arith.mulf %50, %51 : vector<8x8xf32>
    %cst_25 = arith.constant dense<0xFF800000> : vector<8xf32>
    %53 = vector.multi_reduction <maximumf>, %52, %cst_25 [1] : vector<8x8xf32> to vector<8xf32>
    %54 = vector.shape_cast %53 : vector<8xf32> to vector<8x1xf32>
    %55 = vector.broadcast %54 : vector<8x1xf32> to vector<8x8xf32>
    %56 = arith.subf %52, %55 : vector<8x8xf32>
    %57 = math.exp %56 : vector<8x8xf32>
    %cst_26 = arith.constant dense<0.000000e+00> : vector<8xf32>
    %58 = vector.multi_reduction <add>, %57, %cst_26 [1] : vector<8x8xf32> to vector<8xf32>
    %59 = vector.shape_cast %58 : vector<8xf32> to vector<8x1xf32>
    %60 = tpu.reciprocal %59 {approx = true} : vector<8x1xf32> -> vector<8x1xf32>
    %61 = vector.broadcast %60 : vector<8x1xf32> to vector<8x8xf32>
    %62 = arith.mulf %57, %61 : vector<8x8xf32>
    %63 = vector.extract_strided_slice %29 {offsets = [0, 8], sizes = [8, 8], strides = [1, 1]} : vector<8x32xf32> to vector<8x8xf32>
    %cst_27 = arith.constant dense<0.000000e+00> : vector<8x8xf32>
    %64 = tpu.matmul %62, %63, %cst_27 {dimension_numbers = #tpu.dot_dimension_numbers<[1], [0], [0], [1], [0, 0, 1, 1], [], []>} : vector<8x8xf32>, vector<8x8xf32>, vector<8x8xf32> -> vector<8x8xf32>
    %c0_28 = arith.constant 0 : index
    %c8 = arith.constant 8 : index
    %65 = vector.load %arg14[%c0_28, %c8] : memref<16x32xf32, #tpu.memory_space<vmem>>, vector<8x8xf32>
    tpu.vector_store %arg14[%c0_28, %c8], %64 {strides = array<i32>} : memref<16x32xf32, #tpu.memory_space<vmem>>, vector<8x8xf32>,
    %66 = vector.extract_strided_slice %27 {offsets = [0, 16], sizes = [8, 8], strides = [1, 1]} : vector<8x32xf32> to vector<8x8xf32>
    %67 = vector.extract_strided_slice %28 {offsets = [0, 16], sizes = [8, 8], strides = [1, 1]} : vector<8x32xf32> to vector<8x8xf32>
    %cst_29 = arith.constant dense<0.000000e+00> : vector<8x8xf32>
    %68 = tpu.matmul %66, %67, %cst_29 {dimension_numbers = #tpu.dot_dimension_numbers<[1], [1], [0], [0], [0, 0, 1, 0], [], []>} : vector<8x8xf32>, vector<8x8xf32>, vector<8x8xf32> -> vector<8x8xf32>
    %69 = vector.broadcast %6 : f32 to vector<8x8xf32>
    %70 = arith.mulf %68, %69 : vector<8x8xf32>
    %cst_30 = arith.constant dense<0xFF800000> : vector<8xf32>
    %71 = vector.multi_reduction <maximumf>, %70, %cst_30 [1] : vector<8x8xf32> to vector<8xf32>
    %72 = vector.shape_cast %71 : vector<8xf32> to vector<8x1xf32>
    %73 = vector.broadcast %72 : vector<8x1xf32> to vector<8x8xf32>
    %74 = arith.subf %70, %73 : vector<8x8xf32>
    %75 = math.exp %74 : vector<8x8xf32>
    %cst_31 = arith.constant dense<0.000000e+00> : vector<8xf32>
    %76 = vector.multi_reduction <add>, %75, %cst_31 [1] : vector<8x8xf32> to vector<8xf32>
    %77 = vector.shape_cast %76 : vector<8xf32> to vector<8x1xf32>
    %78 = tpu.reciprocal %77 {approx = true} : vector<8x1xf32> -> vector<8x1xf32>
    %79 = vector.broadcast %78 : vector<8x1xf32> to vector<8x8xf32>
    %80 = arith.mulf %75, %79 : vector<8x8xf32>
    %81 = vector.extract_strided_slice %29 {offsets = [0, 16], sizes = [8, 8], strides = [1, 1]} : vector<8x32xf32> to vector<8x8xf32>
    %cst_32 = arith.constant dense<0.000000e+00> : vector<8x8xf32>
    %82 = tpu.matmul %80, %81, %cst_32 {dimension_numbers = #tpu.dot_dimension_numbers<[1], [0], [0], [1], [0, 0, 1, 1], [], []>} : vector<8x8xf32>, vector<8x8xf32>, vector<8x8xf32> -> vector<8x8xf32>
    %c0_33 = arith.constant 0 : index
    %c16 = arith.constant 16 : index
    %83 = vector.load %arg14[%c0_33, %c16] : memref<16x32xf32, #tpu.memory_space<vmem>>, vector<8x8xf32>
    tpu.vector_store %arg14[%c0_33, %c16], %82 {strides = array<i32>} : memref<16x32xf32, #tpu.memory_space<vmem>>, vector<8x8xf32>,
    %84 = vector.extract_strided_slice %27 {offsets = [0, 24], sizes = [8, 8], strides = [1, 1]} : vector<8x32xf32> to vector<8x8xf32>
    %85 = vector.extract_strided_slice %28 {offsets = [0, 24], sizes = [8, 8], strides = [1, 1]} : vector<8x32xf32> to vector<8x8xf32>
    %cst_34 = arith.constant dense<0.000000e+00> : vector<8x8xf32>
    %86 = tpu.matmul %84, %85, %cst_34 {dimension_numbers = #tpu.dot_dimension_numbers<[1], [1], [0], [0], [0, 0, 1, 0], [], []>} : vector<8x8xf32>, vector<8x8xf32>, vector<8x8xf32> -> vector<8x8xf32>
    %87 = vector.broadcast %6 : f32 to vector<8x8xf32>
    %88 = arith.mulf %86, %87 : vector<8x8xf32>
    %cst_35 = arith.constant dense<0xFF800000> : vector<8xf32>
    %89 = vector.multi_reduction <maximumf>, %88, %cst_35 [1] : vector<8x8xf32> to vector<8xf32>
    %90 = vector.shape_cast %89 : vector<8xf32> to vector<8x1xf32>
    %91 = vector.broadcast %90 : vector<8x1xf32> to vector<8x8xf32>
    %92 = arith.subf %88, %91 : vector<8x8xf32>
    %93 = math.exp %92 : vector<8x8xf32>
    %cst_36 = arith.constant dense<0.000000e+00> : vector<8xf32>
    %94 = vector.multi_reduction <add>, %93, %cst_36 [1] : vector<8x8xf32> to vector<8xf32>
    %95 = vector.shape_cast %94 : vector<8xf32> to vector<8x1xf32>
    %96 = tpu.reciprocal %95 {approx = true} : vector<8x1xf32> -> vector<8x1xf32>
    %97 = vector.broadcast %96 : vector<8x1xf32> to vector<8x8xf32>
    %98 = arith.mulf %93, %97 : vector<8x8xf32>
    %99 = vector.extract_strided_slice %29 {offsets = [0, 24], sizes = [8, 8], strides = [1, 1]} : vector<8x32xf32> to vector<8x8xf32>
    %cst_37 = arith.constant dense<0.000000e+00> : vector<8x8xf32>
    %100 = tpu.matmul %98, %99, %cst_37 {dimension_numbers = #tpu.dot_dimension_numbers<[1], [0], [0], [1], [0, 0, 1, 1], [], []>} : vector<8x8xf32>, vector<8x8xf32>, vector<8x8xf32> -> vector<8x8xf32>
    %c0_38 = arith.constant 0 : index
    %c24 = arith.constant 24 : index
    %101 = vector.load %arg14[%c0_38, %c24] : memref<16x32xf32, #tpu.memory_space<vmem>>, vector<8x8xf32>
    tpu.vector_store %arg14[%c0_38, %c24], %100 {strides = array<i32>} : memref<16x32xf32, #tpu.memory_space<vmem>>, vector<8x8xf32>,
    %102 = vector.extract_strided_slice %24 {offsets = [8, 0], sizes = [8, 32], strides = [1, 1]} : vector<16x32xf32> to vector<8x32xf32>
    %103 = vector.extract_strided_slice %25 {offsets = [8, 0], sizes = [8, 32], strides = [1, 1]} : vector<16x32xf32> to vector<8x32xf32>
    %104 = vector.extract_strided_slice %26 {offsets = [8, 0], sizes = [8, 32], strides = [1, 1]} : vector<16x32xf32> to vector<8x32xf32>
    %105 = vector.extract_strided_slice %102 {offsets = [0, 0], sizes = [8, 8], strides = [1, 1]} : vector<8x32xf32> to vector<8x8xf32>
    %106 = vector.extract_strided_slice %103 {offsets = [0, 0], sizes = [8, 8], strides = [1, 1]} : vector<8x32xf32> to vector<8x8xf32>
    %cst_39 = arith.constant dense<0.000000e+00> : vector<8x8xf32>
    %107 = tpu.matmul %105, %106, %cst_39 {dimension_numbers = #tpu.dot_dimension_numbers<[1], [1], [0], [0], [0, 0, 1, 0], [], []>} : vector<8x8xf32>, vector<8x8xf32>, vector<8x8xf32> -> vector<8x8xf32>
    %108 = vector.broadcast %6 : f32 to vector<8x8xf32>
    %109 = arith.mulf %107, %108 : vector<8x8xf32>
    %cst_40 = arith.constant dense<0xFF800000> : vector<8xf32>
    %110 = vector.multi_reduction <maximumf>, %109, %cst_40 [1] : vector<8x8xf32> to vector<8xf32>
    %111 = vector.shape_cast %110 : vector<8xf32> to vector<8x1xf32>
    %112 = vector.broadcast %111 : vector<8x1xf32> to vector<8x8xf32>
    %113 = arith.subf %109, %112 : vector<8x8xf32>
    %114 = math.exp %113 : vector<8x8xf32>
    %cst_41 = arith.constant dense<0.000000e+00> : vector<8xf32>
    %115 = vector.multi_reduction <add>, %114, %cst_41 [1] : vector<8x8xf32> to vector<8xf32>
    %116 = vector.shape_cast %115 : vector<8xf32> to vector<8x1xf32>
    %117 = tpu.reciprocal %116 {approx = true} : vector<8x1xf32> -> vector<8x1xf32>
    %118 = vector.broadcast %117 : vector<8x1xf32> to vector<8x8xf32>
    %119 = arith.mulf %114, %118 : vector<8x8xf32>
    %120 = vector.extract_strided_slice %104 {offsets = [0, 0], sizes = [8, 8], strides = [1, 1]} : vector<8x32xf32> to vector<8x8xf32>
    %cst_42 = arith.constant dense<0.000000e+00> : vector<8x8xf32>
    %121 = tpu.matmul %119, %120, %cst_42 {dimension_numbers = #tpu.dot_dimension_numbers<[1], [0], [0], [1], [0, 0, 1, 1], [], []>} : vector<8x8xf32>, vector<8x8xf32>, vector<8x8xf32> -> vector<8x8xf32>
    %c8_43 = arith.constant 8 : index
    %c0_44 = arith.constant 0 : index
    %122 = vector.load %arg14[%c8_43, %c0_44] : memref<16x32xf32, #tpu.memory_space<vmem>>, vector<8x8xf32>
    tpu.vector_store %arg14[%c8_43, %c0_44], %121 {strides = array<i32>} : memref<16x32xf32, #tpu.memory_space<vmem>>, vector<8x8xf32>,
    %123 = vector.extract_strided_slice %102 {offsets = [0, 8], sizes = [8, 8], strides = [1, 1]} : vector<8x32xf32> to vector<8x8xf32>
    %124 = vector.extract_strided_slice %103 {offsets = [0, 8], sizes = [8, 8], strides = [1, 1]} : vector<8x32xf32> to vector<8x8xf32>
    %cst_45 = arith.constant dense<0.000000e+00> : vector<8x8xf32>
    %125 = tpu.matmul %123, %124, %cst_45 {dimension_numbers = #tpu.dot_dimension_numbers<[1], [1], [0], [0], [0, 0, 1, 0], [], []>} : vector<8x8xf32>, vector<8x8xf32>, vector<8x8xf32> -> vector<8x8xf32>
    %126 = vector.broadcast %6 : f32 to vector<8x8xf32>
    %127 = arith.mulf %125, %126 : vector<8x8xf32>
    %cst_46 = arith.constant dense<0xFF800000> : vector<8xf32>
    %128 = vector.multi_reduction <maximumf>, %127, %cst_46 [1] : vector<8x8xf32> to vector<8xf32>
    %129 = vector.shape_cast %128 : vector<8xf32> to vector<8x1xf32>
    %130 = vector.broadcast %129 : vector<8x1xf32> to vector<8x8xf32>
    %131 = arith.subf %127, %130 : vector<8x8xf32>
    %132 = math.exp %131 : vector<8x8xf32>
    %cst_47 = arith.constant dense<0.000000e+00> : vector<8xf32>
    %133 = vector.multi_reduction <add>, %132, %cst_47 [1] : vector<8x8xf32> to vector<8xf32>
    %134 = vector.shape_cast %133 : vector<8xf32> to vector<8x1xf32>
    %135 = tpu.reciprocal %134 {approx = true} : vector<8x1xf32> -> vector<8x1xf32>
    %136 = vector.broadcast %135 : vector<8x1xf32> to vector<8x8xf32>
    %137 = arith.mulf %132, %136 : vector<8x8xf32>
    %138 = vector.extract_strided_slice %104 {offsets = [0, 8], sizes = [8, 8], strides = [1, 1]} : vector<8x32xf32> to vector<8x8xf32>
    %cst_48 = arith.constant dense<0.000000e+00> : vector<8x8xf32>
    %139 = tpu.matmul %137, %138, %cst_48 {dimension_numbers = #tpu.dot_dimension_numbers<[1], [0], [0], [1], [0, 0, 1, 1], [], []>} : vector<8x8xf32>, vector<8x8xf32>, vector<8x8xf32> -> vector<8x8xf32>
    %c8_49 = arith.constant 8 : index
    %c8_50 = arith.constant 8 : index
    %140 = vector.load %arg14[%c8_49, %c8_50] : memref<16x32xf32, #tpu.memory_space<vmem>>, vector<8x8xf32>
    tpu.vector_store %arg14[%c8_49, %c8_50], %139 {strides = array<i32>} : memref<16x32xf32, #tpu.memory_space<vmem>>, vector<8x8xf32>,
    %141 = vector.extract_strided_slice %102 {offsets = [0, 16], sizes = [8, 8], strides = [1, 1]} : vector<8x32xf32> to vector<8x8xf32>
    %142 = vector.extract_strided_slice %103 {offsets = [0, 16], sizes = [8, 8], strides = [1, 1]} : vector<8x32xf32> to vector<8x8xf32>
    %cst_51 = arith.constant dense<0.000000e+00> : vector<8x8xf32>
    %143 = tpu.matmul %141, %142, %cst_51 {dimension_numbers = #tpu.dot_dimension_numbers<[1], [1], [0], [0], [0, 0, 1, 0], [], []>} : vector<8x8xf32>, vector<8x8xf32>, vector<8x8xf32> -> vector<8x8xf32>
    %144 = vector.broadcast %6 : f32 to vector<8x8xf32>
    %145 = arith.mulf %143, %144 : vector<8x8xf32>
    %cst_52 = arith.constant dense<0xFF800000> : vector<8xf32>
    %146 = vector.multi_reduction <maximumf>, %145, %cst_52 [1] : vector<8x8xf32> to vector<8xf32>
    %147 = vector.shape_cast %146 : vector<8xf32> to vector<8x1xf32>
    %148 = vector.broadcast %147 : vector<8x1xf32> to vector<8x8xf32>
    %149 = arith.subf %145, %148 : vector<8x8xf32>
    %150 = math.exp %149 : vector<8x8xf32>
    %cst_53 = arith.constant dense<0.000000e+00> : vector<8xf32>
    %151 = vector.multi_reduction <add>, %150, %cst_53 [1] : vector<8x8xf32> to vector<8xf32>
    %152 = vector.shape_cast %151 : vector<8xf32> to vector<8x1xf32>
    %153 = tpu.reciprocal %152 {approx = true} : vector<8x1xf32> -> vector<8x1xf32>
    %154 = vector.broadcast %153 : vector<8x1xf32> to vector<8x8xf32>
    %155 = arith.mulf %150, %154 : vector<8x8xf32>
    %156 = vector.extract_strided_slice %104 {offsets = [0, 16], sizes = [8, 8], strides = [1, 1]} : vector<8x32xf32> to vector<8x8xf32>
    %cst_54 = arith.constant dense<0.000000e+00> : vector<8x8xf32>
    %157 = tpu.matmul %155, %156, %cst_54 {dimension_numbers = #tpu.dot_dimension_numbers<[1], [0], [0], [1], [0, 0, 1, 1], [], []>} : vector<8x8xf32>, vector<8x8xf32>, vector<8x8xf32> -> vector<8x8xf32>
    %c8_55 = arith.constant 8 : index
    %c16_56 = arith.constant 16 : index
    %158 = vector.load %arg14[%c8_55, %c16_56] : memref<16x32xf32, #tpu.memory_space<vmem>>, vector<8x8xf32>
    tpu.vector_store %arg14[%c8_55, %c16_56], %157 {strides = array<i32>} : memref<16x32xf32, #tpu.memory_space<vmem>>, vector<8x8xf32>,
    %159 = vector.extract_strided_slice %102 {offsets = [0, 24], sizes = [8, 8], strides = [1, 1]} : vector<8x32xf32> to vector<8x8xf32>
    %160 = vector.extract_strided_slice %103 {offsets = [0, 24], sizes = [8, 8], strides = [1, 1]} : vector<8x32xf32> to vector<8x8xf32>
    %cst_57 = arith.constant dense<0.000000e+00> : vector<8x8xf32>
    %161 = tpu.matmul %159, %160, %cst_57 {dimension_numbers = #tpu.dot_dimension_numbers<[1], [1], [0], [0], [0, 0, 1, 0], [], []>} : vector<8x8xf32>, vector<8x8xf32>, vector<8x8xf32> -> vector<8x8xf32>
    %162 = vector.broadcast %6 : f32 to vector<8x8xf32>
    %163 = arith.mulf %161, %162 : vector<8x8xf32>
    %cst_58 = arith.constant dense<0xFF800000> : vector<8xf32>
    %164 = vector.multi_reduction <maximumf>, %163, %cst_58 [1] : vector<8x8xf32> to vector<8xf32>
    %165 = vector.shape_cast %164 : vector<8xf32> to vector<8x1xf32>
    %166 = vector.broadcast %165 : vector<8x1xf32> to vector<8x8xf32>
    %167 = arith.subf %163, %166 : vector<8x8xf32>
    %168 = math.exp %167 : vector<8x8xf32>
    %cst_59 = arith.constant dense<0.000000e+00> : vector<8xf32>
    %169 = vector.multi_reduction <add>, %168, %cst_59 [1] : vector<8x8xf32> to vector<8xf32>
    %170 = vector.shape_cast %169 : vector<8xf32> to vector<8x1xf32>
    %171 = tpu.reciprocal %170 {approx = true} : vector<8x1xf32> -> vector<8x1xf32>
    %172 = vector.broadcast %171 : vector<8x1xf32> to vector<8x8xf32>
    %173 = arith.mulf %168, %172 : vector<8x8xf32>
    %174 = vector.extract_strided_slice %104 {offsets = [0, 24], sizes = [8, 8], strides = [1, 1]} : vector<8x32xf32> to vector<8x8xf32>
    %cst_60 = arith.constant dense<0.000000e+00> : vector<8x8xf32>
    %175 = tpu.matmul %173, %174, %cst_60 {dimension_numbers = #tpu.dot_dimension_numbers<[1], [0], [0], [1], [0, 0, 1, 1], [], []>} : vector<8x8xf32>, vector<8x8xf32>, vector<8x8xf32> -> vector<8x8xf32>
    %c8_61 = arith.constant 8 : index
    %c24_62 = arith.constant 24 : index
    %176 = vector.load %arg14[%c8_61, %c24_62] : memref<16x32xf32, #tpu.memory_space<vmem>>, vector<8x8xf32>
    tpu.vector_store %arg14[%c8_61, %c24_62], %175 {strides = array<i32>} : memref<16x32xf32, #tpu.memory_space<vmem>>, vector<8x8xf32>,
    %c0_63 = arith.constant 0 : index
    %c0_64 = arith.constant 0 : index
    %177 = vector.load %arg14[%c0_63, %c0_64] : memref<16x32xf32, #tpu.memory_space<vmem>>, vector<16x32xf32>
    %c0_65 = arith.constant 0 : index
    %c0_66 = arith.constant 0 : index
    %c0_67 = arith.constant 0 : index
    %178 = vector.load %arg6[%c0_65, %c0_66, %c0_67] : memref<2x32x32xf32, #tpu.memory_space<vmem>>, vector<1x32x32xf32>
    %179 = vector.shape_cast %178 : vector<1x32x32xf32> to vector<32x32xf32>
    %cst_68 = arith.constant dense<0.000000e+00> : vector<16x32xf32>
    %180 = tpu.matmul %177, %179, %cst_68 {dimension_numbers = #tpu.dot_dimension_numbers<[1], [0], [0], [1], [0, 0, 1, 1], [], []>} : vector<16x32xf32>, vector<32x32xf32>, vector<16x32xf32> -> vector<16x32xf32>
    %181 = vector.broadcast %13 : vector<1x32xf32> to vector<16x32xf32>
    %182 = arith.addf %180, %181 : vector<16x32xf32>
    %183 = arith.addf %182, %4 : vector<16x32xf32>
    %cst_69 = arith.constant dense<0.000000e+00> : vector<16xf32>
    %184 = vector.multi_reduction <add>, %183, %cst_69 [1] : vector<16x32xf32> to vector<16xf32>
    %185 = vector.shape_cast %184 : vector<16xf32> to vector<16x1xf32>
    %cst_70 = arith.constant 3.200000e+01 : f32
    %186 = vector.broadcast %cst_70 : f32 to vector<16x1xf32>
    %187 = arith.divf %185, %186 : vector<16x1xf32>
    %188 = vector.broadcast %187 : vector<16x1xf32> to vector<16x32xf32>
    %189 = arith.subf %183, %188 : vector<16x32xf32>
    %190 = arith.mulf %189, %189 : vector<16x32xf32>
    %cst_71 = arith.constant dense<0.000000e+00> : vector<16xf32>
    %191 = vector.multi_reduction <add>, %190, %cst_71 [1] : vector<16x32xf32> to vector<16xf32>
    %192 = vector.shape_cast %191 : vector<16xf32> to vector<16x1xf32>
    %cst_72 = arith.constant 3.200000e+01 : f32
    %193 = vector.broadcast %cst_72 : f32 to vector<16x1xf32>
    %194 = arith.divf %192, %193 : vector<16x1xf32>
    %195 = vector.broadcast %187 : vector<16x1xf32> to vector<16x32xf32>
    %196 = arith.subf %183, %195 : vector<16x32xf32>
    %cst_73 = arith.constant 9.99999974E-6 : f32
    %197 = vector.broadcast %cst_73 : f32 to vector<16x1xf32>
    %198 = arith.addf %194, %197 : vector<16x1xf32>
    %199 = math.rsqrt %198 : vector<16x1xf32>
    %200 = vector.broadcast %199 : vector<16x1xf32> to vector<16x32xf32>
    %201 = arith.mulf %196, %200 : vector<16x32xf32>
    %202 = vector.broadcast %9 : vector<1x32xf32> to vector<16x32xf32>
    %203 = arith.mulf %201, %202 : vector<16x32xf32>
    %204 = vector.broadcast %10 : vector<1x32xf32> to vector<16x32xf32>
    %205 = arith.addf %203, %204 : vector<16x32xf32>
    %c0_74 = arith.constant 0 : index
    %c0_75 = arith.constant 0 : index
    %c0_76 = arith.constant 0 : index
    %206 = vector.load %arg7[%c0_74, %c0_75, %c0_76] : memref<2x32x128xf32, #tpu.memory_space<vmem>>, vector<1x32x128xf32>
    %207 = vector.shape_cast %206 : vector<1x32x128xf32> to vector<32x128xf32>
    %cst_77 = arith.constant dense<0.000000e+00> : vector<16x128xf32>
    %208 = tpu.matmul %205, %207, %cst_77 {dimension_numbers = #tpu.dot_dimension_numbers<[1], [0], [0], [1], [0, 0, 1, 1], [], []>} : vector<16x32xf32>, vector<32x128xf32>, vector<16x128xf32> -> vector<16x128xf32>
    %c0_78 = arith.constant 0 : index
    %c0_79 = arith.constant 0 : index
    %c0_80 = arith.constant 0 : index
    %209 = vector.load %arg8[%c0_78, %c0_79, %c0_80] : memref<2x1x128xf32, #tpu.memory_space<vmem>>, vector<1x1x128xf32>
    %210 = vector.shape_cast %209 : vector<1x1x128xf32> to vector<1x128xf32>
    %211 = vector.broadcast %210 : vector<1x128xf32> to vector<16x128xf32>
    %212 = arith.addf %208, %211 : vector<16x128xf32>
    %cst_81 = arith.constant 0.000000e+00 : f32
    %213 = vector.broadcast %cst_81 : f32 to vector<16x128xf32>
    %214 = arith.maximumf %212, %213 : vector<16x128xf32>
    %c0_82 = arith.constant 0 : index
    %c0_83 = arith.constant 0 : index
    %c0_84 = arith.constant 0 : index
    %215 = vector.load %arg9[%c0_82, %c0_83, %c0_84] : memref<2x128x32xf32, #tpu.memory_space<vmem>>, vector<1x128x32xf32>
    %216 = vector.shape_cast %215 : vector<1x128x32xf32> to vector<128x32xf32>
    %cst_85 = arith.constant dense<0.000000e+00> : vector<16x32xf32>
    %217 = tpu.matmul %214, %216, %cst_85 {dimension_numbers = #tpu.dot_dimension_numbers<[1], [0], [0], [1], [0, 0, 1, 1], [], []>} : vector<16x128xf32>, vector<128x32xf32>, vector<16x32xf32> -> vector<16x32xf32>
    %218 = vector.broadcast %14 : vector<1x32xf32> to vector<16x32xf32>
    %219 = arith.addf %217, %218 : vector<16x32xf32>
    %220 = arith.addf %219, %4 : vector<16x32xf32>
    %cst_86 = arith.constant dense<0.000000e+00> : vector<16xf32>
    %221 = vector.multi_reduction <add>, %220, %cst_86 [1] : vector<16x32xf32> to vector<16xf32>
    %222 = vector.shape_cast %221 : vector<16xf32> to vector<16x1xf32>
    %cst_87 = arith.constant 3.200000e+01 : f32
    %223 = vector.broadcast %cst_87 : f32 to vector<16x1xf32>
    %224 = arith.divf %222, %223 : vector<16x1xf32>
    %225 = vector.broadcast %224 : vector<16x1xf32> to vector<16x32xf32>
    %226 = arith.subf %220, %225 : vector<16x32xf32>
    %227 = arith.mulf %226, %226 : vector<16x32xf32>
    %cst_88 = arith.constant dense<0.000000e+00> : vector<16xf32>
    %228 = vector.multi_reduction <add>, %227, %cst_88 [1] : vector<16x32xf32> to vector<16xf32>
    %229 = vector.shape_cast %228 : vector<16xf32> to vector<16x1xf32>
    %cst_89 = arith.constant 3.200000e+01 : f32
    %230 = vector.broadcast %cst_89 : f32 to vector<16x1xf32>
    %231 = arith.divf %229, %230 : vector<16x1xf32>
    %232 = vector.broadcast %224 : vector<16x1xf32> to vector<16x32xf32>
    %233 = arith.subf %220, %232 : vector<16x32xf32>
    %cst_90 = arith.constant 9.99999974E-6 : f32
    %234 = vector.broadcast %cst_90 : f32 to vector<16x1xf32>
    %235 = arith.addf %231, %234 : vector<16x1xf32>
    %236 = math.rsqrt %235 : vector<16x1xf32>
    %237 = vector.broadcast %236 : vector<16x1xf32> to vector<16x32xf32>
    %238 = arith.mulf %233, %237 : vector<16x32xf32>
    %239 = vector.broadcast %11 : vector<1x32xf32> to vector<16x32xf32>
    %240 = arith.mulf %238, %239 : vector<16x32xf32>
    %241 = vector.broadcast %12 : vector<1x32xf32> to vector<16x32xf32>
    %242 = arith.addf %240, %241 : vector<16x32xf32>
    %c1 = arith.constant 1 : index
    %c0_91 = arith.constant 0 : index
    %c0_92 = arith.constant 0 : index
    %243 = vector.load %arg10[%c1, %c0_91, %c0_92] : memref<2x6x32xf32, #tpu.memory_space<vmem>>, vector<1x6x32xf32>
    %244 = vector.shape_cast %243 : vector<1x6x32xf32> to vector<6x32xf32>
    %245 = vector.extract_strided_slice %244 {offsets = [0, 0], sizes = [1, 32], strides = [1, 1]} : vector<6x32xf32> to vector<1x32xf32>
    %246 = vector.extract_strided_slice %244 {offsets = [1, 0], sizes = [1, 32], strides = [1, 1]} : vector<6x32xf32> to vector<1x32xf32>
    %247 = vector.extract_strided_slice %244 {offsets = [2, 0], sizes = [1, 32], strides = [1, 1]} : vector<6x32xf32> to vector<1x32xf32>
    %248 = vector.extract_strided_slice %244 {offsets = [3, 0], sizes = [1, 32], strides = [1, 1]} : vector<6x32xf32> to vector<1x32xf32>
    %249 = vector.extract_strided_slice %244 {offsets = [4, 0], sizes = [1, 32], strides = [1, 1]} : vector<6x32xf32> to vector<1x32xf32>
    %250 = vector.extract_strided_slice %244 {offsets = [5, 0], sizes = [1, 32], strides = [1, 1]} : vector<6x32xf32> to vector<1x32xf32>
    %c1_93 = arith.constant 1 : index
    %c0_94 = arith.constant 0 : index
    %c0_95 = arith.constant 0 : index
    %251 = vector.load %arg4[%c1_93, %c0_94, %c0_95] : memref<2x32x96xf32, #tpu.memory_space<vmem>>, vector<1x32x96xf32>
    %252 = vector.shape_cast %251 : vector<1x32x96xf32> to vector<32x96xf32>
    %cst_96 = arith.constant dense<0.000000e+00> : vector<16x96xf32>
    %253 = tpu.matmul %242, %252, %cst_96 {dimension_numbers = #tpu.dot_dimension_numbers<[1], [0], [0], [1], [0, 0, 1, 1], [], []>} : vector<16x32xf32>, vector<32x96xf32>, vector<16x96xf32> -> vector<16x96xf32>
    %c1_97 = arith.constant 1 : index
    %c0_98 = arith.constant 0 : index
    %c0_99 = arith.constant 0 : index
    %254 = vector.load %arg5[%c1_97, %c0_98, %c0_99] : memref<2x1x96xf32, #tpu.memory_space<vmem>>, vector<1x1x96xf32>
    %255 = vector.shape_cast %254 : vector<1x1x96xf32> to vector<1x96xf32>
    %256 = vector.broadcast %255 : vector<1x96xf32> to vector<16x96xf32>
    %257 = arith.addf %253, %256 : vector<16x96xf32>
    %cst_100 = arith.constant 0.000000e+00 : f32
    %258 = vector.broadcast %cst_100 : f32 to vector<16x96xf32>
    %259 = arith.maximumf %257, %258 : vector<16x96xf32>
    %260 = vector.extract_strided_slice %259 {offsets = [0, 0], sizes = [16, 32], strides = [1, 1]} : vector<16x96xf32> to vector<16x32xf32>
    %261 = vector.extract_strided_slice %259 {offsets = [0, 32], sizes = [16, 32], strides = [1, 1]} : vector<16x96xf32> to vector<16x32xf32>
    %262 = vector.extract_strided_slice %259 {offsets = [0, 64], sizes = [16, 32], strides = [1, 1]} : vector<16x96xf32> to vector<16x32xf32>
    %263 = vector.extract_strided_slice %260 {offsets = [0, 0], sizes = [8, 32], strides = [1, 1]} : vector<16x32xf32> to vector<8x32xf32>
    %264 = vector.extract_strided_slice %261 {offsets = [0, 0], sizes = [8, 32], strides = [1, 1]} : vector<16x32xf32> to vector<8x32xf32>
    %265 = vector.extract_strided_slice %262 {offsets = [0, 0], sizes = [8, 32], strides = [1, 1]} : vector<16x32xf32> to vector<8x32xf32>
    %266 = vector.extract_strided_slice %263 {offsets = [0, 0], sizes = [8, 8], strides = [1, 1]} : vector<8x32xf32> to vector<8x8xf32>
    %267 = vector.extract_strided_slice %264 {offsets = [0, 0], sizes = [8, 8], strides = [1, 1]} : vector<8x32xf32> to vector<8x8xf32>
    %cst_101 = arith.constant dense<0.000000e+00> : vector<8x8xf32>
    %268 = tpu.matmul %266, %267, %cst_101 {dimension_numbers = #tpu.dot_dimension_numbers<[1], [1], [0], [0], [0, 0, 1, 0], [], []>} : vector<8x8xf32>, vector<8x8xf32>, vector<8x8xf32> -> vector<8x8xf32>
    %269 = vector.broadcast %6 : f32 to vector<8x8xf32>
    %270 = arith.mulf %268, %269 : vector<8x8xf32>
    %cst_102 = arith.constant dense<0xFF800000> : vector<8xf32>
    %271 = vector.multi_reduction <maximumf>, %270, %cst_102 [1] : vector<8x8xf32> to vector<8xf32>
    %272 = vector.shape_cast %271 : vector<8xf32> to vector<8x1xf32>
    %273 = vector.broadcast %272 : vector<8x1xf32> to vector<8x8xf32>
    %274 = arith.subf %270, %273 : vector<8x8xf32>
    %275 = math.exp %274 : vector<8x8xf32>
    %cst_103 = arith.constant dense<0.000000e+00> : vector<8xf32>
    %276 = vector.multi_reduction <add>, %275, %cst_103 [1] : vector<8x8xf32> to vector<8xf32>
    %277 = vector.shape_cast %276 : vector<8xf32> to vector<8x1xf32>
    %278 = tpu.reciprocal %277 {approx = true} : vector<8x1xf32> -> vector<8x1xf32>
    %279 = vector.broadcast %278 : vector<8x1xf32> to vector<8x8xf32>
    %280 = arith.mulf %275, %279 : vector<8x8xf32>
    %281 = vector.extract_strided_slice %265 {offsets = [0, 0], sizes = [8, 8], strides = [1, 1]} : vector<8x32xf32> to vector<8x8xf32>
    %cst_104 = arith.constant dense<0.000000e+00> : vector<8x8xf32>
    %282 = tpu.matmul %280, %281, %cst_104 {dimension_numbers = #tpu.dot_dimension_numbers<[1], [0], [0], [1], [0, 0, 1, 1], [], []>} : vector<8x8xf32>, vector<8x8xf32>, vector<8x8xf32> -> vector<8x8xf32>
    %c0_105 = arith.constant 0 : index
    %c0_106 = arith.constant 0 : index
    %283 = vector.load %arg14[%c0_105, %c0_106] : memref<16x32xf32, #tpu.memory_space<vmem>>, vector<8x8xf32>
    tpu.vector_store %arg14[%c0_105, %c0_106], %282 {strides = array<i32>} : memref<16x32xf32, #tpu.memory_space<vmem>>, vector<8x8xf32>,
    %284 = vector.extract_strided_slice %263 {offsets = [0, 8], sizes = [8, 8], strides = [1, 1]} : vector<8x32xf32> to vector<8x8xf32>
    %285 = vector.extract_strided_slice %264 {offsets = [0, 8], sizes = [8, 8], strides = [1, 1]} : vector<8x32xf32> to vector<8x8xf32>
    %cst_107 = arith.constant dense<0.000000e+00> : vector<8x8xf32>
    %286 = tpu.matmul %284, %285, %cst_107 {dimension_numbers = #tpu.dot_dimension_numbers<[1], [1], [0], [0], [0, 0, 1, 0], [], []>} : vector<8x8xf32>, vector<8x8xf32>, vector<8x8xf32> -> vector<8x8xf32>
    %287 = vector.broadcast %6 : f32 to vector<8x8xf32>
    %288 = arith.mulf %286, %287 : vector<8x8xf32>
    %cst_108 = arith.constant dense<0xFF800000> : vector<8xf32>
    %289 = vector.multi_reduction <maximumf>, %288, %cst_108 [1] : vector<8x8xf32> to vector<8xf32>
    %290 = vector.shape_cast %289 : vector<8xf32> to vector<8x1xf32>
    %291 = vector.broadcast %290 : vector<8x1xf32> to vector<8x8xf32>
    %292 = arith.subf %288, %291 : vector<8x8xf32>
    %293 = math.exp %292 : vector<8x8xf32>
    %cst_109 = arith.constant dense<0.000000e+00> : vector<8xf32>
    %294 = vector.multi_reduction <add>, %293, %cst_109 [1] : vector<8x8xf32> to vector<8xf32>
    %295 = vector.shape_cast %294 : vector<8xf32> to vector<8x1xf32>
    %296 = tpu.reciprocal %295 {approx = true} : vector<8x1xf32> -> vector<8x1xf32>
    %297 = vector.broadcast %296 : vector<8x1xf32> to vector<8x8xf32>
    %298 = arith.mulf %293, %297 : vector<8x8xf32>
    %299 = vector.extract_strided_slice %265 {offsets = [0, 8], sizes = [8, 8], strides = [1, 1]} : vector<8x32xf32> to vector<8x8xf32>
    %cst_110 = arith.constant dense<0.000000e+00> : vector<8x8xf32>
    %300 = tpu.matmul %298, %299, %cst_110 {dimension_numbers = #tpu.dot_dimension_numbers<[1], [0], [0], [1], [0, 0, 1, 1], [], []>} : vector<8x8xf32>, vector<8x8xf32>, vector<8x8xf32> -> vector<8x8xf32>
    %c0_111 = arith.constant 0 : index
    %c8_112 = arith.constant 8 : index
    %301 = vector.load %arg14[%c0_111, %c8_112] : memref<16x32xf32, #tpu.memory_space<vmem>>, vector<8x8xf32>
    tpu.vector_store %arg14[%c0_111, %c8_112], %300 {strides = array<i32>} : memref<16x32xf32, #tpu.memory_space<vmem>>, vector<8x8xf32>,
    %302 = vector.extract_strided_slice %263 {offsets = [0, 16], sizes = [8, 8], strides = [1, 1]} : vector<8x32xf32> to vector<8x8xf32>
    %303 = vector.extract_strided_slice %264 {offsets = [0, 16], sizes = [8, 8], strides = [1, 1]} : vector<8x32xf32> to vector<8x8xf32>
    %cst_113 = arith.constant dense<0.000000e+00> : vector<8x8xf32>
    %304 = tpu.matmul %302, %303, %cst_113 {dimension_numbers = #tpu.dot_dimension_numbers<[1], [1], [0], [0], [0, 0, 1, 0], [], []>} : vector<8x8xf32>, vector<8x8xf32>, vector<8x8xf32> -> vector<8x8xf32>
    %305 = vector.broadcast %6 : f32 to vector<8x8xf32>
    %306 = arith.mulf %304, %305 : vector<8x8xf32>
    %cst_114 = arith.constant dense<0xFF800000> : vector<8xf32>
    %307 = vector.multi_reduction <maximumf>, %306, %cst_114 [1] : vector<8x8xf32> to vector<8xf32>
    %308 = vector.shape_cast %307 : vector<8xf32> to vector<8x1xf32>
    %309 = vector.broadcast %308 : vector<8x1xf32> to vector<8x8xf32>
    %310 = arith.subf %306, %309 : vector<8x8xf32>
    %311 = math.exp %310 : vector<8x8xf32>
    %cst_115 = arith.constant dense<0.000000e+00> : vector<8xf32>
    %312 = vector.multi_reduction <add>, %311, %cst_115 [1] : vector<8x8xf32> to vector<8xf32>
    %313 = vector.shape_cast %312 : vector<8xf32> to vector<8x1xf32>
    %314 = tpu.reciprocal %313 {approx = true} : vector<8x1xf32> -> vector<8x1xf32>
    %315 = vector.broadcast %314 : vector<8x1xf32> to vector<8x8xf32>
    %316 = arith.mulf %311, %315 : vector<8x8xf32>
    %317 = vector.extract_strided_slice %265 {offsets = [0, 16], sizes = [8, 8], strides = [1, 1]} : vector<8x32xf32> to vector<8x8xf32>
    %cst_116 = arith.constant dense<0.000000e+00> : vector<8x8xf32>
    %318 = tpu.matmul %316, %317, %cst_116 {dimension_numbers = #tpu.dot_dimension_numbers<[1], [0], [0], [1], [0, 0, 1, 1], [], []>} : vector<8x8xf32>, vector<8x8xf32>, vector<8x8xf32> -> vector<8x8xf32>
    %c0_117 = arith.constant 0 : index
    %c16_118 = arith.constant 16 : index
    %319 = vector.load %arg14[%c0_117, %c16_118] : memref<16x32xf32, #tpu.memory_space<vmem>>, vector<8x8xf32>
    tpu.vector_store %arg14[%c0_117, %c16_118], %318 {strides = array<i32>} : memref<16x32xf32, #tpu.memory_space<vmem>>, vector<8x8xf32>,
    %320 = vector.extract_strided_slice %263 {offsets = [0, 24], sizes = [8, 8], strides = [1, 1]} : vector<8x32xf32> to vector<8x8xf32>
    %321 = vector.extract_strided_slice %264 {offsets = [0, 24], sizes = [8, 8], strides = [1, 1]} : vector<8x32xf32> to vector<8x8xf32>
    %cst_119 = arith.constant dense<0.000000e+00> : vector<8x8xf32>
    %322 = tpu.matmul %320, %321, %cst_119 {dimension_numbers = #tpu.dot_dimension_numbers<[1], [1], [0], [0], [0, 0, 1, 0], [], []>} : vector<8x8xf32>, vector<8x8xf32>, vector<8x8xf32> -> vector<8x8xf32>
    %323 = vector.broadcast %6 : f32 to vector<8x8xf32>
    %324 = arith.mulf %322, %323 : vector<8x8xf32>
    %cst_120 = arith.constant dense<0xFF800000> : vector<8xf32>
    %325 = vector.multi_reduction <maximumf>, %324, %cst_120 [1] : vector<8x8xf32> to vector<8xf32>
    %326 = vector.shape_cast %325 : vector<8xf32> to vector<8x1xf32>
    %327 = vector.broadcast %326 : vector<8x1xf32> to vector<8x8xf32>
    %328 = arith.subf %324, %327 : vector<8x8xf32>
    %329 = math.exp %328 : vector<8x8xf32>
    %cst_121 = arith.constant dense<0.000000e+00> : vector<8xf32>
    %330 = vector.multi_reduction <add>, %329, %cst_121 [1] : vector<8x8xf32> to vector<8xf32>
    %331 = vector.shape_cast %330 : vector<8xf32> to vector<8x1xf32>
    %332 = tpu.reciprocal %331 {approx = true} : vector<8x1xf32> -> vector<8x1xf32>
    %333 = vector.broadcast %332 : vector<8x1xf32> to vector<8x8xf32>
    %334 = arith.mulf %329, %333 : vector<8x8xf32>
    %335 = vector.extract_strided_slice %265 {offsets = [0, 24], sizes = [8, 8], strides = [1, 1]} : vector<8x32xf32> to vector<8x8xf32>
    %cst_122 = arith.constant dense<0.000000e+00> : vector<8x8xf32>
    %336 = tpu.matmul %334, %335, %cst_122 {dimension_numbers = #tpu.dot_dimension_numbers<[1], [0], [0], [1], [0, 0, 1, 1], [], []>} : vector<8x8xf32>, vector<8x8xf32>, vector<8x8xf32> -> vector<8x8xf32>
    %c0_123 = arith.constant 0 : index
    %c24_124 = arith.constant 24 : index
    %337 = vector.load %arg14[%c0_123, %c24_124] : memref<16x32xf32, #tpu.memory_space<vmem>>, vector<8x8xf32>
    tpu.vector_store %arg14[%c0_123, %c24_124], %336 {strides = array<i32>} : memref<16x32xf32, #tpu.memory_space<vmem>>, vector<8x8xf32>,
    %338 = vector.extract_strided_slice %260 {offsets = [8, 0], sizes = [8, 32], strides = [1, 1]} : vector<16x32xf32> to vector<8x32xf32>
    %339 = vector.extract_strided_slice %261 {offsets = [8, 0], sizes = [8, 32], strides = [1, 1]} : vector<16x32xf32> to vector<8x32xf32>
    %340 = vector.extract_strided_slice %262 {offsets = [8, 0], sizes = [8, 32], strides = [1, 1]} : vector<16x32xf32> to vector<8x32xf32>
    %341 = vector.extract_strided_slice %338 {offsets = [0, 0], sizes = [8, 8], strides = [1, 1]} : vector<8x32xf32> to vector<8x8xf32>
    %342 = vector.extract_strided_slice %339 {offsets = [0, 0], sizes = [8, 8], strides = [1, 1]} : vector<8x32xf32> to vector<8x8xf32>
    %cst_125 = arith.constant dense<0.000000e+00> : vector<8x8xf32>
    %343 = tpu.matmul %341, %342, %cst_125 {dimension_numbers = #tpu.dot_dimension_numbers<[1], [1], [0], [0], [0, 0, 1, 0], [], []>} : vector<8x8xf32>, vector<8x8xf32>, vector<8x8xf32> -> vector<8x8xf32>
    %344 = vector.broadcast %6 : f32 to vector<8x8xf32>
    %345 = arith.mulf %343, %344 : vector<8x8xf32>
    %cst_126 = arith.constant dense<0xFF800000> : vector<8xf32>
    %346 = vector.multi_reduction <maximumf>, %345, %cst_126 [1] : vector<8x8xf32> to vector<8xf32>
    %347 = vector.shape_cast %346 : vector<8xf32> to vector<8x1xf32>
    %348 = vector.broadcast %347 : vector<8x1xf32> to vector<8x8xf32>
    %349 = arith.subf %345, %348 : vector<8x8xf32>
    %350 = math.exp %349 : vector<8x8xf32>
    %cst_127 = arith.constant dense<0.000000e+00> : vector<8xf32>
    %351 = vector.multi_reduction <add>, %350, %cst_127 [1] : vector<8x8xf32> to vector<8xf32>
    %352 = vector.shape_cast %351 : vector<8xf32> to vector<8x1xf32>
    %353 = tpu.reciprocal %352 {approx = true} : vector<8x1xf32> -> vector<8x1xf32>
    %354 = vector.broadcast %353 : vector<8x1xf32> to vector<8x8xf32>
    %355 = arith.mulf %350, %354 : vector<8x8xf32>
    %356 = vector.extract_strided_slice %340 {offsets = [0, 0], sizes = [8, 8], strides = [1, 1]} : vector<8x32xf32> to vector<8x8xf32>
    %cst_128 = arith.constant dense<0.000000e+00> : vector<8x8xf32>
    %357 = tpu.matmul %355, %356, %cst_128 {dimension_numbers = #tpu.dot_dimension_numbers<[1], [0], [0], [1], [0, 0, 1, 1], [], []>} : vector<8x8xf32>, vector<8x8xf32>, vector<8x8xf32> -> vector<8x8xf32>
    %c8_129 = arith.constant 8 : index
    %c0_130 = arith.constant 0 : index
    %358 = vector.load %arg14[%c8_129, %c0_130] : memref<16x32xf32, #tpu.memory_space<vmem>>, vector<8x8xf32>
    tpu.vector_store %arg14[%c8_129, %c0_130], %357 {strides = array<i32>} : memref<16x32xf32, #tpu.memory_space<vmem>>, vector<8x8xf32>,
    %359 = vector.extract_strided_slice %338 {offsets = [0, 8], sizes = [8, 8], strides = [1, 1]} : vector<8x32xf32> to vector<8x8xf32>
    %360 = vector.extract_strided_slice %339 {offsets = [0, 8], sizes = [8, 8], strides = [1, 1]} : vector<8x32xf32> to vector<8x8xf32>
    %cst_131 = arith.constant dense<0.000000e+00> : vector<8x8xf32>
    %361 = tpu.matmul %359, %360, %cst_131 {dimension_numbers = #tpu.dot_dimension_numbers<[1], [1], [0], [0], [0, 0, 1, 0], [], []>} : vector<8x8xf32>, vector<8x8xf32>, vector<8x8xf32> -> vector<8x8xf32>
    %362 = vector.broadcast %6 : f32 to vector<8x8xf32>
    %363 = arith.mulf %361, %362 : vector<8x8xf32>
    %cst_132 = arith.constant dense<0xFF800000> : vector<8xf32>
    %364 = vector.multi_reduction <maximumf>, %363, %cst_132 [1] : vector<8x8xf32> to vector<8xf32>
    %365 = vector.shape_cast %364 : vector<8xf32> to vector<8x1xf32>
    %366 = vector.broadcast %365 : vector<8x1xf32> to vector<8x8xf32>
    %367 = arith.subf %363, %366 : vector<8x8xf32>
    %368 = math.exp %367 : vector<8x8xf32>
    %cst_133 = arith.constant dense<0.000000e+00> : vector<8xf32>
    %369 = vector.multi_reduction <add>, %368, %cst_133 [1] : vector<8x8xf32> to vector<8xf32>
    %370 = vector.shape_cast %369 : vector<8xf32> to vector<8x1xf32>
    %371 = tpu.reciprocal %370 {approx = true} : vector<8x1xf32> -> vector<8x1xf32>
    %372 = vector.broadcast %371 : vector<8x1xf32> to vector<8x8xf32>
    %373 = arith.mulf %368, %372 : vector<8x8xf32>
    %374 = vector.extract_strided_slice %340 {offsets = [0, 8], sizes = [8, 8], strides = [1, 1]} : vector<8x32xf32> to vector<8x8xf32>
    %cst_134 = arith.constant dense<0.000000e+00> : vector<8x8xf32>
    %375 = tpu.matmul %373, %374, %cst_134 {dimension_numbers = #tpu.dot_dimension_numbers<[1], [0], [0], [1], [0, 0, 1, 1], [], []>} : vector<8x8xf32>, vector<8x8xf32>, vector<8x8xf32> -> vector<8x8xf32>
    %c8_135 = arith.constant 8 : index
    %c8_136 = arith.constant 8 : index
    %376 = vector.load %arg14[%c8_135, %c8_136] : memref<16x32xf32, #tpu.memory_space<vmem>>, vector<8x8xf32>
    tpu.vector_store %arg14[%c8_135, %c8_136], %375 {strides = array<i32>} : memref<16x32xf32, #tpu.memory_space<vmem>>, vector<8x8xf32>,
    %377 = vector.extract_strided_slice %338 {offsets = [0, 16], sizes = [8, 8], strides = [1, 1]} : vector<8x32xf32> to vector<8x8xf32>
    %378 = vector.extract_strided_slice %339 {offsets = [0, 16], sizes = [8, 8], strides = [1, 1]} : vector<8x32xf32> to vector<8x8xf32>
    %cst_137 = arith.constant dense<0.000000e+00> : vector<8x8xf32>
    %379 = tpu.matmul %377, %378, %cst_137 {dimension_numbers = #tpu.dot_dimension_numbers<[1], [1], [0], [0], [0, 0, 1, 0], [], []>} : vector<8x8xf32>, vector<8x8xf32>, vector<8x8xf32> -> vector<8x8xf32>
    %380 = vector.broadcast %6 : f32 to vector<8x8xf32>
    %381 = arith.mulf %379, %380 : vector<8x8xf32>
    %cst_138 = arith.constant dense<0xFF800000> : vector<8xf32>
    %382 = vector.multi_reduction <maximumf>, %381, %cst_138 [1] : vector<8x8xf32> to vector<8xf32>
    %383 = vector.shape_cast %382 : vector<8xf32> to vector<8x1xf32>
    %384 = vector.broadcast %383 : vector<8x1xf32> to vector<8x8xf32>
    %385 = arith.subf %381, %384 : vector<8x8xf32>
    %386 = math.exp %385 : vector<8x8xf32>
    %cst_139 = arith.constant dense<0.000000e+00> : vector<8xf32>
    %387 = vector.multi_reduction <add>, %386, %cst_139 [1] : vector<8x8xf32> to vector<8xf32>
    %388 = vector.shape_cast %387 : vector<8xf32> to vector<8x1xf32>
    %389 = tpu.reciprocal %388 {approx = true} : vector<8x1xf32> -> vector<8x1xf32>
    %390 = vector.broadcast %389 : vector<8x1xf32> to vector<8x8xf32>
    %391 = arith.mulf %386, %390 : vector<8x8xf32>
    %392 = vector.extract_strided_slice %340 {offsets = [0, 16], sizes = [8, 8], strides = [1, 1]} : vector<8x32xf32> to vector<8x8xf32>
    %cst_140 = arith.constant dense<0.000000e+00> : vector<8x8xf32>
    %393 = tpu.matmul %391, %392, %cst_140 {dimension_numbers = #tpu.dot_dimension_numbers<[1], [0], [0], [1], [0, 0, 1, 1], [], []>} : vector<8x8xf32>, vector<8x8xf32>, vector<8x8xf32> -> vector<8x8xf32>
    %c8_141 = arith.constant 8 : index
    %c16_142 = arith.constant 16 : index
    %394 = vector.load %arg14[%c8_141, %c16_142] : memref<16x32xf32, #tpu.memory_space<vmem>>, vector<8x8xf32>
    tpu.vector_store %arg14[%c8_141, %c16_142], %393 {strides = array<i32>} : memref<16x32xf32, #tpu.memory_space<vmem>>, vector<8x8xf32>,
    %395 = vector.extract_strided_slice %338 {offsets = [0, 24], sizes = [8, 8], strides = [1, 1]} : vector<8x32xf32> to vector<8x8xf32>
    %396 = vector.extract_strided_slice %339 {offsets = [0, 24], sizes = [8, 8], strides = [1, 1]} : vector<8x32xf32> to vector<8x8xf32>
    %cst_143 = arith.constant dense<0.000000e+00> : vector<8x8xf32>
    %397 = tpu.matmul %395, %396, %cst_143 {dimension_numbers = #tpu.dot_dimension_numbers<[1], [1], [0], [0], [0, 0, 1, 0], [], []>} : vector<8x8xf32>, vector<8x8xf32>, vector<8x8xf32> -> vector<8x8xf32>
    %398 = vector.broadcast %6 : f32 to vector<8x8xf32>
    %399 = arith.mulf %397, %398 : vector<8x8xf32>
    %cst_144 = arith.constant dense<0xFF800000> : vector<8xf32>
    %400 = vector.multi_reduction <maximumf>, %399, %cst_144 [1] : vector<8x8xf32> to vector<8xf32>
    %401 = vector.shape_cast %400 : vector<8xf32> to vector<8x1xf32>
    %402 = vector.broadcast %401 : vector<8x1xf32> to vector<8x8xf32>
    %403 = arith.subf %399, %402 : vector<8x8xf32>
    %404 = math.exp %403 : vector<8x8xf32>
    %cst_145 = arith.constant dense<0.000000e+00> : vector<8xf32>
    %405 = vector.multi_reduction <add>, %404, %cst_145 [1] : vector<8x8xf32> to vector<8xf32>
    %406 = vector.shape_cast %405 : vector<8xf32> to vector<8x1xf32>
    %407 = tpu.reciprocal %406 {approx = true} : vector<8x1xf32> -> vector<8x1xf32>
    %408 = vector.broadcast %407 : vector<8x1xf32> to vector<8x8xf32>
    %409 = arith.mulf %404, %408 : vector<8x8xf32>
    %410 = vector.extract_strided_slice %340 {offsets = [0, 24], sizes = [8, 8], strides = [1, 1]} : vector<8x32xf32> to vector<8x8xf32>
    %cst_146 = arith.constant dense<0.000000e+00> : vector<8x8xf32>
    %411 = tpu.matmul %409, %410, %cst_146 {dimension_numbers = #tpu.dot_dimension_numbers<[1], [0], [0], [1], [0, 0, 1, 1], [], []>} : vector<8x8xf32>, vector<8x8xf32>, vector<8x8xf32> -> vector<8x8xf32>
    %c8_147 = arith.constant 8 : index
    %c24_148 = arith.constant 24 : index
    %412 = vector.load %arg14[%c8_147, %c24_148] : memref<16x32xf32, #tpu.memory_space<vmem>>, vector<8x8xf32>
    tpu.vector_store %arg14[%c8_147, %c24_148], %411 {strides = array<i32>} : memref<16x32xf32, #tpu.memory_space<vmem>>, vector<8x8xf32>,
    %c0_149 = arith.constant 0 : index
    %c0_150 = arith.constant 0 : index
    %413 = vector.load %arg14[%c0_149, %c0_150] : memref<16x32xf32, #tpu.memory_space<vmem>>, vector<16x32xf32>
    %c1_151 = arith.constant 1 : index
    %c0_152 = arith.constant 0 : index
    %c0_153 = arith.constant 0 : index
    %414 = vector.load %arg6[%c1_151, %c0_152, %c0_153] : memref<2x32x32xf32, #tpu.memory_space<vmem>>, vector<1x32x32xf32>
    %415 = vector.shape_cast %414 : vector<1x32x32xf32> to vector<32x32xf32>
    %cst_154 = arith.constant dense<0.000000e+00> : vector<16x32xf32>
    %416 = tpu.matmul %413, %415, %cst_154 {dimension_numbers = #tpu.dot_dimension_numbers<[1], [0], [0], [1], [0, 0, 1, 1], [], []>} : vector<16x32xf32>, vector<32x32xf32>, vector<16x32xf32> -> vector<16x32xf32>
    %417 = vector.broadcast %249 : vector<1x32xf32> to vector<16x32xf32>
    %418 = arith.addf %416, %417 : vector<16x32xf32>
    %419 = arith.addf %418, %242 : vector<16x32xf32>
    %cst_155 = arith.constant dense<0.000000e+00> : vector<16xf32>
    %420 = vector.multi_reduction <add>, %419, %cst_155 [1] : vector<16x32xf32> to vector<16xf32>
    %421 = vector.shape_cast %420 : vector<16xf32> to vector<16x1xf32>
    %cst_156 = arith.constant 3.200000e+01 : f32
    %422 = vector.broadcast %cst_156 : f32 to vector<16x1xf32>
    %423 = arith.divf %421, %422 : vector<16x1xf32>
    %424 = vector.broadcast %423 : vector<16x1xf32> to vector<16x32xf32>
    %425 = arith.subf %419, %424 : vector<16x32xf32>
    %426 = arith.mulf %425, %425 : vector<16x32xf32>
    %cst_157 = arith.constant dense<0.000000e+00> : vector<16xf32>
    %427 = vector.multi_reduction <add>, %426, %cst_157 [1] : vector<16x32xf32> to vector<16xf32>
    %428 = vector.shape_cast %427 : vector<16xf32> to vector<16x1xf32>
    %cst_158 = arith.constant 3.200000e+01 : f32
    %429 = vector.broadcast %cst_158 : f32 to vector<16x1xf32>
    %430 = arith.divf %428, %429 : vector<16x1xf32>
    %431 = vector.broadcast %423 : vector<16x1xf32> to vector<16x32xf32>
    %432 = arith.subf %419, %431 : vector<16x32xf32>
    %cst_159 = arith.constant 9.99999974E-6 : f32
    %433 = vector.broadcast %cst_159 : f32 to vector<16x1xf32>
    %434 = arith.addf %430, %433 : vector<16x1xf32>
    %435 = math.rsqrt %434 : vector<16x1xf32>
    %436 = vector.broadcast %435 : vector<16x1xf32> to vector<16x32xf32>
    %437 = arith.mulf %432, %436 : vector<16x32xf32>
    %438 = vector.broadcast %245 : vector<1x32xf32> to vector<16x32xf32>
    %439 = arith.mulf %437, %438 : vector<16x32xf32>
    %440 = vector.broadcast %246 : vector<1x32xf32> to vector<16x32xf32>
    %441 = arith.addf %439, %440 : vector<16x32xf32>
    %c1_160 = arith.constant 1 : index
    %c0_161 = arith.constant 0 : index
    %c0_162 = arith.constant 0 : index
    %442 = vector.load %arg7[%c1_160, %c0_161, %c0_162] : memref<2x32x128xf32, #tpu.memory_space<vmem>>, vector<1x32x128xf32>
    %443 = vector.shape_cast %442 : vector<1x32x128xf32> to vector<32x128xf32>
    %cst_163 = arith.constant dense<0.000000e+00> : vector<16x128xf32>
    %444 = tpu.matmul %441, %443, %cst_163 {dimension_numbers = #tpu.dot_dimension_numbers<[1], [0], [0], [1], [0, 0, 1, 1], [], []>} : vector<16x32xf32>, vector<32x128xf32>, vector<16x128xf32> -> vector<16x128xf32>
    %c1_164 = arith.constant 1 : index
    %c0_165 = arith.constant 0 : index
    %c0_166 = arith.constant 0 : index
    %445 = vector.load %arg8[%c1_164, %c0_165, %c0_166] : memref<2x1x128xf32, #tpu.memory_space<vmem>>, vector<1x1x128xf32>
    %446 = vector.shape_cast %445 : vector<1x1x128xf32> to vector<1x128xf32>
    %447 = vector.broadcast %446 : vector<1x128xf32> to vector<16x128xf32>
    %448 = arith.addf %444, %447 : vector<16x128xf32>
    %cst_167 = arith.constant 0.000000e+00 : f32
    %449 = vector.broadcast %cst_167 : f32 to vector<16x128xf32>
    %450 = arith.maximumf %448, %449 : vector<16x128xf32>
    %c1_168 = arith.constant 1 : index
    %c0_169 = arith.constant 0 : index
    %c0_170 = arith.constant 0 : index
    %451 = vector.load %arg9[%c1_168, %c0_169, %c0_170] : memref<2x128x32xf32, #tpu.memory_space<vmem>>, vector<1x128x32xf32>
    %452 = vector.shape_cast %451 : vector<1x128x32xf32> to vector<128x32xf32>
    %cst_171 = arith.constant dense<0.000000e+00> : vector<16x32xf32>
    %453 = tpu.matmul %450, %452, %cst_171 {dimension_numbers = #tpu.dot_dimension_numbers<[1], [0], [0], [1], [0, 0, 1, 1], [], []>} : vector<16x128xf32>, vector<128x32xf32>, vector<16x32xf32> -> vector<16x32xf32>
    %454 = vector.broadcast %250 : vector<1x32xf32> to vector<16x32xf32>
    %455 = arith.addf %453, %454 : vector<16x32xf32>
    %456 = arith.addf %455, %242 : vector<16x32xf32>
    %cst_172 = arith.constant dense<0.000000e+00> : vector<16xf32>
    %457 = vector.multi_reduction <add>, %456, %cst_172 [1] : vector<16x32xf32> to vector<16xf32>
    %458 = vector.shape_cast %457 : vector<16xf32> to vector<16x1xf32>
    %cst_173 = arith.constant 3.200000e+01 : f32
    %459 = vector.broadcast %cst_173 : f32 to vector<16x1xf32>
    %460 = arith.divf %458, %459 : vector<16x1xf32>
    %461 = vector.broadcast %460 : vector<16x1xf32> to vector<16x32xf32>
    %462 = arith.subf %456, %461 : vector<16x32xf32>
    %463 = arith.mulf %462, %462 : vector<16x32xf32>
    %cst_174 = arith.constant dense<0.000000e+00> : vector<16xf32>
    %464 = vector.multi_reduction <add>, %463, %cst_174 [1] : vector<16x32xf32> to vector<16xf32>
    %465 = vector.shape_cast %464 : vector<16xf32> to vector<16x1xf32>
    %cst_175 = arith.constant 3.200000e+01 : f32
    %466 = vector.broadcast %cst_175 : f32 to vector<16x1xf32>
    %467 = arith.divf %465, %466 : vector<16x1xf32>
    %468 = vector.broadcast %460 : vector<16x1xf32> to vector<16x32xf32>
    %469 = arith.subf %456, %468 : vector<16x32xf32>
    %cst_176 = arith.constant 9.99999974E-6 : f32
    %470 = vector.broadcast %cst_176 : f32 to vector<16x1xf32>
    %471 = arith.addf %467, %470 : vector<16x1xf32>
    %472 = math.rsqrt %471 : vector<16x1xf32>
    %473 = vector.broadcast %472 : vector<16x1xf32> to vector<16x32xf32>
    %474 = arith.mulf %469, %473 : vector<16x32xf32>
    %475 = vector.broadcast %247 : vector<1x32xf32> to vector<16x32xf32>
    %476 = arith.mulf %474, %475 : vector<16x32xf32>
    %477 = vector.broadcast %248 : vector<1x32xf32> to vector<16x32xf32>
    %478 = arith.addf %476, %477 : vector<16x32xf32>
    %479 = vector.extract_strided_slice %478 {offsets = [0, 0], sizes = [8, 32], strides = [1, 1]} : vector<16x32xf32> to vector<8x32xf32>
    %cst_177 = arith.constant dense<0.000000e+00> : vector<32xf32>
    %480 = vector.multi_reduction <add>, %479, %cst_177 [0] : vector<8x32xf32> to vector<32xf32>
    %481 = vector.shape_cast %480 : vector<32xf32> to vector<1x32xf32>
    %cst_178 = arith.constant 8.000000e+00 : f32
    %482 = vector.broadcast %cst_178 : f32 to vector<1x32xf32>
    %483 = arith.divf %481, %482 : vector<1x32xf32>
    %484 = vector.extract_strided_slice %478 {offsets = [8, 0], sizes = [8, 32], strides = [1, 1]} : vector<16x32xf32> to vector<8x32xf32>
    %cst_179 = arith.constant dense<0.000000e+00> : vector<32xf32>
    %485 = vector.multi_reduction <add>, %484, %cst_179 [0] : vector<8x32xf32> to vector<32xf32>
    %486 = vector.shape_cast %485 : vector<32xf32> to vector<1x32xf32>
    %cst_180 = arith.constant 8.000000e+00 : f32
    %487 = vector.broadcast %cst_180 : f32 to vector<1x32xf32>
    %488 = arith.divf %486, %487 : vector<1x32xf32>
    %489 = tpu.concatenate %483, %488 in 0 : vector<1x32xf32>, vector<1x32xf32> -> vector<2x32xf32>
    %c0_181 = arith.constant 0 : index
    %c0_182 = arith.constant 0 : index
    %490 = vector.load %arg11[%c0_181, %c0_182] : memref<32x128xf32, #tpu.memory_space<vmem>>, vector<32x128xf32>
    %cst_183 = arith.constant dense<0.000000e+00> : vector<2x128xf32>
    %491 = tpu.matmul %489, %490, %cst_183 {dimension_numbers = #tpu.dot_dimension_numbers<[1], [0], [0], [1], [0, 0, 1, 1], [], []>} : vector<2x32xf32>, vector<32x128xf32>, vector<2x128xf32> -> vector<2x128xf32>
    %c0_184 = arith.constant 0 : index
    %c0_185 = arith.constant 0 : index
    %492 = vector.load %arg12[%c0_184, %c0_185] : memref<1x128xf32, #tpu.memory_space<vmem>>, vector<1x128xf32>
    %493 = vector.broadcast %492 : vector<1x128xf32> to vector<2x128xf32>
    %494 = arith.addf %491, %493 : vector<2x128xf32>
    %cst_186 = arith.constant dense<0xFF800000> : vector<2xf32>
    %495 = vector.multi_reduction <maximumf>, %494, %cst_186 [1] : vector<2x128xf32> to vector<2xf32>
    %496 = vector.shape_cast %495 : vector<2xf32> to vector<2x1xf32>
    %497 = vector.broadcast %496 : vector<2x1xf32> to vector<2x128xf32>
    %498 = arith.subf %494, %497 : vector<2x128xf32>
    %499 = math.exp %498 : vector<2x128xf32>
    %cst_187 = arith.constant dense<0.000000e+00> : vector<2xf32>
    %500 = vector.multi_reduction <add>, %499, %cst_187 [1] : vector<2x128xf32> to vector<2xf32>
    %501 = vector.shape_cast %500 : vector<2xf32> to vector<2x1xf32>
    %502 = math.log %501 : vector<2x1xf32>
    %503 = vector.broadcast %502 : vector<2x1xf32> to vector<2x128xf32>
    %504 = arith.subf %498, %503 : vector<2x128xf32>
    %c0_188 = arith.constant 0 : index
    %c0_189 = arith.constant 0 : index
    %c0_190 = arith.constant 0 : index
    %505 = vector.load %arg13[%c0_188, %c0_189, %c0_190] : memref<1x2x128xf32, #tpu.memory_space<vmem>>, vector<1x2x128xf32>
    %506 = vector.shape_cast %505 : vector<1x2x128xf32> to vector<2x128xf32>
    %507 = vector.shape_cast %504 : vector<2x128xf32> to vector<1x2x128xf32>
    tpu.vector_store %arg13[%c0_188, %c0_189, %c0_190], %507 {strides = array<i32>} : memref<1x2x128xf32, #tpu.memory_space<vmem>>, vector<1x2x128xf32>,
    return
  }
  func.func @transform_0(%arg0: i32) -> (i32, i32) {
    %c0_i32 = arith.constant 0 : i32
    %c0_i32_0 = arith.constant 0 : i32
    return %arg0, %c0_i32 : i32, i32
  }
  func.func @transform_1(%arg0: i32) -> (i32, i32) {
    %c0_i32 = arith.constant 0 : i32
    %c0_i32_0 = arith.constant 0 : i32
    %c0_i32_1 = arith.constant 0 : i32
    return %c0_i32, %c0_i32_0 : i32, i32
  }
  func.func @transform_2(%arg0: i32) -> (i32, i32) {
    %c0_i32 = arith.constant 0 : i32
    %c0_i32_0 = arith.constant 0 : i32
    return %arg0, %c0_i32 : i32, i32
  }
  func.func @transform_3(%arg0: i32) -> (i32, i32, i32) {
    %c0_i32 = arith.constant 0 : i32
    %c0_i32_0 = arith.constant 0 : i32
    %c0_i32_1 = arith.constant 0 : i32
    %c0_i32_2 = arith.constant 0 : i32
    return %c0_i32, %c0_i32_0, %c0_i32_1 : i32, i32, i32
  }
  func.func @transform_4(%arg0: i32) -> (i32, i32, i32) {
    %c0_i32 = arith.constant 0 : i32
    %c0_i32_0 = arith.constant 0 : i32
    %c0_i32_1 = arith.constant 0 : i32
    %c0_i32_2 = arith.constant 0 : i32
    return %c0_i32, %c0_i32_0, %c0_i32_1 : i32, i32, i32
  }
  func.func @transform_5(%arg0: i32) -> (i32, i32, i32) {
    %c0_i32 = arith.constant 0 : i32
    %c0_i32_0 = arith.constant 0 : i32
    %c0_i32_1 = arith.constant 0 : i32
    %c0_i32_2 = arith.constant 0 : i32
    return %c0_i32, %c0_i32_0, %c0_i32_1 : i32, i32, i32
  }
  func.func @transform_6(%arg0: i32) -> (i32, i32, i32) {
    %c0_i32 = arith.constant 0 : i32
    %c0_i32_0 = arith.constant 0 : i32
    %c0_i32_1 = arith.constant 0 : i32
    %c0_i32_2 = arith.constant 0 : i32
    return %c0_i32, %c0_i32_0, %c0_i32_1 : i32, i32, i32
  }
  func.func @transform_7(%arg0: i32) -> (i32, i32, i32) {
    %c0_i32 = arith.constant 0 : i32
    %c0_i32_0 = arith.constant 0 : i32
    %c0_i32_1 = arith.constant 0 : i32
    %c0_i32_2 = arith.constant 0 : i32
    return %c0_i32, %c0_i32_0, %c0_i32_1 : i32, i32, i32
  }
  func.func @transform_8(%arg0: i32) -> (i32, i32, i32) {
    %c0_i32 = arith.constant 0 : i32
    %c0_i32_0 = arith.constant 0 : i32
    %c0_i32_1 = arith.constant 0 : i32
    %c0_i32_2 = arith.constant 0 : i32
    return %c0_i32, %c0_i32_0, %c0_i32_1 : i32, i32, i32
  }
  func.func @transform_9(%arg0: i32) -> (i32, i32, i32) {
    %c0_i32 = arith.constant 0 : i32
    %c0_i32_0 = arith.constant 0 : i32
    %c0_i32_1 = arith.constant 0 : i32
    %c0_i32_2 = arith.constant 0 : i32
    return %c0_i32, %c0_i32_0, %c0_i32_1 : i32, i32, i32
  }
  func.func @transform_10(%arg0: i32) -> (i32, i32) {
    %c0_i32 = arith.constant 0 : i32
    %c0_i32_0 = arith.constant 0 : i32
    %c0_i32_1 = arith.constant 0 : i32
    return %c0_i32, %c0_i32_0 : i32, i32
  }
  func.func @transform_11(%arg0: i32) -> (i32, i32) {
    %c0_i32 = arith.constant 0 : i32
    %c0_i32_0 = arith.constant 0 : i32
    %c0_i32_1 = arith.constant 0 : i32
    return %c0_i32, %c0_i32_0 : i32, i32
  }
  func.func @transform_12(%arg0: i32) -> (i32, i32, i32) {
    %c0_i32 = arith.constant 0 : i32
    %c0_i32_0 = arith.constant 0 : i32
    %c0_i32_1 = arith.constant 0 : i32
    return %arg0, %c0_i32, %c0_i32_0 : i32, i32, i32
  }
}

</mosaic_0001>

<llo_original>
// kernel: tpu_custom_call.1
$region0: #{tpu_custom_call.1}
  #allocation0 [shape = 'u32[]', space=smem, size = 0x4, offset = 0x4, fixed_abs, tag = 'smem constant byte address 0x4 - core index']
  #allocation1 [shape = 'u32[72,128]{1,0:T(1,128)}', space=vmem, size = 0x9000, scoped, tag = 'internal scratch']
  #allocation2 [shape = 'f32[16,32]{1,0:T(8,128)}', space=vmem, size = 0x2000, scoped, tag = 'scratch operand']
  %s0 = inlined_call_operand.vmem [shape: f32[16,16], index: 0, kind: input, shape index: {}]
  %s1 = inlined_call_operand.vmem [shape: f32[16,32], index: 1, kind: input, shape index: {}]
  %s2 = inlined_call_operand.vmem [shape: f32[16,32], index: 2, kind: input, shape index: {}]
  %s3 = inlined_call_operand.vmem [shape: f32[2,32,96], index: 3, kind: input, shape index: {}]
  %s4 = inlined_call_operand.vmem [shape: f32[2,1,96], index: 4, kind: input, shape index: {}]
  %s5 = inlined_call_operand.vmem [shape: f32[2,32,32], index: 5, kind: input, shape index: {}]
  %s6 = inlined_call_operand.vmem [shape: f32[2,32,128], index: 6, kind: input, shape index: {}]
  %s7 = inlined_call_operand.vmem [shape: f32[2,1,128], index: 7, kind: input, shape index: {}]
  %s8 = inlined_call_operand.vmem [shape: f32[2,128,32], index: 8, kind: input, shape index: {}]
  %s9 = inlined_call_operand.vmem [shape: f32[2,6,32], index: 9, kind: input, shape index: {}]
  %s10 = inlined_call_operand.vmem [shape: f32[32,128], index: 10, kind: input, shape index: {}]
  %s11 = inlined_call_operand.vmem [shape: f32[1,128], index: 11, kind: input, shape index: {}]
  %s12 = inlined_call_operand.hbm [shape: f32[1,2,128], index: 12, kind: output, shape index: {}]
  %s13 = sld [smem:[#allocation0]]
  $region58: #{tpu_custom_call.1} parent=0
    _
  %s15 = ssub.s32 1, %s13
  %s16 = scalar_select 0, %s15, %s13
  $region1: #{tpu_custom_call.1} parent=0
    #allocation3 [shape = 'u8[1024]{0}', space=vmem, size = 0x400, scoped, tag = 'output window, operand 0, single buffered']
    #allocation4 [shape = 's32[1]{0}', space=sflag, size = 0x4, scoped, tag = 'scoped memory for tpu_custom_call.1']
    %17 = vsyncpa [#allocation4], 0
    // Predicated region
    $region2: #{tpu_custom_call.1} parent=1 // pred_check
      _
    $region3: #{tpu_custom_call.1} parent=1 // pred_check_branch
      %19 = sbr.rel (0) target = $region5
    $region4: #{tpu_custom_call.1} parent=1 // pred_region
      _
    $region5: #{tpu_custom_call.1} parent=1 // pred_fallthru
      _
    // Predicated region
    $region6: #{tpu_custom_call.1} parent=1 // pred_check
      _
    $region7: #{tpu_custom_call.1} parent=1 // pred_check_branch
      %21 = sbr.rel (0) target = $region9
    $region8: #{tpu_custom_call.1} parent=1 // pred_region
      _
    $region9: #{tpu_custom_call.1} parent=1 // pred_fallthru
      _
    // Predicated region
    $region10: #{tpu_custom_call.1} parent=1 // pred_check
      _
    $region11: #{tpu_custom_call.1} parent=1 // pred_check_branch
      %23 = sbr.rel (0) target = $region13
    $region12: #{tpu_custom_call.1} parent=1 // pred_region
      _
    $region13: #{tpu_custom_call.1} parent=1 // pred_fallthru
      _
    // Predicated region
    $region14: #{tpu_custom_call.1} parent=1 // pred_check
      _
    $region15: #{tpu_custom_call.1} parent=1 // pred_check_branch
      %25 = sbr.rel (0) target = $region17
    $region16: #{tpu_custom_call.1} parent=1 // pred_region
      _
    $region17: #{tpu_custom_call.1} parent=1 // pred_fallthru
      _
    // Predicated region
    $region18: #{tpu_custom_call.1} parent=1 // pred_check
      _
    $region19: #{tpu_custom_call.1} parent=1 // pred_check_branch
      %27 = sbr.rel (0) target = $region21
    $region20: #{tpu_custom_call.1} parent=1 // pred_region
      _
    $region21: #{tpu_custom_call.1} parent=1 // pred_fallthru
      _
    // Predicated region
    $region22: #{tpu_custom_call.1} parent=1 // pred_check
      _
    $region23: #{tpu_custom_call.1} parent=1 // pred_check_branch
      %29 = sbr.rel (0) target = $region25
    $region24: #{tpu_custom_call.1} parent=1 // pred_region
      _
    $region25: #{tpu_custom_call.1} parent=1 // pred_fallthru
      _
    // Predicated region
    $region26: #{tpu_custom_call.1} parent=1 // pred_check
      _
    $region27: #{tpu_custom_call.1} parent=1 // pred_check_branch
      %31 = sbr.rel (0) target = $region29
    $region28: #{tpu_custom_call.1} parent=1 // pred_region
      _
    $region29: #{tpu_custom_call.1} parent=1 // pred_fallthru
      _
    // Predicated region
    $region30: #{tpu_custom_call.1} parent=1 // pred_check
      _
    $region31: #{tpu_custom_call.1} parent=1 // pred_check_branch
      %33 = sbr.rel (0) target = $region33
    $region32: #{tpu_custom_call.1} parent=1 // pred_region
      _
    $region33: #{tpu_custom_call.1} parent=1 // pred_fallthru
      _
    // Predicated region
    $region34: #{tpu_custom_call.1} parent=1 // pred_check
      _
    $region35: #{tpu_custom_call.1} parent=1 // pred_check_branch
      %35 = sbr.rel (0) target = $region37
    $region36: #{tpu_custom_call.1} parent=1 // pred_region
      _
    $region37: #{tpu_custom_call.1} parent=1 // pred_fallthru
      _
    // Predicated region
    $region38: #{tpu_custom_call.1} parent=1 // pred_check
      _
    $region39: #{tpu_custom_call.1} parent=1 // pred_check_branch
      %37 = sbr.rel (0) target = $region41
    $region40: #{tpu_custom_call.1} parent=1 // pred_region
      _
    $region41: #{tpu_custom_call.1} parent=1 // pred_fallthru
      _
    // Predicated region
    $region42: #{tpu_custom_call.1} parent=1 // pred_check
      _
    $region43: #{tpu_custom_call.1} parent=1 // pred_check_branch
      %39 = sbr.rel (0) target = $region45
    $region44: #{tpu_custom_call.1} parent=1 // pred_region
      _
    $region45: #{tpu_custom_call.1} parent=1 // pred_fallthru
      _
    // Predicated region
    $region46: #{tpu_custom_call.1} parent=1 // pred_check
      _
    $region47: #{tpu_custom_call.1} parent=1 // pred_check_branch
      %41 = sbr.rel (0) target = $region49
    $region48: #{tpu_custom_call.1} parent=1 // pred_region
      _
    $region49: #{tpu_custom_call.1} parent=1 // pred_fallthru
      _
    %v42 = vld [vmem:[%s0] sm:$0xff]
    %v43 = vld [vmem:[%s0 + $0x8] sm:$0xff]
    %v44 = vld [vmem:[%s1] sm:$0xff]
    %v45 = vld [vmem:[%s1 + $0x8] sm:$0xff]
    %v46 = vld [vmem:[%s2] sm:$0xff]
    %v47 = vld [vmem:[%s2 + $0x8] sm:$0xff]
    %vm48 = vcmask 130048
    %v50 = vsel %vm48, %v42, 0
    %v53 = vsel %vm48, %v43, 0
    %55 = vmatpush.msra.mxu0 0.0
    %56 = vmatpush.msra.mxu0 0.0
    %57 = vmatpush.msra.mxu0 0.0
    %58 = vmatpush.msra.mxu0 0.0
    %59 = vmatpush.msra.mxu0 0.0
    %60 = vmatpush.msra.mxu0 0.0
    %61 = vmatpush.msra.mxu0 0.0
    %62 = vmatpush.msra.mxu0 0.0
    %63 = vmatpush.msra.mxu0 0.0
    %64 = vmatpush.msra.mxu0 0.0
    %65 = vmatpush.msra.mxu0 0.0
    %66 = vmatpush.msra.mxu0 0.0
    %67 = vmatpush.msra.mxu0 0.0
    %68 = vmatpush.msra.mxu0 0.0
    %69 = vmatpush.msra.mxu0 %v45
    %70 = vmatpush.msra.mxu0 %v44
    %71 = vmatmul.f32.gmra.mxu0 %v50
    %v72 = vpop.f32.mrf.mxu0
    %v73 = vadd.f32 %v46, %v72
    %74 = vmatmul.f32.gmra.mxu0 %v53
    %v75 = vpop.f32.mrf.mxu0
    %v76 = vadd.f32 %v47, %v75
    %77 = vdwg.mxu0
    %v78 = vld [vmem:[%s9] sm:$0x3f]
    %v79 = vld [vmem:[%s3] sm:$0xff]
    %v80 = vld [vmem:[%s3 + $0x8] sm:$0xff]
    %v81 = vld [vmem:[%s3 + $0x10] sm:$0xff]
    %v82 = vld [vmem:[%s3 + $0x18] sm:$0xff]
    %v83 = vld [vmem:[%s4] sm:$0x1]
    %v85 = vperm.slane %v83, 0
    %vm87 = vcmask 261120
    %v89 = vsel %vm87, %v73, 0
    %v92 = vsel %vm87, %v76, 0
    %94 = vmatpush.msra.mxu0 0.0
    %95 = vmatpush.msra.mxu0 0.0
    %96 = vmatpush.msra.mxu0 0.0
    %97 = vmatpush.msra.mxu0 0.0
    %98 = vmatpush.msra.mxu0 0.0
    %99 = vmatpush.msra.mxu0 0.0
    %100 = vmatpush.msra.mxu0 0.0
    %101 = vmatpush.msra.mxu0 0.0
    %102 = vmatpush.msra.mxu0 0.0
    %103 = vmatpush.msra.mxu0 0.0
    %104 = vmatpush.msra.mxu0 0.0
    %105 = vmatpush.msra.mxu0 0.0
    %106 = vmatpush.msra.mxu0 %v82
    %107 = vmatpush.msra.mxu0 %v81
    %108 = vmatpush.msra.mxu0 %v80
    %109 = vmatpush.msra.mxu0 %v79
    %110 = vmatmul.f32.gmra.mxu0 %v89
    %v111 = vpop.f32.mrf.mxu0
    %v112 = vadd.f32 %v85, %v111
    %113 = vmatmul.f32.gmra.mxu0 %v92
    %v114 = vpop.f32.mrf.mxu0
    %v115 = vadd.f32 %v85, %v114
    %116 = vdwg.mxu0
    %v117 = vmax.f32 %v112, 0.0
    %v118 = vmax.f32 %v115, 0.0
    %120 = vrot.lane.b32.xlu0 %v117, 96
    %v121 = vpop.permute.xlu0 %120
    %vm122 = vcmask 64512
    %v123 = vsel %vm122, %v117, 0
    %v125 = vsel %vm122, %v121, 0
    %127 = vmatpush.xpose.msra.mxu0 0.0
    %128 = vmatpush.xpose.msra.mxu0 0.0
    %129 = vmatpush.xpose.msra.mxu0 0.0
    %130 = vmatpush.xpose.msra.mxu0 0.0
    %131 = vmatpush.xpose.msra.mxu0 0.0
    %132 = vmatpush.xpose.msra.mxu0 0.0
    %133 = vmatpush.xpose.msra.mxu0 0.0
    %134 = vmatpush.xpose.msra.mxu0 0.0
    %135 = vmatpush.xpose.msra.mxu0 0.0
    %136 = vmatpush.xpose.msra.mxu0 0.0
    %137 = vmatpush.xpose.msra.mxu0 0.0
    %138 = vmatpush.xpose.msra.mxu0 0.0
    %139 = vmatpush.xpose.msra.mxu0 0.0
    %140 = vmatpush.xpose.msra.mxu0 0.0
    %141 = vmatpush.xpose.msra.mxu0 0.0
    %142 = vmatpush.xpose.msra.mxu0 %v125
    %143 = vmatmul.f32.gmra.mxu0 %v123
    %v144 = vpop.f32.mrf.mxu0
    %v145 = vadd.f32 0.0, %v144
    %146 = vdwg.mxu0
    %v147 = vmul.f32 %v145, 0.35355338
    %v148 = vsel %vm122, %v147, -inf
    %149 = vmax.xlane.f32.xlu0 %v148
    %v150 = vpop.xlane.xlu0 %149
    %v151 = vsub.f32 %v147, %v150
    %v152 = vmul.f32 %v151, 1.442695
    %v153 = vpow.pop %v152
    %v154 = vsel %vm122, %v153, 0.0
    %155 = vadd.xlane.f32.xlu0 %v154
    %v156 = vpop.xlane.xlu0 %155
    %v157 = vrcp.pop %v156
    %v158 = vmul.f32 %v153, %v157
    %159 = vrot.lane.b32.xlu0 %v117, 64
    %v160 = vpop.permute.xlu0 %159
    %v163 = vsel %vm122, %v158, 0
    %165 = vmatpush.msra.mxu0 0.0
    %166 = vmatpush.msra.mxu0 0.0
    %167 = vmatpush.msra.mxu0 0.0
    %168 = vmatpush.msra.mxu0 0.0
    %169 = vmatpush.msra.mxu0 0.0
    %170 = vmatpush.msra.mxu0 0.0
    %171 = vmatpush.msra.mxu0 0.0
    %172 = vmatpush.msra.mxu0 0.0
    %173 = vmatpush.msra.mxu0 0.0
    %174 = vmatpush.msra.mxu0 0.0
    %175 = vmatpush.msra.mxu0 0.0
    %176 = vmatpush.msra.mxu0 0.0
    %177 = vmatpush.msra.mxu0 0.0
    %178 = vmatpush.msra.mxu0 0.0
    %179 = vmatpush.msra.mxu0 0.0
    %180 = vmatpush.msra.mxu0 %v160
    %181 = vmatmul.f32.gmra.mxu0 %v163
    %v182 = vpop.f32.mrf.mxu0
    %v183 = vadd.f32 0.0, %v182
    %184 = vdwg.mxu0
    %185 = vst.msk [vmem:[#allocation2] sm:$0xff] %vm122, %v183
    %186 = vrot.lane.b32.xlu0 %v117, 120
    %v187 = vpop.permute.xlu0 %186
    %188 = vrot.lane.b32.xlu0 %v117, 88
    %v189 = vpop.permute.xlu0 %188
    %v190 = vsel %vm122, %v187, 0
    %v192 = vsel %vm122, %v189, 0
    %194 = vmatpush.xpose.msra.mxu0 0.0
    %195 = vmatpush.xpose.msra.mxu0 0.0
    %196 = vmatpush.xpose.msra.mxu0 0.0
    %197 = vmatpush.xpose.msra.mxu0 0.0
    %198 = vmatpush.xpose.msra.mxu0 0.0
    %199 = vmatpush.xpose.msra.mxu0 0.0
    %200 = vmatpush.xpose.msra.mxu0 0.0
    %201 = vmatpush.xpose.msra.mxu0 0.0
    %202 = vmatpush.xpose.msra.mxu0 0.0
    %203 = vmatpush.xpose.msra.mxu0 0.0
    %204 = vmatpush.xpose.msra.mxu0 0.0
    %205 = vmatpush.xpose.msra.mxu0 0.0
    %206 = vmatpush.xpose.msra.mxu0 0.0
    %207 = vmatpush.xpose.msra.mxu0 0.0
    %208 = vmatpush.xpose.msra.mxu0 0.0
    %209 = vmatpush.xpose.msra.mxu0 %v192
    %210 = vmatmul.f32.gmra.mxu0 %v190
    %v211 = vpop.f32.mrf.mxu0
    %v212 = vadd.f32 0.0, %v211
    %213 = vdwg.mxu0
    %v214 = vmul.f32 %v212, 0.35355338
    %v215 = vsel %vm122, %v214, -inf
    %216 = vmax.xlane.f32.xlu0 %v215
    %v217 = vpop.xlane.xlu0 %216
    %v218 = vsub.f32 %v214, %v217
    %v219 = vmul.f32 %v218, 1.442695
    %v220 = vpow.pop %v219
    %v221 = vsel %vm122, %v220, 0.0
    %222 = vadd.xlane.f32.xlu0 %v221
    %v223 = vpop.xlane.xlu0 %222
    %v224 = vrcp.pop %v223
    %v225 = vmul.f32 %v220, %v224
    %226 = vrot.lane.b32.xlu0 %v117, 56
    %v227 = vpop.permute.xlu0 %226
    %v230 = vsel %vm122, %v225, 0
    %232 = vmatpush.msra.mxu0 0.0
    %233 = vmatpush.msra.mxu0 0.0
    %234 = vmatpush.msra.mxu0 0.0
    %235 = vmatpush.msra.mxu0 0.0
    %236 = vmatpush.msra.mxu0 0.0
    %237 = vmatpush.msra.mxu0 0.0
    %238 = vmatpush.msra.mxu0 0.0
    %239 = vmatpush.msra.mxu0 0.0
    %240 = vmatpush.msra.mxu0 0.0
    %241 = vmatpush.msra.mxu0 0.0
    %242 = vmatpush.msra.mxu0 0.0
    %243 = vmatpush.msra.mxu0 0.0
    %244 = vmatpush.msra.mxu0 0.0
    %245 = vmatpush.msra.mxu0 0.0
    %246 = vmatpush.msra.mxu0 0.0
    %247 = vmatpush.msra.mxu0 %v227
    %248 = vmatmul.f32.gmra.mxu0 %v230
    %v249 = vpop.f32.mrf.mxu0
    %v250 = vadd.f32 0.0, %v249
    %251 = vdwg.mxu0
    %253 = vrot.lane.b32.xlu0 %v250, 8
    %v254 = vpop.permute.xlu0 %253
    %vm256 = vcmask 130112
    %257 = vst.msk [vmem:[#allocation2] sm:$0xff] %vm256, %v254
    %258 = vrot.lane.b32.xlu0 %v117, 112
    %v259 = vpop.permute.xlu0 %258
    %260 = vrot.lane.b32.xlu0 %v117, 80
    %v261 = vpop.permute.xlu0 %260
    %v262 = vsel %vm122, %v259, 0
    %v264 = vsel %vm122, %v261, 0
    %266 = vmatpush.xpose.msra.mxu0 0.0
    %267 = vmatpush.xpose.msra.mxu0 0.0
    %268 = vmatpush.xpose.msra.mxu0 0.0
    %269 = vmatpush.xpose.msra.mxu0 0.0
    %270 = vmatpush.xpose.msra.mxu0 0.0
    %271 = vmatpush.xpose.msra.mxu0 0.0
    %272 = vmatpush.xpose.msra.mxu0 0.0
    %273 = vmatpush.xpose.msra.mxu0 0.0
    %274 = vmatpush.xpose.msra.mxu0 0.0
    %275 = vmatpush.xpose.msra.mxu0 0.0
    %276 = vmatpush.xpose.msra.mxu0 0.0
    %277 = vmatpush.xpose.msra.mxu0 0.0
    %278 = vmatpush.xpose.msra.mxu0 0.0
    %279 = vmatpush.xpose.msra.mxu0 0.0
    %280 = vmatpush.xpose.msra.mxu0 0.0
    %281 = vmatpush.xpose.msra.mxu0 %v264
    %282 = vmatmul.f32.gmra.mxu0 %v262
    %v283 = vpop.f32.mrf.mxu0
    %v284 = vadd.f32 0.0, %v283
    %285 = vdwg.mxu0
    %v286 = vmul.f32 %v284, 0.35355338
    %v287 = vsel %vm122, %v286, -inf
    %288 = vmax.xlane.f32.xlu0 %v287
    %v289 = vpop.xlane.xlu0 %288
    %v290 = vsub.f32 %v286, %v289
    %v291 = vmul.f32 %v290, 1.442695
    %v292 = vpow.pop %v291
    %v293 = vsel %vm122, %v292, 0.0
    %294 = vadd.xlane.f32.xlu0 %v293
    %v295 = vpop.xlane.xlu0 %294
    %v296 = vrcp.pop %v295
    %v297 = vmul.f32 %v292, %v296
    %298 = vrot.lane.b32.xlu0 %v117, 48
    %v299 = vpop.permute.xlu0 %298
    %v302 = vsel %vm122, %v297, 0
    %304 = vmatpush.msra.mxu0 0.0
    %305 = vmatpush.msra.mxu0 0.0
    %306 = vmatpush.msra.mxu0 0.0
    %307 = vmatpush.msra.mxu0 0.0
    %308 = vmatpush.msra.mxu0 0.0
    %309 = vmatpush.msra.mxu0 0.0
    %310 = vmatpush.msra.mxu0 0.0
    %311 = vmatpush.msra.mxu0 0.0
    %312 = vmatpush.msra.mxu0 0.0
    %313 = vmatpush.msra.mxu0 0.0
    %314 = vmatpush.msra.mxu0 0.0
    %315 = vmatpush.msra.mxu0 0.0
    %316 = vmatpush.msra.mxu0 0.0
    %317 = vmatpush.msra.mxu0 0.0
    %318 = vmatpush.msra.mxu0 0.0
    %319 = vmatpush.msra.mxu0 %v299
    %320 = vmatmul.f32.gmra.mxu0 %v302
    %v321 = vpop.f32.mrf.mxu0
    %v322 = vadd.f32 0.0, %v321
    %323 = vdwg.mxu0
    %325 = vrot.lane.b32.xlu0 %v322, 16
    %v326 = vpop.permute.xlu0 %325
    %vm328 = vcmask 195712
    %329 = vst.msk [vmem:[#allocation2] sm:$0xff] %vm328, %v326
    %330 = vrot.lane.b32.xlu0 %v117, 104
    %v331 = vpop.permute.xlu0 %330
    %332 = vrot.lane.b32.xlu0 %v117, 72
    %v333 = vpop.permute.xlu0 %332
    %v334 = vsel %vm122, %v331, 0
    %v336 = vsel %vm122, %v333, 0
    %338 = vmatpush.xpose.msra.mxu0 0.0
    %339 = vmatpush.xpose.msra.mxu0 0.0
    %340 = vmatpush.xpose.msra.mxu0 0.0
    %341 = vmatpush.xpose.msra.mxu0 0.0
    %342 = vmatpush.xpose.msra.mxu0 0.0
    %343 = vmatpush.xpose.msra.mxu0 0.0
    %344 = vmatpush.xpose.msra.mxu0 0.0
    %345 = vmatpush.xpose.msra.mxu0 0.0
    %346 = vmatpush.xpose.msra.mxu0 0.0
    %347 = vmatpush.xpose.msra.mxu0 0.0
    %348 = vmatpush.xpose.msra.mxu0 0.0
    %349 = vmatpush.xpose.msra.mxu0 0.0
    %350 = vmatpush.xpose.msra.mxu0 0.0
    %351 = vmatpush.xpose.msra.mxu0 0.0
    %352 = vmatpush.xpose.msra.mxu0 0.0
    %353 = vmatpush.xpose.msra.mxu0 %v336
    %354 = vmatmul.f32.gmra.mxu0 %v334
    %v355 = vpop.f32.mrf.mxu0
    %v356 = vadd.f32 0.0, %v355
    %357 = vdwg.mxu0
    %v358 = vmul.f32 %v356, 0.35355338
    %v359 = vsel %vm122, %v358, -inf
    %360 = vmax.xlane.f32.xlu0 %v359
    %v361 = vpop.xlane.xlu0 %360
    %v362 = vsub.f32 %v358, %v361
    %v363 = vmul.f32 %v362, 1.442695
    %v364 = vpow.pop %v363
    %v365 = vsel %vm122, %v364, 0.0
    %366 = vadd.xlane.f32.xlu0 %v365
    %v367 = vpop.xlane.xlu0 %366
    %v368 = vrcp.pop %v367
    %v369 = vmul.f32 %v364, %v368
    %370 = vrot.lane.b32.xlu0 %v117, 40
    %v371 = vpop.permute.xlu0 %370
    %v374 = vsel %vm122, %v369, 0
    %376 = vmatpush.msra.mxu0 0.0
    %377 = vmatpush.msra.mxu0 0.0
    %378 = vmatpush.msra.mxu0 0.0
    %379 = vmatpush.msra.mxu0 0.0
    %380 = vmatpush.msra.mxu0 0.0
    %381 = vmatpush.msra.mxu0 0.0
    %382 = vmatpush.msra.mxu0 0.0
    %383 = vmatpush.msra.mxu0 0.0
    %384 = vmatpush.msra.mxu0 0.0
    %385 = vmatpush.msra.mxu0 0.0
    %386 = vmatpush.msra.mxu0 0.0
    %387 = vmatpush.msra.mxu0 0.0
    %388 = vmatpush.msra.mxu0 0.0
    %389 = vmatpush.msra.mxu0 0.0
    %390 = vmatpush.msra.mxu0 0.0
    %391 = vmatpush.msra.mxu0 %v371
    %392 = vmatmul.f32.gmra.mxu0 %v374
    %v393 = vpop.f32.mrf.mxu0
    %v394 = vadd.f32 0.0, %v393
    %395 = vdwg.mxu0
    %397 = vrot.lane.b32.xlu0 %v394, 24
    %v398 = vpop.permute.xlu0 %397
    %vm400 = vcmask 261312
    %401 = vst.msk [vmem:[#allocation2] sm:$0xff] %vm400, %v398
    %403 = vrot.lane.b32.xlu0 %v118, 96
    %v404 = vpop.permute.xlu0 %403
    %v405 = vsel %vm122, %v118, 0
    %v407 = vsel %vm122, %v404, 0
    %409 = vmatpush.xpose.msra.mxu0 0.0
    %410 = vmatpush.xpose.msra.mxu0 0.0
    %411 = vmatpush.xpose.msra.mxu0 0.0
    %412 = vmatpush.xpose.msra.mxu0 0.0
    %413 = vmatpush.xpose.msra.mxu0 0.0
    %414 = vmatpush.xpose.msra.mxu0 0.0
    %415 = vmatpush.xpose.msra.mxu0 0.0
    %416 = vmatpush.xpose.msra.mxu0 0.0
    %417 = vmatpush.xpose.msra.mxu0 0.0
    %418 = vmatpush.xpose.msra.mxu0 0.0
    %419 = vmatpush.xpose.msra.mxu0 0.0
    %420 = vmatpush.xpose.msra.mxu0 0.0
    %421 = vmatpush.xpose.msra.mxu0 0.0
    %422 = vmatpush.xpose.msra.mxu0 0.0
    %423 = vmatpush.xpose.msra.mxu0 0.0
    %424 = vmatpush.xpose.msra.mxu0 %v407
    %425 = vmatmul.f32.gmra.mxu0 %v405
    %v426 = vpop.f32.mrf.mxu0
    %v427 = vadd.f32 0.0, %v426
    %428 = vdwg.mxu0
    %v429 = vmul.f32 %v427, 0.35355338
    %v430 = vsel %vm122, %v429, -inf
    %431 = vmax.xlane.f32.xlu0 %v430
    %v432 = vpop.xlane.xlu0 %431
    %v433 = vsub.f32 %v429, %v432
    %v434 = vmul.f32 %v433, 1.442695
    %v435 = vpow.pop %v434
    %v436 = vsel %vm122, %v435, 0.0
    %437 = vadd.xlane.f32.xlu0 %v436
    %v438 = vpop.xlane.xlu0 %437
    %v439 = vrcp.pop %v438
    %v440 = vmul.f32 %v435, %v439
    %441 = vrot.lane.b32.xlu0 %v118, 64
    %v442 = vpop.permute.xlu0 %441
    %v445 = vsel %vm122, %v440, 0
    %447 = vmatpush.msra.mxu0 0.0
    %448 = vmatpush.msra.mxu0 0.0
    %449 = vmatpush.msra.mxu0 0.0
    %450 = vmatpush.msra.mxu0 0.0
    %451 = vmatpush.msra.mxu0 0.0
    %452 = vmatpush.msra.mxu0 0.0
    %453 = vmatpush.msra.mxu0 0.0
    %454 = vmatpush.msra.mxu0 0.0
    %455 = vmatpush.msra.mxu0 0.0
    %456 = vmatpush.msra.mxu0 0.0
    %457 = vmatpush.msra.mxu0 0.0
    %458 = vmatpush.msra.mxu0 0.0
    %459 = vmatpush.msra.mxu0 0.0
    %460 = vmatpush.msra.mxu0 0.0
    %461 = vmatpush.msra.mxu0 0.0
    %462 = vmatpush.msra.mxu0 %v442
    %463 = vmatmul.f32.gmra.mxu0 %v445
    %v464 = vpop.f32.mrf.mxu0
    %v465 = vadd.f32 0.0, %v464
    %466 = vdwg.mxu0
    %467 = vst.msk [vmem:[#allocation2 + $0x8] sm:$0xff] %vm122, %v465
    %468 = vrot.lane.b32.xlu0 %v118, 120
    %v469 = vpop.permute.xlu0 %468
    %470 = vrot.lane.b32.xlu0 %v118, 88
    %v471 = vpop.permute.xlu0 %470
    %v472 = vsel %vm122, %v469, 0
    %v474 = vsel %vm122, %v471, 0
    %476 = vmatpush.xpose.msra.mxu0 0.0
    %477 = vmatpush.xpose.msra.mxu0 0.0
    %478 = vmatpush.xpose.msra.mxu0 0.0
    %479 = vmatpush.xpose.msra.mxu0 0.0
    %480 = vmatpush.xpose.msra.mxu0 0.0
    %481 = vmatpush.xpose.msra.mxu0 0.0
    %482 = vmatpush.xpose.msra.mxu0 0.0
    %483 = vmatpush.xpose.msra.mxu0 0.0
    %484 = vmatpush.xpose.msra.mxu0 0.0
    %485 = vmatpush.xpose.msra.mxu0 0.0
    %486 = vmatpush.xpose.msra.mxu0 0.0
    %487 = vmatpush.xpose.msra.mxu0 0.0
    %488 = vmatpush.xpose.msra.mxu0 0.0
    %489 = vmatpush.xpose.msra.mxu0 0.0
    %490 = vmatpush.xpose.msra.mxu0 0.0
    %491 = vmatpush.xpose.msra.mxu0 %v474
    %492 = vmatmul.f32.gmra.mxu0 %v472
    %v493 = vpop.f32.mrf.mxu0
    %v494 = vadd.f32 0.0, %v493
    %495 = vdwg.mxu0
    %v496 = vmul.f32 %v494, 0.35355338
    %v497 = vsel %vm122, %v496, -inf
    %498 = vmax.xlane.f32.xlu0 %v497
    %v499 = vpop.xlane.xlu0 %498
    %v500 = vsub.f32 %v496, %v499
    %v501 = vmul.f32 %v500, 1.442695
    %v502 = vpow.pop %v501
    %v503 = vsel %vm122, %v502, 0.0
    %504 = vadd.xlane.f32.xlu0 %v503
    %v505 = vpop.xlane.xlu0 %504
    %v506 = vrcp.pop %v505
    %v507 = vmul.f32 %v502, %v506
    %508 = vrot.lane.b32.xlu0 %v118, 56
    %v509 = vpop.permute.xlu0 %508
    %v512 = vsel %vm122, %v507, 0
    %514 = vmatpush.msra.mxu0 0.0
    %515 = vmatpush.msra.mxu0 0.0
    %516 = vmatpush.msra.mxu0 0.0
    %517 = vmatpush.msra.mxu0 0.0
    %518 = vmatpush.msra.mxu0 0.0
    %519 = vmatpush.msra.mxu0 0.0
    %520 = vmatpush.msra.mxu0 0.0
    %521 = vmatpush.msra.mxu0 0.0
    %522 = vmatpush.msra.mxu0 0.0
    %523 = vmatpush.msra.mxu0 0.0
    %524 = vmatpush.msra.mxu0 0.0
    %525 = vmatpush.msra.mxu0 0.0
    %526 = vmatpush.msra.mxu0 0.0
    %527 = vmatpush.msra.mxu0 0.0
    %528 = vmatpush.msra.mxu0 0.0
    %529 = vmatpush.msra.mxu0 %v509
    %530 = vmatmul.f32.gmra.mxu0 %v512
    %v531 = vpop.f32.mrf.mxu0
    %v532 = vadd.f32 0.0, %v531
    %533 = vdwg.mxu0
    %535 = vrot.lane.b32.xlu0 %v532, 8
    %v536 = vpop.permute.xlu0 %535
    %538 = vst.msk [vmem:[#allocation2 + $0x8] sm:$0xff] %vm256, %v536
    %539 = vrot.lane.b32.xlu0 %v118, 112
    %v540 = vpop.permute.xlu0 %539
    %541 = vrot.lane.b32.xlu0 %v118, 80
    %v542 = vpop.permute.xlu0 %541
    %v543 = vsel %vm122, %v540, 0
    %v545 = vsel %vm122, %v542, 0
    %547 = vmatpush.xpose.msra.mxu0 0.0
    %548 = vmatpush.xpose.msra.mxu0 0.0
    %549 = vmatpush.xpose.msra.mxu0 0.0
    %550 = vmatpush.xpose.msra.mxu0 0.0
    %551 = vmatpush.xpose.msra.mxu0 0.0
    %552 = vmatpush.xpose.msra.mxu0 0.0
    %553 = vmatpush.xpose.msra.mxu0 0.0
    %554 = vmatpush.xpose.msra.mxu0 0.0
    %555 = vmatpush.xpose.msra.mxu0 0.0
    %556 = vmatpush.xpose.msra.mxu0 0.0
    %557 = vmatpush.xpose.msra.mxu0 0.0
    %558 = vmatpush.xpose.msra.mxu0 0.0
    %559 = vmatpush.xpose.msra.mxu0 0.0
    %560 = vmatpush.xpose.msra.mxu0 0.0
    %561 = vmatpush.xpose.msra.mxu0 0.0
    %562 = vmatpush.xpose.msra.mxu0 %v545
    %563 = vmatmul.f32.gmra.mxu0 %v543
    %v564 = vpop.f32.mrf.mxu0
    %v565 = vadd.f32 0.0, %v564
    %566 = vdwg.mxu0
    %v567 = vmul.f32 %v565, 0.35355338
    %v568 = vsel %vm122, %v567, -inf
    %569 = vmax.xlane.f32.xlu0 %v568
    %v570 = vpop.xlane.xlu0 %569
    %v571 = vsub.f32 %v567, %v570
    %v572 = vmul.f32 %v571, 1.442695
    %v573 = vpow.pop %v572
    %v574 = vsel %vm122, %v573, 0.0
    %575 = vadd.xlane.f32.xlu0 %v574
    %v576 = vpop.xlane.xlu0 %575
    %v577 = vrcp.pop %v576
    %v578 = vmul.f32 %v573, %v577
    %579 = vrot.lane.b32.xlu0 %v118, 48
    %v580 = vpop.permute.xlu0 %579
    %v583 = vsel %vm122, %v578, 0
    %585 = vmatpush.msra.mxu0 0.0
    %586 = vmatpush.msra.mxu0 0.0
    %587 = vmatpush.msra.mxu0 0.0
    %588 = vmatpush.msra.mxu0 0.0
    %589 = vmatpush.msra.mxu0 0.0
    %590 = vmatpush.msra.mxu0 0.0
    %591 = vmatpush.msra.mxu0 0.0
    %592 = vmatpush.msra.mxu0 0.0
    %593 = vmatpush.msra.mxu0 0.0
    %594 = vmatpush.msra.mxu0 0.0
    %595 = vmatpush.msra.mxu0 0.0
    %596 = vmatpush.msra.mxu0 0.0
    %597 = vmatpush.msra.mxu0 0.0
    %598 = vmatpush.msra.mxu0 0.0
    %599 = vmatpush.msra.mxu0 0.0
    %600 = vmatpush.msra.mxu0 %v580
    %601 = vmatmul.f32.gmra.mxu0 %v583
    %v602 = vpop.f32.mrf.mxu0
    %v603 = vadd.f32 0.0, %v602
    %604 = vdwg.mxu0
    %606 = vrot.lane.b32.xlu0 %v603, 16
    %v607 = vpop.permute.xlu0 %606
    %609 = vst.msk [vmem:[#allocation2 + $0x8] sm:$0xff] %vm328, %v607
    %610 = vrot.lane.b32.xlu0 %v118, 104
    %v611 = vpop.permute.xlu0 %610
    %612 = vrot.lane.b32.xlu0 %v118, 72
    %v613 = vpop.permute.xlu0 %612
    %v614 = vsel %vm122, %v611, 0
    %v616 = vsel %vm122, %v613, 0
    %618 = vmatpush.xpose.msra.mxu0 0.0
    %619 = vmatpush.xpose.msra.mxu0 0.0
    %620 = vmatpush.xpose.msra.mxu0 0.0
    %621 = vmatpush.xpose.msra.mxu0 0.0
    %622 = vmatpush.xpose.msra.mxu0 0.0
    %623 = vmatpush.xpose.msra.mxu0 0.0
    %624 = vmatpush.xpose.msra.mxu0 0.0
    %625 = vmatpush.xpose.msra.mxu0 0.0
    %626 = vmatpush.xpose.msra.mxu0 0.0
    %627 = vmatpush.xpose.msra.mxu0 0.0
    %628 = vmatpush.xpose.msra.mxu0 0.0
    %629 = vmatpush.xpose.msra.mxu0 0.0
    %630 = vmatpush.xpose.msra.mxu0 0.0
    %631 = vmatpush.xpose.msra.mxu0 0.0
    %632 = vmatpush.xpose.msra.mxu0 0.0
    %633 = vmatpush.xpose.msra.mxu0 %v616
    %634 = vmatmul.f32.gmra.mxu0 %v614
    %v635 = vpop.f32.mrf.mxu0
    %v636 = vadd.f32 0.0, %v635
    %637 = vdwg.mxu0
    %v638 = vmul.f32 %v636, 0.35355338
    %v639 = vsel %vm122, %v638, -inf
    %640 = vmax.xlane.f32.xlu0 %v639
    %v641 = vpop.xlane.xlu0 %640
    %v642 = vsub.f32 %v638, %v641
    %v643 = vmul.f32 %v642, 1.442695
    %v644 = vpow.pop %v643
    %v645 = vsel %vm122, %v644, 0.0
    %646 = vadd.xlane.f32.xlu0 %v645
    %v647 = vpop.xlane.xlu0 %646
    %v648 = vrcp.pop %v647
    %v649 = vmul.f32 %v644, %v648
    %650 = vrot.lane.b32.xlu0 %v118, 40
    %v651 = vpop.permute.xlu0 %650
    %v654 = vsel %vm122, %v649, 0
    %656 = vmatpush.msra.mxu0 0.0
    %657 = vmatpush.msra.mxu0 0.0
    %658 = vmatpush.msra.mxu0 0.0
    %659 = vmatpush.msra.mxu0 0.0
    %660 = vmatpush.msra.mxu0 0.0
    %661 = vmatpush.msra.mxu0 0.0
    %662 = vmatpush.msra.mxu0 0.0
    %663 = vmatpush.msra.mxu0 0.0
    %664 = vmatpush.msra.mxu0 0.0
    %665 = vmatpush.msra.mxu0 0.0
    %666 = vmatpush.msra.mxu0 0.0
    %667 = vmatpush.msra.mxu0 0.0
    %668 = vmatpush.msra.mxu0 0.0
    %669 = vmatpush.msra.mxu0 0.0
    %670 = vmatpush.msra.mxu0 0.0
    %671 = vmatpush.msra.mxu0 %v651
    %672 = vmatmul.f32.gmra.mxu0 %v654
    %v673 = vpop.f32.mrf.mxu0
    %v674 = vadd.f32 0.0, %v673
    %675 = vdwg.mxu0
    %677 = vrot.lane.b32.xlu0 %v674, 24
    %v678 = vpop.permute.xlu0 %677
    %680 = vst.msk [vmem:[#allocation2 + $0x8] sm:$0xff] %vm400, %v678
    %v681 = vld [vmem:[#allocation2] sm:$0xff]
    %v682 = vld [vmem:[#allocation2 + $0x8] sm:$0xff]
    %v683 = vld [vmem:[%s5] sm:$0xff]
    %v684 = vld [vmem:[%s5 + $0x8] sm:$0xff]
    %v685 = vld [vmem:[%s5 + $0x10] sm:$0xff]
    %v686 = vld [vmem:[%s5 + $0x18] sm:$0xff]
    %v687 = vperm.slane %v78, 4
    %v689 = vsel %vm87, %v681, 0
    %v692 = vsel %vm87, %v682, 0
    %694 = vmatpush.msra.mxu0 0.0
    %695 = vmatpush.msra.mxu0 0.0
    %696 = vmatpush.msra.mxu0 0.0
    %697 = vmatpush.msra.mxu0 0.0
    %698 = vmatpush.msra.mxu0 0.0
    %699 = vmatpush.msra.mxu0 0.0
    %700 = vmatpush.msra.mxu0 0.0
    %701 = vmatpush.msra.mxu0 0.0
    %702 = vmatpush.msra.mxu0 0.0
    %703 = vmatpush.msra.mxu0 0.0
    %704 = vmatpush.msra.mxu0 0.0
    %705 = vmatpush.msra.mxu0 0.0
    %706 = vmatpush.msra.mxu0 %v686
    %707 = vmatpush.msra.mxu0 %v685
    %708 = vmatpush.msra.mxu0 %v684
    %709 = vmatpush.msra.mxu0 %v683
    %710 = vmatmul.f32.gmra.mxu0 %v689
    %v711 = vpop.f32.mrf.mxu0
    %v712 = vadd.f32 %v687, %v711
    %713 = vmatmul.f32.gmra.mxu0 %v692
    %v714 = vpop.f32.mrf.mxu0
    %v715 = vadd.f32 %v687, %v714
    %716 = vdwg.mxu0
    %v717 = vadd.f32 %v712, %v73
    %v718 = vadd.f32 %v715, %v76
    %v719 = vsel %vm87, %v717, 0.0
    %720 = vadd.xlane.f32.xlu0 %v719
    %v721 = vpop.xlane.xlu0 %720
    %v722 = vsel %vm87, %v718, 0.0
    %723 = vadd.xlane.f32.xlu0 %v722
    %v724 = vpop.xlane.xlu0 %723
    %v725 = vrcp.pop 32.0
    %v726 = vmul.f32 32.0, %v725
    %v727 = vsub.f32 1.0, %v726
    %v728 = vmul.f32 %v725, %v727
    %v729 = vadd.f32 %v725, %v728
    %vm730 = vweird.f32 %v725
    %v731 = vsel %vm730, %v725, %v729
    %v732 = vmul.f32 %v721, %v731
    %v733 = vmul.f32 %v724, %v731
    %v734 = vsub.f32 %v717, %v732
    %v735 = vsub.f32 %v718, %v733
    %v736 = vmul.f32 %v734, %v734
    %v737 = vmul.f32 %v735, %v735
    %v738 = vsel %vm87, %v736, 0.0
    %739 = vadd.xlane.f32.xlu0 %v738
    %v740 = vpop.xlane.xlu0 %739
    %v741 = vsel %vm87, %v737, 0.0
    %742 = vadd.xlane.f32.xlu0 %v741
    %v743 = vpop.xlane.xlu0 %742
    %v744 = vmul.f32 %v740, %v731
    %v745 = vmul.f32 %v743, %v731
    %v746 = vadd.f32 %v744, 1e-05
    %v747 = vadd.f32 %v745, 1e-05
    %v748 = vrsqrt.pop %v746
    %v749 = vmul.f32 %v748, %v746
    %v750 = vmul.f32 %v749, %v748
    %v751 = vmul.f32 0.5, %v750
    %v752 = vsub.f32 1.5, %v751
    %v753 = vmul.f32 %v748, %v752
    %vm754 = vweird.f32 %v746
    %vm755 = vweird.f32 %v748
    %vm756 = vmor %vm754, %vm755
    %v757 = vsel %vm756, %v748, %v753
    %v758 = vrsqrt.pop %v747
    %v759 = vmul.f32 %v758, %v747
    %v760 = vmul.f32 %v759, %v758
    %v761 = vmul.f32 0.5, %v760
    %v762 = vsub.f32 1.5, %v761
    %v763 = vmul.f32 %v758, %v762
    %vm764 = vweird.f32 %v747
    %vm765 = vweird.f32 %v758
    %vm766 = vmor %vm764, %vm765
    %v767 = vsel %vm766, %v758, %v763
    %v768 = vmul.f32 %v734, %v757
    %v769 = vmul.f32 %v735, %v767
    %v770 = vperm.slane %v78, 0
    %v771 = vmul.f32 %v768, %v770
    %v772 = vmul.f32 %v769, %v770
    %v773 = vperm.slane %v78, 1
    %v774 = vadd.f32 %v771, %v773
    %v775 = vadd.f32 %v772, %v773
    %v776 = vld [vmem:[%s6] sm:$0xff]
    %v777 = vld [vmem:[%s6 + $0x8] sm:$0xff]
    %v778 = vld [vmem:[%s6 + $0x10] sm:$0xff]
    %v779 = vld [vmem:[%s6 + $0x18] sm:$0xff]
    %v780 = vld [vmem:[%s7] sm:$0x1]
    %v782 = vperm.slane %v780, 0
    %v785 = vsel %vm87, %v774, 0
    %v788 = vsel %vm87, %v775, 0
    %790 = vmatpush.msra.mxu0 0.0
    %791 = vmatpush.msra.mxu0 0.0
    %792 = vmatpush.msra.mxu0 0.0
    %793 = vmatpush.msra.mxu0 0.0
    %794 = vmatpush.msra.mxu0 0.0
    %795 = vmatpush.msra.mxu0 0.0
    %796 = vmatpush.msra.mxu0 0.0
    %797 = vmatpush.msra.mxu0 0.0
    %798 = vmatpush.msra.mxu0 0.0
    %799 = vmatpush.msra.mxu0 0.0
    %800 = vmatpush.msra.mxu0 0.0
    %801 = vmatpush.msra.mxu0 0.0
    %802 = vmatpush.msra.mxu0 %v779
    %803 = vmatpush.msra.mxu0 %v778
    %804 = vmatpush.msra.mxu0 %v777
    %805 = vmatpush.msra.mxu0 %v776
    %806 = vmatmul.f32.gmra.mxu0 %v785
    %v807 = vpop.f32.mrf.mxu0
    %v808 = vadd.f32 %v782, %v807
    %809 = vmatmul.f32.gmra.mxu0 %v788
    %v810 = vpop.f32.mrf.mxu0
    %v811 = vadd.f32 %v782, %v810
    %812 = vdwg.mxu0
    %v813 = vmax.f32 %v808, 0.0
    %v814 = vmax.f32 %v811, 0.0
    %v815 = vld [vmem:[%s8] sm:$0xff]
    %v816 = vld [vmem:[%s8 + $0x8] sm:$0xff]
    %v817 = vld [vmem:[%s8 + $0x10] sm:$0xff]
    %v818 = vld [vmem:[%s8 + $0x18] sm:$0xff]
    %v819 = vld [vmem:[%s8 + $0x20] sm:$0xff]
    %v820 = vld [vmem:[%s8 + $0x28] sm:$0xff]
    %v821 = vld [vmem:[%s8 + $0x30] sm:$0xff]
    %v822 = vld [vmem:[%s8 + $0x38] sm:$0xff]
    %v823 = vld [vmem:[%s8 + $0x40] sm:$0xff]
    %v824 = vld [vmem:[%s8 + $0x48] sm:$0xff]
    %v825 = vld [vmem:[%s8 + $0x50] sm:$0xff]
    %v826 = vld [vmem:[%s8 + $0x58] sm:$0xff]
    %v827 = vld [vmem:[%s8 + $0x60] sm:$0xff]
    %v828 = vld [vmem:[%s8 + $0x68] sm:$0xff]
    %v829 = vld [vmem:[%s8 + $0x70] sm:$0xff]
    %v830 = vld [vmem:[%s8 + $0x78] sm:$0xff]
    %v831 = vperm.slane %v78, 5
    %832 = vmatpush.msra.mxu0 %v830
    %833 = vmatpush.msra.mxu0 %v829
    %834 = vmatpush.msra.mxu0 %v828
    %835 = vmatpush.msra.mxu0 %v827
    %836 = vmatpush.msra.mxu0 %v826
    %837 = vmatpush.msra.mxu0 %v825
    %838 = vmatpush.msra.mxu0 %v824
    %839 = vmatpush.msra.mxu0 %v823
    %840 = vmatpush.msra.mxu0 %v822
    %841 = vmatpush.msra.mxu0 %v821
    %842 = vmatpush.msra.mxu0 %v820
    %843 = vmatpush.msra.mxu0 %v819
    %844 = vmatpush.msra.mxu0 %v818
    %845 = vmatpush.msra.mxu0 %v817
    %846 = vmatpush.msra.mxu0 %v816
    %847 = vmatpush.msra.mxu0 %v815
    %848 = vmatmul.f32.gmra.mxu0 %v813
    %v849 = vpop.f32.mrf.mxu0
    %v850 = vadd.f32 %v831, %v849
    %851 = vmatmul.f32.gmra.mxu0 %v814
    %v852 = vpop.f32.mrf.mxu0
    %v853 = vadd.f32 %v831, %v852
    %854 = vdwg.mxu0
    %v855 = vadd.f32 %v850, %v73
    %v856 = vadd.f32 %v853, %v76
    %v857 = vsel %vm87, %v855, 0.0
    %858 = vadd.xlane.f32.xlu0 %v857
    %v859 = vpop.xlane.xlu0 %858
    %v860 = vsel %vm87, %v856, 0.0
    %861 = vadd.xlane.f32.xlu0 %v860
    %v862 = vpop.xlane.xlu0 %861
    %v863 = vmul.f32 %v859, %v731
    %v864 = vmul.f32 %v862, %v731
    %v865 = vsub.f32 %v855, %v863
    %v866 = vsub.f32 %v856, %v864
    %v867 = vmul.f32 %v865, %v865
    %v868 = vmul.f32 %v866, %v866
    %v869 = vsel %vm87, %v867, 0.0
    %870 = vadd.xlane.f32.xlu0 %v869
    %v871 = vpop.xlane.xlu0 %870
    %v872 = vsel %vm87, %v868, 0.0
    %873 = vadd.xlane.f32.xlu0 %v872
    %v874 = vpop.xlane.xlu0 %873
    %v875 = vmul.f32 %v871, %v731
    %v876 = vmul.f32 %v874, %v731
    %v877 = vadd.f32 %v875, 1e-05
    %v878 = vadd.f32 %v876, 1e-05
    %v879 = vrsqrt.pop %v877
    %v880 = vmul.f32 %v879, %v877
    %v881 = vmul.f32 %v880, %v879
    %v882 = vmul.f32 0.5, %v881
    %v883 = vsub.f32 1.5, %v882
    %v884 = vmul.f32 %v879, %v883
    %vm885 = vweird.f32 %v877
    %vm886 = vweird.f32 %v879
    %vm887 = vmor %vm885, %vm886
    %v888 = vsel %vm887, %v879, %v884
    %v889 = vrsqrt.pop %v878
    %v890 = vmul.f32 %v889, %v878
    %v891 = vmul.f32 %v890, %v889
    %v892 = vmul.f32 0.5, %v891
    %v893 = vsub.f32 1.5, %v892
    %v894 = vmul.f32 %v889, %v893
    %vm895 = vweird.f32 %v878
    %vm896 = vweird.f32 %v889
    %vm897 = vmor %vm895, %vm896
    %v898 = vsel %vm897, %v889, %v894
    %v899 = vmul.f32 %v865, %v888
    %v900 = vmul.f32 %v866, %v898
    %v901 = vperm.slane %v78, 2
    %v902 = vmul.f32 %v899, %v901
    %v903 = vmul.f32 %v900, %v901
    %v904 = vperm.slane %v78, 3
    %v905 = vadd.f32 %v902, %v904
    %v906 = vadd.f32 %v903, %v904
    %s907 = scalar_lea.vmem %s9, 8
    %v908 = vld [vmem:[%s907] sm:$0x3f]
    %s909 = scalar_lea.vmem %s3, 32
    %v910 = vld [vmem:[%s909] sm:$0xff]
    %v911 = vld [vmem:[%s909 + $0x8] sm:$0xff]
    %v912 = vld [vmem:[%s909 + $0x10] sm:$0xff]
    %v913 = vld [vmem:[%s909 + $0x18] sm:$0xff]
    %s914 = scalar_lea.vmem %s4, 1
    %v915 = vld [vmem:[%s914] sm:$0x1]
    %v917 = vperm.slane %v915, 0
    %v920 = vsel %vm87, %v905, 0
    %v923 = vsel %vm87, %v906, 0
    %925 = vmatpush.msra.mxu0 0.0
    %926 = vmatpush.msra.mxu0 0.0
    %927 = vmatpush.msra.mxu0 0.0
    %928 = vmatpush.msra.mxu0 0.0
    %929 = vmatpush.msra.mxu0 0.0
    %930 = vmatpush.msra.mxu0 0.0
    %931 = vmatpush.msra.mxu0 0.0
    %932 = vmatpush.msra.mxu0 0.0
    %933 = vmatpush.msra.mxu0 0.0
    %934 = vmatpush.msra.mxu0 0.0
    %935 = vmatpush.msra.mxu0 0.0
    %936 = vmatpush.msra.mxu0 0.0
    %937 = vmatpush.msra.mxu0 %v913
    %938 = vmatpush.msra.mxu0 %v912
    %939 = vmatpush.msra.mxu0 %v911
    %940 = vmatpush.msra.mxu0 %v910
    %941 = vmatmul.f32.gmra.mxu0 %v920
    %v942 = vpop.f32.mrf.mxu0
    %v943 = vadd.f32 %v917, %v942
    %944 = vmatmul.f32.gmra.mxu0 %v923
    %v945 = vpop.f32.mrf.mxu0
    %v946 = vadd.f32 %v917, %v945
    %947 = vdwg.mxu0
    %v948 = vmax.f32 %v943, 0.0
    %v949 = vmax.f32 %v946, 0.0
    %951 = vrot.lane.b32.xlu0 %v948, 96
    %v952 = vpop.permute.xlu0 %951
    %v953 = vsel %vm122, %v948, 0
    %v955 = vsel %vm122, %v952, 0
    %957 = vmatpush.xpose.msra.mxu0 0.0
    %958 = vmatpush.xpose.msra.mxu0 0.0
    %959 = vmatpush.xpose.msra.mxu0 0.0
    %960 = vmatpush.xpose.msra.mxu0 0.0
    %961 = vmatpush.xpose.msra.mxu0 0.0
    %962 = vmatpush.xpose.msra.mxu0 0.0
    %963 = vmatpush.xpose.msra.mxu0 0.0
    %964 = vmatpush.xpose.msra.mxu0 0.0
    %965 = vmatpush.xpose.msra.mxu0 0.0
    %966 = vmatpush.xpose.msra.mxu0 0.0
    %967 = vmatpush.xpose.msra.mxu0 0.0
    %968 = vmatpush.xpose.msra.mxu0 0.0
    %969 = vmatpush.xpose.msra.mxu0 0.0
    %970 = vmatpush.xpose.msra.mxu0 0.0
    %971 = vmatpush.xpose.msra.mxu0 0.0
    %972 = vmatpush.xpose.msra.mxu0 %v955
    %973 = vmatmul.f32.gmra.mxu0 %v953
    %v974 = vpop.f32.mrf.mxu0
    %v975 = vadd.f32 0.0, %v974
    %976 = vdwg.mxu0
    %v977 = vmul.f32 %v975, 0.35355338
    %v978 = vsel %vm122, %v977, -inf
    %979 = vmax.xlane.f32.xlu0 %v978
    %v980 = vpop.xlane.xlu0 %979
    %v981 = vsub.f32 %v977, %v980
    %v982 = vmul.f32 %v981, 1.442695
    %v983 = vpow.pop %v982
    %v984 = vsel %vm122, %v983, 0.0
    %985 = vadd.xlane.f32.xlu0 %v984
    %v986 = vpop.xlane.xlu0 %985
    %v987 = vrcp.pop %v986
    %v988 = vmul.f32 %v983, %v987
    %989 = vrot.lane.b32.xlu0 %v948, 64
    %v990 = vpop.permute.xlu0 %989
    %v993 = vsel %vm122, %v988, 0
    %995 = vmatpush.msra.mxu0 0.0
    %996 = vmatpush.msra.mxu0 0.0
    %997 = vmatpush.msra.mxu0 0.0
    %998 = vmatpush.msra.mxu0 0.0
    %999 = vmatpush.msra.mxu0 0.0
    %1000 = vmatpush.msra.mxu0 0.0
    %1001 = vmatpush.msra.mxu0 0.0
    %1002 = vmatpush.msra.mxu0 0.0
    %1003 = vmatpush.msra.mxu0 0.0
    %1004 = vmatpush.msra.mxu0 0.0
    %1005 = vmatpush.msra.mxu0 0.0
    %1006 = vmatpush.msra.mxu0 0.0
    %1007 = vmatpush.msra.mxu0 0.0
    %1008 = vmatpush.msra.mxu0 0.0
    %1009 = vmatpush.msra.mxu0 0.0
    %1010 = vmatpush.msra.mxu0 %v990
    %1011 = vmatmul.f32.gmra.mxu0 %v993
    %v1012 = vpop.f32.mrf.mxu0
    %v1013 = vadd.f32 0.0, %v1012
    %1014 = vdwg.mxu0
    %1015 = vst.msk [vmem:[#allocation2] sm:$0xff] %vm122, %v1013
    %1016 = vrot.lane.b32.xlu0 %v948, 120
    %v1017 = vpop.permute.xlu0 %1016
    %1018 = vrot.lane.b32.xlu0 %v948, 88
    %v1019 = vpop.permute.xlu0 %1018
    %v1020 = vsel %vm122, %v1017, 0
    %v1022 = vsel %vm122, %v1019, 0
    %1024 = vmatpush.xpose.msra.mxu0 0.0
    %1025 = vmatpush.xpose.msra.mxu0 0.0
    %1026 = vmatpush.xpose.msra.mxu0 0.0
    %1027 = vmatpush.xpose.msra.mxu0 0.0
    %1028 = vmatpush.xpose.msra.mxu0 0.0
    %1029 = vmatpush.xpose.msra.mxu0 0.0
    %1030 = vmatpush.xpose.msra.mxu0 0.0
    %1031 = vmatpush.xpose.msra.mxu0 0.0
    %1032 = vmatpush.xpose.msra.mxu0 0.0
    %1033 = vmatpush.xpose.msra.mxu0 0.0
    %1034 = vmatpush.xpose.msra.mxu0 0.0
    %1035 = vmatpush.xpose.msra.mxu0 0.0
    %1036 = vmatpush.xpose.msra.mxu0 0.0
    %1037 = vmatpush.xpose.msra.mxu0 0.0
    %1038 = vmatpush.xpose.msra.mxu0 0.0
    %1039 = vmatpush.xpose.msra.mxu0 %v1022
    %1040 = vmatmul.f32.gmra.mxu0 %v1020
    %v1041 = vpop.f32.mrf.mxu0
    %v1042 = vadd.f32 0.0, %v1041
    %1043 = vdwg.mxu0
    %v1044 = vmul.f32 %v1042, 0.35355338
    %v1045 = vsel %vm122, %v1044, -inf
    %1046 = vmax.xlane.f32.xlu0 %v1045
    %v1047 = vpop.xlane.xlu0 %1046
    %v1048 = vsub.f32 %v1044, %v1047
    %v1049 = vmul.f32 %v1048, 1.442695
    %v1050 = vpow.pop %v1049
    %v1051 = vsel %vm122, %v1050, 0.0
    %1052 = vadd.xlane.f32.xlu0 %v1051
    %v1053 = vpop.xlane.xlu0 %1052
    %v1054 = vrcp.pop %v1053
    %v1055 = vmul.f32 %v1050, %v1054
    %1056 = vrot.lane.b32.xlu0 %v948, 56
    %v1057 = vpop.permute.xlu0 %1056
    %v1060 = vsel %vm122, %v1055, 0
    %1062 = vmatpush.msra.mxu0 0.0
    %1063 = vmatpush.msra.mxu0 0.0
    %1064 = vmatpush.msra.mxu0 0.0
    %1065 = vmatpush.msra.mxu0 0.0
    %1066 = vmatpush.msra.mxu0 0.0
    %1067 = vmatpush.msra.mxu0 0.0
    %1068 = vmatpush.msra.mxu0 0.0
    %1069 = vmatpush.msra.mxu0 0.0
    %1070 = vmatpush.msra.mxu0 0.0
    %1071 = vmatpush.msra.mxu0 0.0
    %1072 = vmatpush.msra.mxu0 0.0
    %1073 = vmatpush.msra.mxu0 0.0
    %1074 = vmatpush.msra.mxu0 0.0
    %1075 = vmatpush.msra.mxu0 0.0
    %1076 = vmatpush.msra.mxu0 0.0
    %1077 = vmatpush.msra.mxu0 %v1057
    %1078 = vmatmul.f32.gmra.mxu0 %v1060
    %v1079 = vpop.f32.mrf.mxu0
    %v1080 = vadd.f32 0.0, %v1079
    %1081 = vdwg.mxu0
    %1083 = vrot.lane.b32.xlu0 %v1080, 8
    %v1084 = vpop.permute.xlu0 %1083
    %1086 = vst.msk [vmem:[#allocation2] sm:$0xff] %vm256, %v1084
    %1087 = vrot.lane.b32.xlu0 %v948, 112
    %v1088 = vpop.permute.xlu0 %1087
    %1089 = vrot.lane.b32.xlu0 %v948, 80
    %v1090 = vpop.permute.xlu0 %1089
    %v1091 = vsel %vm122, %v1088, 0
    %v1093 = vsel %vm122, %v1090, 0
    %1095 = vmatpush.xpose.msra.mxu0 0.0
    %1096 = vmatpush.xpose.msra.mxu0 0.0
    %1097 = vmatpush.xpose.msra.mxu0 0.0
    %1098 = vmatpush.xpose.msra.mxu0 0.0
    %1099 = vmatpush.xpose.msra.mxu0 0.0
    %1100 = vmatpush.xpose.msra.mxu0 0.0
    %1101 = vmatpush.xpose.msra.mxu0 0.0
    %1102 = vmatpush.xpose.msra.mxu0 0.0
    %1103 = vmatpush.xpose.msra.mxu0 0.0
    %1104 = vmatpush.xpose.msra.mxu0 0.0
    %1105 = vmatpush.xpose.msra.mxu0 0.0
    %1106 = vmatpush.xpose.msra.mxu0 0.0
    %1107 = vmatpush.xpose.msra.mxu0 0.0
    %1108 = vmatpush.xpose.msra.mxu0 0.0
    %1109 = vmatpush.xpose.msra.mxu0 0.0
    %1110 = vmatpush.xpose.msra.mxu0 %v1093
    %1111 = vmatmul.f32.gmra.mxu0 %v1091
    %v1112 = vpop.f32.mrf.mxu0
    %v1113 = vadd.f32 0.0, %v1112
    %1114 = vdwg.mxu0
    %v1115 = vmul.f32 %v1113, 0.35355338
    %v1116 = vsel %vm122, %v1115, -inf
    %1117 = vmax.xlane.f32.xlu0 %v1116
    %v1118 = vpop.xlane.xlu0 %1117
    %v1119 = vsub.f32 %v1115, %v1118
    %v1120 = vmul.f32 %v1119, 1.442695
    %v1121 = vpow.pop %v1120
    %v1122 = vsel %vm122, %v1121, 0.0
    %1123 = vadd.xlane.f32.xlu0 %v1122
    %v1124 = vpop.xlane.xlu0 %1123
    %v1125 = vrcp.pop %v1124
    %v1126 = vmul.f32 %v1121, %v1125
    %1127 = vrot.lane.b32.xlu0 %v948, 48
    %v1128 = vpop.permute.xlu0 %1127
    %v1131 = vsel %vm122, %v1126, 0
    %1133 = vmatpush.msra.mxu0 0.0
    %1134 = vmatpush.msra.mxu0 0.0
    %1135 = vmatpush.msra.mxu0 0.0
    %1136 = vmatpush.msra.mxu0 0.0
    %1137 = vmatpush.msra.mxu0 0.0
    %1138 = vmatpush.msra.mxu0 0.0
    %1139 = vmatpush.msra.mxu0 0.0
    %1140 = vmatpush.msra.mxu0 0.0
    %1141 = vmatpush.msra.mxu0 0.0
    %1142 = vmatpush.msra.mxu0 0.0
    %1143 = vmatpush.msra.mxu0 0.0
    %1144 = vmatpush.msra.mxu0 0.0
    %1145 = vmatpush.msra.mxu0 0.0
    %1146 = vmatpush.msra.mxu0 0.0
    %1147 = vmatpush.msra.mxu0 0.0
    %1148 = vmatpush.msra.mxu0 %v1128
    %1149 = vmatmul.f32.gmra.mxu0 %v1131
    %v1150 = vpop.f32.mrf.mxu0
    %v1151 = vadd.f32 0.0, %v1150
    %1152 = vdwg.mxu0
    %1154 = vrot.lane.b32.xlu0 %v1151, 16
    %v1155 = vpop.permute.xlu0 %1154
    %1157 = vst.msk [vmem:[#allocation2] sm:$0xff] %vm328, %v1155
    %1158 = vrot.lane.b32.xlu0 %v948, 104
    %v1159 = vpop.permute.xlu0 %1158
    %1160 = vrot.lane.b32.xlu0 %v948, 72
    %v1161 = vpop.permute.xlu0 %1160
    %v1162 = vsel %vm122, %v1159, 0
    %v1164 = vsel %vm122, %v1161, 0
    %1166 = vmatpush.xpose.msra.mxu0 0.0
    %1167 = vmatpush.xpose.msra.mxu0 0.0
    %1168 = vmatpush.xpose.msra.mxu0 0.0
    %1169 = vmatpush.xpose.msra.mxu0 0.0
    %1170 = vmatpush.xpose.msra.mxu0 0.0
    %1171 = vmatpush.xpose.msra.mxu0 0.0
    %1172 = vmatpush.xpose.msra.mxu0 0.0
    %1173 = vmatpush.xpose.msra.mxu0 0.0
    %1174 = vmatpush.xpose.msra.mxu0 0.0
    %1175 = vmatpush.xpose.msra.mxu0 0.0
    %1176 = vmatpush.xpose.msra.mxu0 0.0
    %1177 = vmatpush.xpose.msra.mxu0 0.0
    %1178 = vmatpush.xpose.msra.mxu0 0.0
    %1179 = vmatpush.xpose.msra.mxu0 0.0
    %1180 = vmatpush.xpose.msra.mxu0 0.0
    %1181 = vmatpush.xpose.msra.mxu0 %v1164
    %1182 = vmatmul.f32.gmra.mxu0 %v1162
    %v1183 = vpop.f32.mrf.mxu0
    %v1184 = vadd.f32 0.0, %v1183
    %1185 = vdwg.mxu0
    %v1186 = vmul.f32 %v1184, 0.35355338
    %v1187 = vsel %vm122, %v1186, -inf
    %1188 = vmax.xlane.f32.xlu0 %v1187
    %v1189 = vpop.xlane.xlu0 %1188
    %v1190 = vsub.f32 %v1186, %v1189
    %v1191 = vmul.f32 %v1190, 1.442695
    %v1192 = vpow.pop %v1191
    %v1193 = vsel %vm122, %v1192, 0.0
    %1194 = vadd.xlane.f32.xlu0 %v1193
    %v1195 = vpop.xlane.xlu0 %1194
    %v1196 = vrcp.pop %v1195
    %v1197 = vmul.f32 %v1192, %v1196
    %1198 = vrot.lane.b32.xlu0 %v948, 40
    %v1199 = vpop.permute.xlu0 %1198
    %v1202 = vsel %vm122, %v1197, 0
    %1204 = vmatpush.msra.mxu0 0.0
    %1205 = vmatpush.msra.mxu0 0.0
    %1206 = vmatpush.msra.mxu0 0.0
    %1207 = vmatpush.msra.mxu0 0.0
    %1208 = vmatpush.msra.mxu0 0.0
    %1209 = vmatpush.msra.mxu0 0.0
    %1210 = vmatpush.msra.mxu0 0.0
    %1211 = vmatpush.msra.mxu0 0.0
    %1212 = vmatpush.msra.mxu0 0.0
    %1213 = vmatpush.msra.mxu0 0.0
    %1214 = vmatpush.msra.mxu0 0.0
    %1215 = vmatpush.msra.mxu0 0.0
    %1216 = vmatpush.msra.mxu0 0.0
    %1217 = vmatpush.msra.mxu0 0.0
    %1218 = vmatpush.msra.mxu0 0.0
    %1219 = vmatpush.msra.mxu0 %v1199
    %1220 = vmatmul.f32.gmra.mxu0 %v1202
    %v1221 = vpop.f32.mrf.mxu0
    %v1222 = vadd.f32 0.0, %v1221
    %1223 = vdwg.mxu0
    %1225 = vrot.lane.b32.xlu0 %v1222, 24
    %v1226 = vpop.permute.xlu0 %1225
    %1228 = vst.msk [vmem:[#allocation2] sm:$0xff] %vm400, %v1226
    %1230 = vrot.lane.b32.xlu0 %v949, 96
    %v1231 = vpop.permute.xlu0 %1230
    %v1232 = vsel %vm122, %v949, 0
    %v1234 = vsel %vm122, %v1231, 0
    %1236 = vmatpush.xpose.msra.mxu0 0.0
    %1237 = vmatpush.xpose.msra.mxu0 0.0
    %1238 = vmatpush.xpose.msra.mxu0 0.0
    %1239 = vmatpush.xpose.msra.mxu0 0.0
    %1240 = vmatpush.xpose.msra.mxu0 0.0
    %1241 = vmatpush.xpose.msra.mxu0 0.0
    %1242 = vmatpush.xpose.msra.mxu0 0.0
    %1243 = vmatpush.xpose.msra.mxu0 0.0
    %1244 = vmatpush.xpose.msra.mxu0 0.0
    %1245 = vmatpush.xpose.msra.mxu0 0.0
    %1246 = vmatpush.xpose.msra.mxu0 0.0
    %1247 = vmatpush.xpose.msra.mxu0 0.0
    %1248 = vmatpush.xpose.msra.mxu0 0.0
    %1249 = vmatpush.xpose.msra.mxu0 0.0
    %1250 = vmatpush.xpose.msra.mxu0 0.0
    %1251 = vmatpush.xpose.msra.mxu0 %v1234
    %1252 = vmatmul.f32.gmra.mxu0 %v1232
    %v1253 = vpop.f32.mrf.mxu0
    %v1254 = vadd.f32 0.0, %v1253
    %1255 = vdwg.mxu0
    %v1256 = vmul.f32 %v1254, 0.35355338
    %v1257 = vsel %vm122, %v1256, -inf
    %1258 = vmax.xlane.f32.xlu0 %v1257
    %v1259 = vpop.xlane.xlu0 %1258
    %v1260 = vsub.f32 %v1256, %v1259
    %v1261 = vmul.f32 %v1260, 1.442695
    %v1262 = vpow.pop %v1261
    %v1263 = vsel %vm122, %v1262, 0.0
    %1264 = vadd.xlane.f32.xlu0 %v1263
    %v1265 = vpop.xlane.xlu0 %1264
    %v1266 = vrcp.pop %v1265
    %v1267 = vmul.f32 %v1262, %v1266
    %1268 = vrot.lane.b32.xlu0 %v949, 64
    %v1269 = vpop.permute.xlu0 %1268
    %v1272 = vsel %vm122, %v1267, 0
    %1274 = vmatpush.msra.mxu0 0.0
    %1275 = vmatpush.msra.mxu0 0.0
    %1276 = vmatpush.msra.mxu0 0.0
    %1277 = vmatpush.msra.mxu0 0.0
    %1278 = vmatpush.msra.mxu0 0.0
    %1279 = vmatpush.msra.mxu0 0.0
    %1280 = vmatpush.msra.mxu0 0.0
    %1281 = vmatpush.msra.mxu0 0.0
    %1282 = vmatpush.msra.mxu0 0.0
    %1283 = vmatpush.msra.mxu0 0.0
    %1284 = vmatpush.msra.mxu0 0.0
    %1285 = vmatpush.msra.mxu0 0.0
    %1286 = vmatpush.msra.mxu0 0.0
    %1287 = vmatpush.msra.mxu0 0.0
    %1288 = vmatpush.msra.mxu0 0.0
    %1289 = vmatpush.msra.mxu0 %v1269
    %1290 = vmatmul.f32.gmra.mxu0 %v1272
    %v1291 = vpop.f32.mrf.mxu0
    %v1292 = vadd.f32 0.0, %v1291
    %1293 = vdwg.mxu0
    %1294 = vst.msk [vmem:[#allocation2 + $0x8] sm:$0xff] %vm122, %v1292
    %1295 = vrot.lane.b32.xlu0 %v949, 120
    %v1296 = vpop.permute.xlu0 %1295
    %1297 = vrot.lane.b32.xlu0 %v949, 88
    %v1298 = vpop.permute.xlu0 %1297
    %v1299 = vsel %vm122, %v1296, 0
    %v1301 = vsel %vm122, %v1298, 0
    %1303 = vmatpush.xpose.msra.mxu0 0.0
    %1304 = vmatpush.xpose.msra.mxu0 0.0
    %1305 = vmatpush.xpose.msra.mxu0 0.0
    %1306 = vmatpush.xpose.msra.mxu0 0.0
    %1307 = vmatpush.xpose.msra.mxu0 0.0
    %1308 = vmatpush.xpose.msra.mxu0 0.0
    %1309 = vmatpush.xpose.msra.mxu0 0.0
    %1310 = vmatpush.xpose.msra.mxu0 0.0
    %1311 = vmatpush.xpose.msra.mxu0 0.0
    %1312 = vmatpush.xpose.msra.mxu0 0.0
    %1313 = vmatpush.xpose.msra.mxu0 0.0
    %1314 = vmatpush.xpose.msra.mxu0 0.0
    %1315 = vmatpush.xpose.msra.mxu0 0.0
    %1316 = vmatpush.xpose.msra.mxu0 0.0
    %1317 = vmatpush.xpose.msra.mxu0 0.0
    %1318 = vmatpush.xpose.msra.mxu0 %v1301
    %1319 = vmatmul.f32.gmra.mxu0 %v1299
    %v1320 = vpop.f32.mrf.mxu0
    %v1321 = vadd.f32 0.0, %v1320
    %1322 = vdwg.mxu0
    %v1323 = vmul.f32 %v1321, 0.35355338
    %v1324 = vsel %vm122, %v1323, -inf
    %1325 = vmax.xlane.f32.xlu0 %v1324
    %v1326 = vpop.xlane.xlu0 %1325
    %v1327 = vsub.f32 %v1323, %v1326
    %v1328 = vmul.f32 %v1327, 1.442695
    %v1329 = vpow.pop %v1328
    %v1330 = vsel %vm122, %v1329, 0.0
    %1331 = vadd.xlane.f32.xlu0 %v1330
    %v1332 = vpop.xlane.xlu0 %1331
    %v1333 = vrcp.pop %v1332
    %v1334 = vmul.f32 %v1329, %v1333
    %1335 = vrot.lane.b32.xlu0 %v949, 56
    %v1336 = vpop.permute.xlu0 %1335
    %v1339 = vsel %vm122, %v1334, 0
    %1341 = vmatpush.msra.mxu0 0.0
    %1342 = vmatpush.msra.mxu0 0.0
    %1343 = vmatpush.msra.mxu0 0.0
    %1344 = vmatpush.msra.mxu0 0.0
    %1345 = vmatpush.msra.mxu0 0.0
    %1346 = vmatpush.msra.mxu0 0.0
    %1347 = vmatpush.msra.mxu0 0.0
    %1348 = vmatpush.msra.mxu0 0.0
    %1349 = vmatpush.msra.mxu0 0.0
    %1350 = vmatpush.msra.mxu0 0.0
    %1351 = vmatpush.msra.mxu0 0.0
    %1352 = vmatpush.msra.mxu0 0.0
    %1353 = vmatpush.msra.mxu0 0.0
    %1354 = vmatpush.msra.mxu0 0.0
    %1355 = vmatpush.msra.mxu0 0.0
    %1356 = vmatpush.msra.mxu0 %v1336
    %1357 = vmatmul.f32.gmra.mxu0 %v1339
    %v1358 = vpop.f32.mrf.mxu0
    %v1359 = vadd.f32 0.0, %v1358
    %1360 = vdwg.mxu0
    %1362 = vrot.lane.b32.xlu0 %v1359, 8
    %v1363 = vpop.permute.xlu0 %1362
    %1365 = vst.msk [vmem:[#allocation2 + $0x8] sm:$0xff] %vm256, %v1363
    %1366 = vrot.lane.b32.xlu0 %v949, 112
    %v1367 = vpop.permute.xlu0 %1366
    %1368 = vrot.lane.b32.xlu0 %v949, 80
    %v1369 = vpop.permute.xlu0 %1368
    %v1370 = vsel %vm122, %v1367, 0
    %v1372 = vsel %vm122, %v1369, 0
    %1374 = vmatpush.xpose.msra.mxu0 0.0
    %1375 = vmatpush.xpose.msra.mxu0 0.0
    %1376 = vmatpush.xpose.msra.mxu0 0.0
    %1377 = vmatpush.xpose.msra.mxu0 0.0
    %1378 = vmatpush.xpose.msra.mxu0 0.0
    %1379 = vmatpush.xpose.msra.mxu0 0.0
    %1380 = vmatpush.xpose.msra.mxu0 0.0
    %1381 = vmatpush.xpose.msra.mxu0 0.0
    %1382 = vmatpush.xpose.msra.mxu0 0.0
    %1383 = vmatpush.xpose.msra.mxu0 0.0
    %1384 = vmatpush.xpose.msra.mxu0 0.0
    %1385 = vmatpush.xpose.msra.mxu0 0.0
    %1386 = vmatpush.xpose.msra.mxu0 0.0
    %1387 = vmatpush.xpose.msra.mxu0 0.0
    %1388 = vmatpush.xpose.msra.mxu0 0.0
    %1389 = vmatpush.xpose.msra.mxu0 %v1372
    %1390 = vmatmul.f32.gmra.mxu0 %v1370
    %v1391 = vpop.f32.mrf.mxu0
    %v1392 = vadd.f32 0.0, %v1391
    %1393 = vdwg.mxu0
    %v1394 = vmul.f32 %v1392, 0.35355338
    %v1395 = vsel %vm122, %v1394, -inf
    %1396 = vmax.xlane.f32.xlu0 %v1395
    %v1397 = vpop.xlane.xlu0 %1396
    %v1398 = vsub.f32 %v1394, %v1397
    %v1399 = vmul.f32 %v1398, 1.442695
    %v1400 = vpow.pop %v1399
    %v1401 = vsel %vm122, %v1400, 0.0
    %1402 = vadd.xlane.f32.xlu0 %v1401
    %v1403 = vpop.xlane.xlu0 %1402
    %v1404 = vrcp.pop %v1403
    %v1405 = vmul.f32 %v1400, %v1404
    %1406 = vrot.lane.b32.xlu0 %v949, 48
    %v1407 = vpop.permute.xlu0 %1406
    %v1410 = vsel %vm122, %v1405, 0
    %1412 = vmatpush.msra.mxu0 0.0
    %1413 = vmatpush.msra.mxu0 0.0
    %1414 = vmatpush.msra.mxu0 0.0
    %1415 = vmatpush.msra.mxu0 0.0
    %1416 = vmatpush.msra.mxu0 0.0
    %1417 = vmatpush.msra.mxu0 0.0
    %1418 = vmatpush.msra.mxu0 0.0
    %1419 = vmatpush.msra.mxu0 0.0
    %1420 = vmatpush.msra.mxu0 0.0
    %1421 = vmatpush.msra.mxu0 0.0
    %1422 = vmatpush.msra.mxu0 0.0
    %1423 = vmatpush.msra.mxu0 0.0
    %1424 = vmatpush.msra.mxu0 0.0
    %1425 = vmatpush.msra.mxu0 0.0
    %1426 = vmatpush.msra.mxu0 0.0
    %1427 = vmatpush.msra.mxu0 %v1407
    %1428 = vmatmul.f32.gmra.mxu0 %v1410
    %v1429 = vpop.f32.mrf.mxu0
    %v1430 = vadd.f32 0.0, %v1429
    %1431 = vdwg.mxu0
    %1433 = vrot.lane.b32.xlu0 %v1430, 16
    %v1434 = vpop.permute.xlu0 %1433
    %1436 = vst.msk [vmem:[#allocation2 + $0x8] sm:$0xff] %vm328, %v1434
    %1437 = vrot.lane.b32.xlu0 %v949, 104
    %v1438 = vpop.permute.xlu0 %1437
    %1439 = vrot.lane.b32.xlu0 %v949, 72
    %v1440 = vpop.permute.xlu0 %1439
    %v1441 = vsel %vm122, %v1438, 0
    %v1443 = vsel %vm122, %v1440, 0
    %1445 = vmatpush.xpose.msra.mxu0 0.0
    %1446 = vmatpush.xpose.msra.mxu0 0.0
    %1447 = vmatpush.xpose.msra.mxu0 0.0
    %1448 = vmatpush.xpose.msra.mxu0 0.0
    %1449 = vmatpush.xpose.msra.mxu0 0.0
    %1450 = vmatpush.xpose.msra.mxu0 0.0
    %1451 = vmatpush.xpose.msra.mxu0 0.0
    %1452 = vmatpush.xpose.msra.mxu0 0.0
    %1453 = vmatpush.xpose.msra.mxu0 0.0
    %1454 = vmatpush.xpose.msra.mxu0 0.0
    %1455 = vmatpush.xpose.msra.mxu0 0.0
    %1456 = vmatpush.xpose.msra.mxu0 0.0
    %1457 = vmatpush.xpose.msra.mxu0 0.0
    %1458 = vmatpush.xpose.msra.mxu0 0.0
    %1459 = vmatpush.xpose.msra.mxu0 0.0
    %1460 = vmatpush.xpose.msra.mxu0 %v1443
    %1461 = vmatmul.f32.gmra.mxu0 %v1441
    %v1462 = vpop.f32.mrf.mxu0
    %v1463 = vadd.f32 0.0, %v1462
    %1464 = vdwg.mxu0
    %v1465 = vmul.f32 %v1463, 0.35355338
    %v1466 = vsel %vm122, %v1465, -inf
    %1467 = vmax.xlane.f32.xlu0 %v1466
    %v1468 = vpop.xlane.xlu0 %1467
    %v1469 = vsub.f32 %v1465, %v1468
    %v1470 = vmul.f32 %v1469, 1.442695
    %v1471 = vpow.pop %v1470
    %v1472 = vsel %vm122, %v1471, 0.0
    %1473 = vadd.xlane.f32.xlu0 %v1472
    %v1474 = vpop.xlane.xlu0 %1473
    %v1475 = vrcp.pop %v1474
    %v1476 = vmul.f32 %v1471, %v1475
    %1477 = vrot.lane.b32.xlu0 %v949, 40
    %v1478 = vpop.permute.xlu0 %1477
    %v1481 = vsel %vm122, %v1476, 0
    %1483 = vmatpush.msra.mxu0 0.0
    %1484 = vmatpush.msra.mxu0 0.0
    %1485 = vmatpush.msra.mxu0 0.0
    %1486 = vmatpush.msra.mxu0 0.0
    %1487 = vmatpush.msra.mxu0 0.0
    %1488 = vmatpush.msra.mxu0 0.0
    %1489 = vmatpush.msra.mxu0 0.0
    %1490 = vmatpush.msra.mxu0 0.0
    %1491 = vmatpush.msra.mxu0 0.0
    %1492 = vmatpush.msra.mxu0 0.0
    %1493 = vmatpush.msra.mxu0 0.0
    %1494 = vmatpush.msra.mxu0 0.0
    %1495 = vmatpush.msra.mxu0 0.0
    %1496 = vmatpush.msra.mxu0 0.0
    %1497 = vmatpush.msra.mxu0 0.0
    %1498 = vmatpush.msra.mxu0 %v1478
    %1499 = vmatmul.f32.gmra.mxu0 %v1481
    %v1500 = vpop.f32.mrf.mxu0
    %v1501 = vadd.f32 0.0, %v1500
    %1502 = vdwg.mxu0
    %1504 = vrot.lane.b32.xlu0 %v1501, 24
    %v1505 = vpop.permute.xlu0 %1504
    %1507 = vst.msk [vmem:[#allocation2 + $0x8] sm:$0xff] %vm400, %v1505
    %v1508 = vld [vmem:[#allocation2] sm:$0xff]
    %v1509 = vld [vmem:[#allocation2 + $0x8] sm:$0xff]
    %s1510 = scalar_lea.vmem %s5, 32
    %v1511 = vld [vmem:[%s1510] sm:$0xff]
    %v1512 = vld [vmem:[%s1510 + $0x8] sm:$0xff]
    %v1513 = vld [vmem:[%s1510 + $0x10] sm:$0xff]
    %v1514 = vld [vmem:[%s1510 + $0x18] sm:$0xff]
    %v1515 = vperm.slane %v908, 4
    %v1517 = vsel %vm87, %v1508, 0
    %v1520 = vsel %vm87, %v1509, 0
    %1522 = vmatpush.msra.mxu0 0.0
    %1523 = vmatpush.msra.mxu0 0.0
    %1524 = vmatpush.msra.mxu0 0.0
    %1525 = vmatpush.msra.mxu0 0.0
    %1526 = vmatpush.msra.mxu0 0.0
    %1527 = vmatpush.msra.mxu0 0.0
    %1528 = vmatpush.msra.mxu0 0.0
    %1529 = vmatpush.msra.mxu0 0.0
    %1530 = vmatpush.msra.mxu0 0.0
    %1531 = vmatpush.msra.mxu0 0.0
    %1532 = vmatpush.msra.mxu0 0.0
    %1533 = vmatpush.msra.mxu0 0.0
    %1534 = vmatpush.msra.mxu0 %v1514
    %1535 = vmatpush.msra.mxu0 %v1513
    %1536 = vmatpush.msra.mxu0 %v1512
    %1537 = vmatpush.msra.mxu0 %v1511
    %1538 = vmatmul.f32.gmra.mxu0 %v1517
    %v1539 = vpop.f32.mrf.mxu0
    %v1540 = vadd.f32 %v1515, %v1539
    %1541 = vmatmul.f32.gmra.mxu0 %v1520
    %v1542 = vpop.f32.mrf.mxu0
    %v1543 = vadd.f32 %v1515, %v1542
    %1544 = vdwg.mxu0
    %v1545 = vadd.f32 %v1540, %v905
    %v1546 = vadd.f32 %v1543, %v906
    %v1547 = vsel %vm87, %v1545, 0.0
    %1548 = vadd.xlane.f32.xlu0 %v1547
    %v1549 = vpop.xlane.xlu0 %1548
    %v1550 = vsel %vm87, %v1546, 0.0
    %1551 = vadd.xlane.f32.xlu0 %v1550
    %v1552 = vpop.xlane.xlu0 %1551
    %v1553 = vmul.f32 %v1549, %v731
    %v1554 = vmul.f32 %v1552, %v731
    %v1555 = vsub.f32 %v1545, %v1553
    %v1556 = vsub.f32 %v1546, %v1554
    %v1557 = vmul.f32 %v1555, %v1555
    %v1558 = vmul.f32 %v1556, %v1556
    %v1559 = vsel %vm87, %v1557, 0.0
    %1560 = vadd.xlane.f32.xlu0 %v1559
    %v1561 = vpop.xlane.xlu0 %1560
    %v1562 = vsel %vm87, %v1558, 0.0
    %1563 = vadd.xlane.f32.xlu0 %v1562
    %v1564 = vpop.xlane.xlu0 %1563
    %v1565 = vmul.f32 %v1561, %v731
    %v1566 = vmul.f32 %v1564, %v731
    %v1567 = vadd.f32 %v1565, 1e-05
    %v1568 = vadd.f32 %v1566, 1e-05
    %v1569 = vrsqrt.pop %v1567
    %v1570 = vmul.f32 %v1569, %v1567
    %v1571 = vmul.f32 %v1570, %v1569
    %v1572 = vmul.f32 0.5, %v1571
    %v1573 = vsub.f32 1.5, %v1572
    %v1574 = vmul.f32 %v1569, %v1573
    %vm1575 = vweird.f32 %v1567
    %vm1576 = vweird.f32 %v1569
    %vm1577 = vmor %vm1575, %vm1576
    %v1578 = vsel %vm1577, %v1569, %v1574
    %v1579 = vrsqrt.pop %v1568
    %v1580 = vmul.f32 %v1579, %v1568
    %v1581 = vmul.f32 %v1580, %v1579
    %v1582 = vmul.f32 0.5, %v1581
    %v1583 = vsub.f32 1.5, %v1582
    %v1584 = vmul.f32 %v1579, %v1583
    %vm1585 = vweird.f32 %v1568
    %vm1586 = vweird.f32 %v1579
    %vm1587 = vmor %vm1585, %vm1586
    %v1588 = vsel %vm1587, %v1579, %v1584
    %v1589 = vmul.f32 %v1555, %v1578
    %v1590 = vmul.f32 %v1556, %v1588
    %v1591 = vperm.slane %v908, 0
    %v1592 = vmul.f32 %v1589, %v1591
    %v1593 = vmul.f32 %v1590, %v1591
    %v1594 = vperm.slane %v908, 1
    %v1595 = vadd.f32 %v1592, %v1594
    %v1596 = vadd.f32 %v1593, %v1594
    %s1597 = scalar_lea.vmem %s6, 32
    %v1598 = vld [vmem:[%s1597] sm:$0xff]
    %v1599 = vld [vmem:[%s1597 + $0x8] sm:$0xff]
    %v1600 = vld [vmem:[%s1597 + $0x10] sm:$0xff]
    %v1601 = vld [vmem:[%s1597 + $0x18] sm:$0xff]
    %s1602 = scalar_lea.vmem %s7, 1
    %v1603 = vld [vmem:[%s1602] sm:$0x1]
    %v1605 = vperm.slane %v1603, 0
    %v1608 = vsel %vm87, %v1595, 0
    %v1611 = vsel %vm87, %v1596, 0
    %1613 = vmatpush.msra.mxu0 0.0
    %1614 = vmatpush.msra.mxu0 0.0
    %1615 = vmatpush.msra.mxu0 0.0
    %1616 = vmatpush.msra.mxu0 0.0
    %1617 = vmatpush.msra.mxu0 0.0
    %1618 = vmatpush.msra.mxu0 0.0
    %1619 = vmatpush.msra.mxu0 0.0
    %1620 = vmatpush.msra.mxu0 0.0
    %1621 = vmatpush.msra.mxu0 0.0
    %1622 = vmatpush.msra.mxu0 0.0
    %1623 = vmatpush.msra.mxu0 0.0
    %1624 = vmatpush.msra.mxu0 0.0
    %1625 = vmatpush.msra.mxu0 %v1601
    %1626 = vmatpush.msra.mxu0 %v1600
    %1627 = vmatpush.msra.mxu0 %v1599
    %1628 = vmatpush.msra.mxu0 %v1598
    %1629 = vmatmul.f32.gmra.mxu0 %v1608
    %v1630 = vpop.f32.mrf.mxu0
    %v1631 = vadd.f32 %v1605, %v1630
    %1632 = vmatmul.f32.gmra.mxu0 %v1611
    %v1633 = vpop.f32.mrf.mxu0
    %v1634 = vadd.f32 %v1605, %v1633
    %1635 = vdwg.mxu0
    %v1636 = vmax.f32 %v1631, 0.0
    %v1637 = vmax.f32 %v1634, 0.0
    %s1638 = scalar_lea.vmem %s8, 128
    %v1639 = vld [vmem:[%s1638] sm:$0xff]
    %v1640 = vld [vmem:[%s1638 + $0x8] sm:$0xff]
    %v1641 = vld [vmem:[%s1638 + $0x10] sm:$0xff]
    %v1642 = vld [vmem:[%s1638 + $0x18] sm:$0xff]
    %v1643 = vld [vmem:[%s1638 + $0x20] sm:$0xff]
    %v1644 = vld [vmem:[%s1638 + $0x28] sm:$0xff]
    %v1645 = vld [vmem:[%s1638 + $0x30] sm:$0xff]
    %v1646 = vld [vmem:[%s1638 + $0x38] sm:$0xff]
    %v1647 = vld [vmem:[%s1638 + $0x40] sm:$0xff]
    %v1648 = vld [vmem:[%s1638 + $0x48] sm:$0xff]
    %v1649 = vld [vmem:[%s1638 + $0x50] sm:$0xff]
    %v1650 = vld [vmem:[%s1638 + $0x58] sm:$0xff]
    %v1651 = vld [vmem:[%s1638 + $0x60] sm:$0xff]
    %v1652 = vld [vmem:[%s1638 + $0x68] sm:$0xff]
    %v1653 = vld [vmem:[%s1638 + $0x70] sm:$0xff]
    %v1654 = vld [vmem:[%s1638 + $0x78] sm:$0xff]
    %v1655 = vperm.slane %v908, 5
    %1656 = vmatpush.msra.mxu0 %v1654
    %1657 = vmatpush.msra.mxu0 %v1653
    %1658 = vmatpush.msra.mxu0 %v1652
    %1659 = vmatpush.msra.mxu0 %v1651
    %1660 = vmatpush.msra.mxu0 %v1650
    %1661 = vmatpush.msra.mxu0 %v1649
    %1662 = vmatpush.msra.mxu0 %v1648
    %1663 = vmatpush.msra.mxu0 %v1647
    %1664 = vmatpush.msra.mxu0 %v1646
    %1665 = vmatpush.msra.mxu0 %v1645
    %1666 = vmatpush.msra.mxu0 %v1644
    %1667 = vmatpush.msra.mxu0 %v1643
    %1668 = vmatpush.msra.mxu0 %v1642
    %1669 = vmatpush.msra.mxu0 %v1641
    %1670 = vmatpush.msra.mxu0 %v1640
    %1671 = vmatpush.msra.mxu0 %v1639
    %1672 = vmatmul.f32.gmra.mxu0 %v1636
    %v1673 = vpop.f32.mrf.mxu0
    %v1674 = vadd.f32 %v1655, %v1673
    %1675 = vmatmul.f32.gmra.mxu0 %v1637
    %v1676 = vpop.f32.mrf.mxu0
    %v1677 = vadd.f32 %v1655, %v1676
    %1678 = vdwg.mxu0
    %v1679 = vadd.f32 %v1674, %v905
    %v1680 = vadd.f32 %v1677, %v906
    %v1681 = vsel %vm87, %v1679, 0.0
    %1682 = vadd.xlane.f32.xlu0 %v1681
    %v1683 = vpop.xlane.xlu0 %1682
    %v1684 = vsel %vm87, %v1680, 0.0
    %1685 = vadd.xlane.f32.xlu0 %v1684
    %v1686 = vpop.xlane.xlu0 %1685
    %v1687 = vmul.f32 %v1683, %v731
    %v1688 = vmul.f32 %v1686, %v731
    %v1689 = vsub.f32 %v1679, %v1687
    %v1690 = vsub.f32 %v1680, %v1688
    %v1691 = vmul.f32 %v1689, %v1689
    %v1692 = vmul.f32 %v1690, %v1690
    %v1693 = vsel %vm87, %v1691, 0.0
    %1694 = vadd.xlane.f32.xlu0 %v1693
    %v1695 = vpop.xlane.xlu0 %1694
    %v1696 = vsel %vm87, %v1692, 0.0
    %1697 = vadd.xlane.f32.xlu0 %v1696
    %v1698 = vpop.xlane.xlu0 %1697
    %v1699 = vmul.f32 %v1695, %v731
    %v1700 = vmul.f32 %v1698, %v731
    %v1701 = vadd.f32 %v1699, 1e-05
    %v1702 = vadd.f32 %v1700, 1e-05
    %v1703 = vrsqrt.pop %v1701
    %v1704 = vmul.f32 %v1703, %v1701
    %v1705 = vmul.f32 %v1704, %v1703
    %v1706 = vmul.f32 0.5, %v1705
    %v1707 = vsub.f32 1.5, %v1706
    %v1708 = vmul.f32 %v1703, %v1707
    %vm1709 = vweird.f32 %v1701
    %vm1710 = vweird.f32 %v1703
    %vm1711 = vmor %vm1709, %vm1710
    %v1712 = vsel %vm1711, %v1703, %v1708
    %v1713 = vrsqrt.pop %v1702
    %v1714 = vmul.f32 %v1713, %v1702
    %v1715 = vmul.f32 %v1714, %v1713
    %v1716 = vmul.f32 0.5, %v1715
    %v1717 = vsub.f32 1.5, %v1716
    %v1718 = vmul.f32 %v1713, %v1717
    %vm1719 = vweird.f32 %v1702
    %vm1720 = vweird.f32 %v1713
    %vm1721 = vmor %vm1719, %vm1720
    %v1722 = vsel %vm1721, %v1713, %v1718
    %v1723 = vmul.f32 %v1689, %v1712
    %v1724 = vmul.f32 %v1690, %v1722
    %v1725 = vperm.slane %v908, 2
    %v1726 = vmul.f32 %v1723, %v1725
    %v1727 = vmul.f32 %v1724, %v1725
    %v1728 = vperm.slane %v908, 3
    %v1729 = vadd.f32 %v1726, %v1728
    %v1730 = vadd.f32 %v1727, %v1728
    %v1731 = vsel %vm87, %v1729, 0.0
    %v1732 = vrot.slane %v1731, 4
    %v1733 = vadd.f32 %v1731, %v1732
    %v1734 = vrot.slane %v1733, 2
    %v1735 = vadd.f32 %v1733, %v1734
    %v1736 = vrot.slane %v1735, 1
    %v1737 = vadd.f32 %v1735, %v1736
    %v1738 = vrcp.pop 8.0
    %v1739 = vmul.f32 8.0, %v1738
    %v1740 = vsub.f32 1.0, %v1739
    %v1741 = vmul.f32 %v1738, %v1740
    %v1742 = vadd.f32 %v1738, %v1741
    %vm1743 = vweird.f32 %v1738
    %v1744 = vsel %vm1743, %v1738, %v1742
    %v1745 = vmul.f32 %v1737, %v1744
    %v1746 = vsel %vm87, %v1730, 0.0
    %v1747 = vrot.slane %v1746, 4
    %v1748 = vadd.f32 %v1746, %v1747
    %v1749 = vrot.slane %v1748, 2
    %v1750 = vadd.f32 %v1748, %v1749
    %v1751 = vrot.slane %v1750, 1
    %v1752 = vadd.f32 %v1750, %v1751
    %v1753 = vmul.f32 %v1752, %v1744
    %vm1754 = vcmask 1040384
    %v1755 = vsel %vm1754, %v1745, %v1753
    %v1756 = vld [vmem:[%s10] sm:$0xff]
    %v1757 = vld [vmem:[%s10 + $0x8] sm:$0xff]
    %v1758 = vld [vmem:[%s10 + $0x10] sm:$0xff]
    %v1759 = vld [vmem:[%s10 + $0x18] sm:$0xff]
    %v1760 = vld [vmem:[%s11] sm:$0x1]
    %v1762 = vperm.slane %v1760, 0
    %v1765 = vsel %vm87, %v1755, 0
    %1767 = vmatpush.msra.mxu0 0.0
    %1768 = vmatpush.msra.mxu0 0.0
    %1769 = vmatpush.msra.mxu0 0.0
    %1770 = vmatpush.msra.mxu0 0.0
    %1771 = vmatpush.msra.mxu0 0.0
    %1772 = vmatpush.msra.mxu0 0.0
    %1773 = vmatpush.msra.mxu0 0.0
    %1774 = vmatpush.msra.mxu0 0.0
    %1775 = vmatpush.msra.mxu0 0.0
    %1776 = vmatpush.msra.mxu0 0.0
    %1777 = vmatpush.msra.mxu0 0.0
    %1778 = vmatpush.msra.mxu0 0.0
    %1779 = vmatpush.msra.mxu0 %v1759
    %1780 = vmatpush.msra.mxu0 %v1758
    %1781 = vmatpush.msra.mxu0 %v1757
    %1782 = vmatpush.msra.mxu0 %v1756
    %1783 = vmatmul.f32.gmra.mxu0 %v1765
    %v1784 = vpop.f32.mrf.mxu0
    %v1785 = vadd.f32 %v1762, %v1784
    %1786 = vdwg.mxu0
    %vm1787 = vcmask 1041408
    %v1788 = vsel %vm1787, %v1785, -inf
    %1789 = vmax.xlane.f32.xlu0 %v1788
    %v1790 = vpop.xlane.xlu0 %1789
    %v1791 = vsub.f32 %v1785, %v1790
    %v1792 = vmul.f32 %v1791, 1.442695
    %v1793 = vpow.pop %v1792
    %v1794 = vsel %vm1787, %v1793, 0.0
    %1795 = vadd.xlane.f32.xlu0 %v1794
    %v1796 = vpop.xlane.xlu0 %1795
    %v1797 = vlog2.pop %v1796
    %v1798 = vmul.f32 %v1797, 0.6931472
    %v1799 = vsub.f32 %v1791, %v1798
    %1800 = vst [vmem:[#allocation3] sm:$0x3] %v1799
    // Predicated region
    $region50: #{tpu_custom_call.1} parent=1 // pred_check
      _
    $region51: #{tpu_custom_call.1} parent=1 // pred_check_branch
      %1802 = sbr.rel (0) target = $region53
    $region52: #{tpu_custom_call.1} parent=1 // pred_region
      %1804 = vsyncadd [#allocation4], 0
      %s1806 = sshll.u32 [#allocation3], 4
      %s1807 = int_to_ptr.vmem [resolvable:$true] %s1806
      %s1808 = sshll.u32 %s12, 4
      %s1809 = int_to_ptr.hbm [resolvable:$true] %s1808
      %1811 = dma.vmem_to_hbm [thread:$0]  %s1807, 32, %s1809, [#allocation4]
    $region53: #{tpu_custom_call.1} parent=1 // pred_fallthru
      _
    // Predicated region
    $region54: #{tpu_custom_call.1} parent=1 // pred_check
      _
    $region55: #{tpu_custom_call.1} parent=1 // pred_check_branch
      %1813 = sbr.rel (0) target = $region57
    $region56: #{tpu_custom_call.1} parent=1 // pred_region
      %1815 = dma.done [#allocation4], 32
    $region57: #{tpu_custom_call.1} parent=1 // pred_fallthru
      _
    %1816 = vsyncpa [#allocation4], 1

</llo_original>
